<compile_context>
chip_gen: v7x
topology: tpu7x:2x2x1
jax: 0.10.0
libtpu: 0.0.40
codegen_flags: <defaults>
</compile_context>

<pallas_src>
import math

import jax
import jax.numpy as jnp
from jax.experimental import pallas as pl
from jax.experimental.pallas import tpu as pltpu

D_MODEL = 32
N_HEADS = 4
D_K = D_MODEL // N_HEADS
D_FF = 64
N_LAYERS = 2
LN_EPS = 1e-6
OUT_LANES = 128          # lane-dense output width (multiple of 128 -> unmasked vst)


# ----------------------------- fused Pallas kernel ------------------------------

def _encoder_kernel(x_ref, neg_ref, w_ref, b_ref, o_ref, ctx_scratch):
    BS, D = x_ref.shape                    # (B*S, D)
    _, S, _ = neg_ref.shape                # (H*B, S, S)
    B = BS // S
    H, DK = N_HEADS, D_K

    neg = neg_ref[...]                     # additive attention bias, layer-invariant

    def layer_norm(z, g, b):
        # Annotated-Transformer LayerNorm: unbiased std, eps added to std, exact div.
        mean = jnp.mean(z, axis=-1, keepdims=True)
        cz = z - mean
        var = jnp.sum(cz * cz, axis=-1, keepdims=True) * (1.0 / (D - 1))
        return g * (cz / (jnp.sqrt(var) + LN_EPS)) + b

    x2 = x_ref[...]                        # (B*S, D) activation slab, VMEM-resident

    for l in range(N_LAYERS):              # static unroll over layers
        # ---- unpack this layer's packed parameters (static slices) -------------
        wl = w_ref[l]                                     # (64, 256)
        wqkv = wl[:D, 0:3 * D]                            # (D, 3D)
        wo = wl[:D, 3 * D:4 * D]                          # (D, D)
        w1 = wl[:D, 4 * D:4 * D + D_FF]                   # (D, D_FF)
        w2 = wl[:D_FF, 4 * D + D_FF:4 * D + D_FF + D]     # (D_FF, D)
        r = 3 * l
        bqkv = b_ref[r:r + 1, 0:3 * D]                    # (1, 3D)
        bo = b_ref[r + 1:r + 2, 0:D]
        b1 = b_ref[r + 1:r + 2, D:D + D_FF]
        b2 = b_ref[r + 1:r + 2, D + D_FF:2 * D + D_FF]
        ln1g = b_ref[r + 2:r + 3, 0:D]
        ln1b = b_ref[r + 2:r + 3, D:2 * D]
        ln2g = b_ref[r + 2:r + 3, 2 * D:3 * D]
        ln2b = b_ref[r + 2:r + 3, 3 * D:4 * D]

        # ---- sublayer 0: x + SelfAttn(LN(x)) -----------------------------------
        y = layer_norm(x2, ln1g, ln1b)
        # fused QKV projection: one (B*S, D) x (D, 3D) matmul (scale folded into Wq)
        qkv = (jnp.dot(y, wqkv, preferred_element_type=jnp.float32) + bqkv)

        def heads(base):                   # gather head-major batch: (H*B, S, DK)
            return jnp.concatenate(
                [qkv[:, base + h * DK: base + (h + 1) * DK].reshape(B, S, DK)
                 for h in range(H)],
                axis=0)

        q = heads(0)
        k = heads(D)
        v = heads(2 * D)

        # batched attention over the H*B axis (two einsums, not per-head loops)
        s = jnp.einsum('nqd,nkd->nqk', q, k,
                       preferred_element_type=jnp.float32)        # (H*B, S, S)
        s = s + neg                                               # additive mask
        s = s - jnp.max(s, axis=-1, keepdims=True)
        p = jnp.exp(s)
        p = p * pl.reciprocal(jnp.sum(p, axis=-1, keepdims=True), approx=True)
        ctx = jnp.einsum('nqk,nkd->nqd', p, v,
                         preferred_element_type=jnp.float32)      # (H*B, S, DK)

        # merge heads into the lane-dense (B*S, D) scratch slab, then ONE projection
        for h in range(H):
            ctx_scratch[:, h * DK:(h + 1) * DK] = (
                ctx[h * B:(h + 1) * B].reshape(BS, DK))
        merged = ctx_scratch[...]                                 # (B*S, D)
        x2 = x2 + jnp.dot(merged, wo, preferred_element_type=jnp.float32) + bo

        # ---- sublayer 1: x + FFN(LN(x)) ----------------------------------------
        y = layer_norm(x2, ln2g, ln2b)
        hdn = jnp.maximum(
            jnp.dot(y, w1, preferred_element_type=jnp.float32) + b1, 0.0)
        x2 = x2 + jnp.dot(hdn, w2, preferred_element_type=jnp.float32) + b2

    # ---- final Encoder LayerNorm + lane-dense (128-wide) store -------------------
    rfin = 3 * N_LAYERS
    ng = b_ref[rfin:rfin + 1, 0:D]
    nb = b_ref[rfin:rfin + 1, D:2 * D]
    out = layer_norm(x2, ng, nb)                                  # (B*S, D)
    # Place the D result lanes into a full 128-lane slab via a constant 0/1
    # placement matrix (one tiny MXU op) -> single unmasked full-tile store.
    row_ids = jax.lax.broadcasted_iota(jnp.int32, (D, OUT_LANES), 0)
    col_ids = jax.lax.broadcasted_iota(jnp.int32, (D, OUT_LANES), 1)
    pad_eye = (row_ids == col_ids).astype(jnp.float32)            # (D, 128)
    o_ref[...] = jnp.dot(out, pad_eye, preferred_element_type=jnp.float32)


# ---------------------------------- wrapper ------------------------------------

def encoder_forward(params, x, mask, mask_bi):
    """Encoder.forward: all layers + final LayerNorm in one fused Pallas kernel."""
    B, S, D = x.shape
    # Combine padding mask (B,1,S) and directional mask (1,S,S) once, as an
    # additive bias (0 / -1e9), replicated over heads: (H*B, S, S), n = h*B + b.
    keep = (mask != 0) & (mask_bi != 0)                           # (B, S, S)
    neg = jnp.where(keep, 0.0, -1e9).astype(jnp.float32)
    neg = jnp.broadcast_to(neg[None], (N_HEADS, B, S, S)).reshape(N_HEADS * B, S, S)

    out = pl.pallas_call(
        _encoder_kernel,
        out_shape=jax.ShapeDtypeStruct((B * S, OUT_LANES), jnp.float32),
        in_specs=[pl.BlockSpec(memory_space=pltpu.MemorySpace.VMEM)] * 4,
        out_specs=pl.BlockSpec(memory_space=pltpu.MemorySpace.VMEM),
        scratch_shapes=[pltpu.VMEM((B * S, D), jnp.float32)],     # head-merge slab
        compiler_params=pltpu.CompilerParams(
            vmem_limit_bytes=32 * 1024 * 1024),                   # v5e headroom
    )(x.reshape(B * S, D), neg, params["w"], params["b"])

    return out[:, :D].reshape(B, S, D)


# ------------------------------ parameter init --------------------------------

def init_params(key):
    def dense(k, fan_in, fan_out):
        kw, kb = jax.random.split(k)
        bound = 1.0 / math.sqrt(fan_in)   # nn.Linear default init
        w = jax.random.uniform(kw, (fan_in, fan_out), jnp.float32, -bound, bound)
        b = jax.random.uniform(kb, (fan_out,), jnp.float32, -bound, bound)
        return w, b

    ks = jax.random.split(key, 6)
    wq, bq = dense(ks[0], D_MODEL, D_MODEL)
    wk, bk = dense(ks[1], D_MODEL, D_MODEL)
    wv, bv = dense(ks[2], D_MODEL, D_MODEL)
    wo, bo = dense(ks[3], D_MODEL, D_MODEL)
    w1, b1 = dense(ks[4], D_MODEL, D_FF)
    w2, b2 = dense(ks[5], D_FF, D_MODEL)

    # Fold the attention scale 1/sqrt(d_k) into the Q projection (wrapper-side, free).
    inv_sqrt_dk = 1.0 / math.sqrt(D_K)
    wq = wq * inv_sqrt_dk
    bq = bq * inv_sqrt_dk

    D = D_MODEL
    wqkv = jnp.concatenate([wq, wk, wv], axis=1)          # (D, 3D)
    bqkv = jnp.concatenate([bq, bk, bv], axis=0)          # (3D,)

    # Packed per-layer weight slab: (64, 256) = [Wqkv | Wo | W1 | W2 | pad].
    wl = jnp.zeros((D_FF, 8 * D), jnp.float32)
    wl = wl.at[:D, 0:3 * D].set(wqkv)
    wl = wl.at[:D, 3 * D:4 * D].set(wo)
    wl = wl.at[:D, 4 * D:4 * D + D_FF].set(w1)
    wl = wl.at[:D_FF, 4 * D + D_FF:4 * D + D_FF + D].set(w2)
    # clones(layer, N) deep-copies one layer -> identical initial params per layer.
    w_slab = jnp.stack([wl] * N_LAYERS, axis=0)           # (L, 64, 256)

    # Packed bias / LayerNorm slab: one 128-lane row per group, padded to 8 rows.
    row_qkvb = jnp.zeros((128,), jnp.float32).at[0:3 * D].set(bqkv)
    row_bias = (jnp.zeros((128,), jnp.float32)
                .at[0:D].set(bo)
                .at[D:D + D_FF].set(b1)
                .at[D + D_FF:2 * D + D_FF].set(b2))
    row_ln = (jnp.zeros((128,), jnp.float32)              # ln1_g | ln1_b | ln2_g | ln2_b
              .at[0:D].set(1.0)
              .at[2 * D:3 * D].set(1.0))
    row_norm = jnp.zeros((128,), jnp.float32).at[0:D].set(1.0)   # final norm g | b

    rows = []
    for _ in range(N_LAYERS):
        rows += [row_qkvb, row_bias, row_ln]
    rows.append(row_norm)
    pad_rows = (-len(rows)) % 8
    rows += [jnp.zeros((128,), jnp.float32)] * pad_rows
    b_slab = jnp.stack(rows, axis=0)                      # (8, 128)

    return {"w": w_slab, "b": b_slab}


if __name__ == "__main__":
    key = jax.random.PRNGKey(0)
    kx, kp = jax.random.split(key)
    B, S = 2, 8
    x = jax.random.normal(kx, (B, S, D_MODEL), jnp.float32)
    # padding mask (B,1,S): last two positions of batch 1 are padding
    mask = jnp.ones((B, 1, S), jnp.float32).at[1, 0, 6:].set(0.0)
    # directional (forward) mask (1,S,S)
    mask_bi = jnp.tril(jnp.ones((S, S), jnp.float32))[None]

    params = init_params(kp)
    out = encoder_forward(params, x, mask, mask_bi)
    out = jax.block_until_ready(out)
    assert out.shape == (B, S, D_MODEL) and out.dtype == jnp.float32
    assert bool(jnp.all(jnp.isfinite(out)))
    print("KERNEL_OK")
</pallas_src>

<mosaic_0001>
module attributes {stable_mosaic.version = 11 : i64} {
  func.func @_encoder_kernel(%arg0: memref<16x32xf32, #tpu.memory_space<vmem>>, %arg1: memref<8x8x8xf32, #tpu.memory_space<vmem>>, %arg2: memref<2x64x256xf32, #tpu.memory_space<vmem>>, %arg3: memref<8x128xf32, #tpu.memory_space<vmem>>, %arg4: memref<16x128xf32, #tpu.memory_space<vmem>>, %arg5: memref<16x32xf32, #tpu.memory_space<vmem>>) attributes {dimension_semantics = [], scalar_prefetch = 0 : i64, scratch_operands = 1 : i64, tpu.core_type = #tpu.core_type<tc>} {
    %c0 = arith.constant 0 : index
    %c0_0 = arith.constant 0 : index
    %c0_1 = arith.constant 0 : index
    %0 = vector.load %arg1[%c0, %c0_0, %c0_1] : memref<8x8x8xf32, #tpu.memory_space<vmem>>, vector<8x8x8xf32>
    %c0_2 = arith.constant 0 : index
    %c0_3 = arith.constant 0 : index
    %1 = vector.load %arg0[%c0_2, %c0_3] : memref<16x32xf32, #tpu.memory_space<vmem>>, vector<16x32xf32>
    %c0_4 = arith.constant 0 : index
    %c0_5 = arith.constant 0 : index
    %c0_6 = arith.constant 0 : index
    %2 = vector.load %arg2[%c0_4, %c0_5, %c0_6] : memref<2x64x256xf32, #tpu.memory_space<vmem>>, vector<1x64x256xf32>
    %3 = vector.shape_cast %2 : vector<1x64x256xf32> to vector<64x256xf32>
    %4 = vector.extract_strided_slice %3 {offsets = [0, 0], sizes = [32, 96], strides = [1, 1]} : vector<64x256xf32> to vector<32x96xf32>
    %5 = vector.extract_strided_slice %3 {offsets = [0, 96], sizes = [32, 32], strides = [1, 1]} : vector<64x256xf32> to vector<32x32xf32>
    %6 = vector.extract_strided_slice %3 {offsets = [0, 128], sizes = [32, 64], strides = [1, 1]} : vector<64x256xf32> to vector<32x64xf32>
    %7 = vector.extract_strided_slice %3 {offsets = [0, 192], sizes = [64, 32], strides = [1, 1]} : vector<64x256xf32> to vector<64x32xf32>
    %c0_7 = arith.constant 0 : index
    %c0_8 = arith.constant 0 : index
    %8 = vector.load %arg3[%c0_7, %c0_8] : memref<8x128xf32, #tpu.memory_space<vmem>>, vector<1x96xf32>
    %c1 = arith.constant 1 : index
    %c0_9 = arith.constant 0 : index
    %9 = vector.load %arg3[%c1, %c0_9] : memref<8x128xf32, #tpu.memory_space<vmem>>, vector<1x32xf32>
    %c1_10 = arith.constant 1 : index
    %c32 = arith.constant 32 : index
    %10 = vector.load %arg3[%c1_10, %c32] : memref<8x128xf32, #tpu.memory_space<vmem>>, vector<1x64xf32>
    %c1_11 = arith.constant 1 : index
    %c96 = arith.constant 96 : index
    %11 = vector.load %arg3[%c1_11, %c96] : memref<8x128xf32, #tpu.memory_space<vmem>>, vector<1x32xf32>
    %c2 = arith.constant 2 : index
    %c0_12 = arith.constant 0 : index
    %12 = vector.load %arg3[%c2, %c0_12] : memref<8x128xf32, #tpu.memory_space<vmem>>, vector<1x32xf32>
    %c2_13 = arith.constant 2 : index
    %c32_14 = arith.constant 32 : index
    %13 = vector.load %arg3[%c2_13, %c32_14] : memref<8x128xf32, #tpu.memory_space<vmem>>, vector<1x32xf32>
    %c2_15 = arith.constant 2 : index
    %c64 = arith.constant 64 : index
    %14 = vector.load %arg3[%c2_15, %c64] : memref<8x128xf32, #tpu.memory_space<vmem>>, vector<1x32xf32>
    %c2_16 = arith.constant 2 : index
    %c96_17 = arith.constant 96 : index
    %15 = vector.load %arg3[%c2_16, %c96_17] : memref<8x128xf32, #tpu.memory_space<vmem>>, vector<1x32xf32>
    %cst = arith.constant dense<0.000000e+00> : vector<16xf32>
    %16 = vector.multi_reduction <add>, %1, %cst [1] : vector<16x32xf32> to vector<16xf32>
    %17 = vector.shape_cast %16 : vector<16xf32> to vector<16x1xf32>
    %cst_18 = arith.constant 3.200000e+01 : f32
    %18 = vector.broadcast %cst_18 : f32 to vector<16x1xf32>
    %19 = arith.divf %17, %18 : vector<16x1xf32>
    %20 = vector.broadcast %19 : vector<16x1xf32> to vector<16x32xf32>
    %21 = arith.subf %1, %20 : vector<16x32xf32>
    %22 = arith.mulf %21, %21 : vector<16x32xf32>
    %cst_19 = arith.constant dense<0.000000e+00> : vector<16xf32>
    %23 = vector.multi_reduction <add>, %22, %cst_19 [1] : vector<16x32xf32> to vector<16xf32>
    %24 = vector.shape_cast %23 : vector<16xf32> to vector<16x1xf32>
    %cst_20 = arith.constant 0.0322580636 : f32
    %25 = vector.broadcast %cst_20 : f32 to vector<16x1xf32>
    %26 = arith.mulf %24, %25 : vector<16x1xf32>
    %27 = math.sqrt %26 : vector<16x1xf32>
    %cst_21 = arith.constant 9.99999997E-7 : f32
    %28 = vector.broadcast %cst_21 : f32 to vector<16x1xf32>
    %29 = arith.addf %27, %28 : vector<16x1xf32>
    %30 = vector.broadcast %29 : vector<16x1xf32> to vector<16x32xf32>
    %31 = arith.divf %21, %30 : vector<16x32xf32>
    %32 = vector.broadcast %12 : vector<1x32xf32> to vector<16x32xf32>
    %33 = arith.mulf %32, %31 : vector<16x32xf32>
    %34 = vector.broadcast %13 : vector<1x32xf32> to vector<16x32xf32>
    %35 = arith.addf %33, %34 : vector<16x32xf32>
    %cst_22 = arith.constant dense<0.000000e+00> : vector<16x96xf32>
    %36 = tpu.matmul %35, %4, %cst_22 {dimension_numbers = #tpu.dot_dimension_numbers<[1], [0], [0], [1], [0, 0, 1, 1], [], []>} : vector<16x32xf32>, vector<32x96xf32>, vector<16x96xf32> -> vector<16x96xf32>
    %37 = vector.broadcast %8 : vector<1x96xf32> to vector<16x96xf32>
    %38 = arith.addf %36, %37 : vector<16x96xf32>
    %39 = vector.extract_strided_slice %38 {offsets = [0, 0], sizes = [16, 8], strides = [1, 1]} : vector<16x96xf32> to vector<16x8xf32>
    %40 = vector.shape_cast %39 : vector<16x8xf32> to vector<2x8x8xf32>
    %41 = vector.extract_strided_slice %38 {offsets = [0, 8], sizes = [16, 8], strides = [1, 1]} : vector<16x96xf32> to vector<16x8xf32>
    %42 = vector.shape_cast %41 : vector<16x8xf32> to vector<2x8x8xf32>
    %43 = vector.extract_strided_slice %38 {offsets = [0, 16], sizes = [16, 8], strides = [1, 1]} : vector<16x96xf32> to vector<16x8xf32>
    %44 = vector.shape_cast %43 : vector<16x8xf32> to vector<2x8x8xf32>
    %45 = vector.extract_strided_slice %38 {offsets = [0, 24], sizes = [16, 8], strides = [1, 1]} : vector<16x96xf32> to vector<16x8xf32>
    %46 = vector.shape_cast %45 : vector<16x8xf32> to vector<2x8x8xf32>
    %47 = tpu.concatenate %40, %42, %44, %46 in 0 : vector<2x8x8xf32>, vector<2x8x8xf32>, vector<2x8x8xf32>, vector<2x8x8xf32> -> vector<8x8x8xf32>
    %48 = vector.extract_strided_slice %38 {offsets = [0, 32], sizes = [16, 8], strides = [1, 1]} : vector<16x96xf32> to vector<16x8xf32>
    %49 = vector.shape_cast %48 : vector<16x8xf32> to vector<2x8x8xf32>
    %50 = vector.extract_strided_slice %38 {offsets = [0, 40], sizes = [16, 8], strides = [1, 1]} : vector<16x96xf32> to vector<16x8xf32>
    %51 = vector.shape_cast %50 : vector<16x8xf32> to vector<2x8x8xf32>
    %52 = vector.extract_strided_slice %38 {offsets = [0, 48], sizes = [16, 8], strides = [1, 1]} : vector<16x96xf32> to vector<16x8xf32>
    %53 = vector.shape_cast %52 : vector<16x8xf32> to vector<2x8x8xf32>
    %54 = vector.extract_strided_slice %38 {offsets = [0, 56], sizes = [16, 8], strides = [1, 1]} : vector<16x96xf32> to vector<16x8xf32>
    %55 = vector.shape_cast %54 : vector<16x8xf32> to vector<2x8x8xf32>
    %56 = tpu.concatenate %49, %51, %53, %55 in 0 : vector<2x8x8xf32>, vector<2x8x8xf32>, vector<2x8x8xf32>, vector<2x8x8xf32> -> vector<8x8x8xf32>
    %57 = vector.extract_strided_slice %38 {offsets = [0, 64], sizes = [16, 8], strides = [1, 1]} : vector<16x96xf32> to vector<16x8xf32>
    %58 = vector.shape_cast %57 : vector<16x8xf32> to vector<2x8x8xf32>
    %59 = vector.extract_strided_slice %38 {offsets = [0, 72], sizes = [16, 8], strides = [1, 1]} : vector<16x96xf32> to vector<16x8xf32>
    %60 = vector.shape_cast %59 : vector<16x8xf32> to vector<2x8x8xf32>
    %61 = vector.extract_strided_slice %38 {offsets = [0, 80], sizes = [16, 8], strides = [1, 1]} : vector<16x96xf32> to vector<16x8xf32>
    %62 = vector.shape_cast %61 : vector<16x8xf32> to vector<2x8x8xf32>
    %63 = vector.extract_strided_slice %38 {offsets = [0, 88], sizes = [16, 8], strides = [1, 1]} : vector<16x96xf32> to vector<16x8xf32>
    %64 = vector.shape_cast %63 : vector<16x8xf32> to vector<2x8x8xf32>
    %65 = tpu.concatenate %58, %60, %62, %64 in 0 : vector<2x8x8xf32>, vector<2x8x8xf32>, vector<2x8x8xf32>, vector<2x8x8xf32> -> vector<8x8x8xf32>
    "tpu.trace_start"() <{level = 10 : i32, message = "nqd,nkd->nqk"}> : () -> ()
    %cst_23 = arith.constant dense<0.000000e+00> : vector<8x8x8xf32>
    %66 = tpu.matmul %47, %56, %cst_23 {dimension_numbers = #tpu.dot_dimension_numbers<[2], [2], [1], [1], [0, 0, 0, 1, 1, 1], [0], [0]>} : vector<8x8x8xf32>, vector<8x8x8xf32>, vector<8x8x8xf32> -> vector<8x8x8xf32>
    "tpu.trace_stop"() : () -> ()
    %67 = arith.addf %66, %0 : vector<8x8x8xf32>
    %cst_24 = arith.constant dense<0xFF800000> : vector<8x8xf32>
    %68 = vector.multi_reduction <maximumf>, %67, %cst_24 [2] : vector<8x8x8xf32> to vector<8x8xf32>
    %69 = vector.shape_cast %68 : vector<8x8xf32> to vector<8x8x1xf32>
    %70 = vector.broadcast %69 : vector<8x8x1xf32> to vector<8x8x8xf32>
    %71 = arith.subf %67, %70 : vector<8x8x8xf32>
    %72 = math.exp %71 : vector<8x8x8xf32>
    %cst_25 = arith.constant dense<0.000000e+00> : vector<8x8xf32>
    %73 = vector.multi_reduction <add>, %72, %cst_25 [2] : vector<8x8x8xf32> to vector<8x8xf32>
    %74 = vector.shape_cast %73 : vector<8x8xf32> to vector<8x8x1xf32>
    %75 = tpu.reciprocal %74 {approx = true} : vector<8x8x1xf32> -> vector<8x8x1xf32>
    %76 = vector.broadcast %75 : vector<8x8x1xf32> to vector<8x8x8xf32>
    %77 = arith.mulf %72, %76 : vector<8x8x8xf32>
    "tpu.trace_start"() <{level = 10 : i32, message = "nqk,nkd->nqd"}> : () -> ()
    %cst_26 = arith.constant dense<0.000000e+00> : vector<8x8x8xf32>
    %78 = tpu.matmul %77, %65, %cst_26 {dimension_numbers = #tpu.dot_dimension_numbers<[2], [1], [1], [2], [0, 0, 0, 1, 1, 2], [0], [0]>} : vector<8x8x8xf32>, vector<8x8x8xf32>, vector<8x8x8xf32> -> vector<8x8x8xf32>
    "tpu.trace_stop"() : () -> ()
    %79 = vector.extract_strided_slice %78 {offsets = [0, 0, 0], sizes = [2, 8, 8], strides = [1, 1, 1]} : vector<8x8x8xf32> to vector<2x8x8xf32>
    %80 = vector.shape_cast %79 : vector<2x8x8xf32> to vector<16x8xf32>
    %c0_27 = arith.constant 0 : index
    %c0_28 = arith.constant 0 : index
    %81 = vector.load %arg5[%c0_27, %c0_28] : memref<16x32xf32, #tpu.memory_space<vmem>>, vector<16x8xf32>
    tpu.vector_store %arg5[%c0_27, %c0_28], %80 {strides = array<i32>} : memref<16x32xf32, #tpu.memory_space<vmem>>, vector<16x8xf32>,
    %82 = vector.extract_strided_slice %78 {offsets = [2, 0, 0], sizes = [2, 8, 8], strides = [1, 1, 1]} : vector<8x8x8xf32> to vector<2x8x8xf32>
    %83 = vector.shape_cast %82 : vector<2x8x8xf32> to vector<16x8xf32>
    %c0_29 = arith.constant 0 : index
    %c8 = arith.constant 8 : index
    %84 = vector.load %arg5[%c0_29, %c8] : memref<16x32xf32, #tpu.memory_space<vmem>>, vector<16x8xf32>
    tpu.vector_store %arg5[%c0_29, %c8], %83 {strides = array<i32>} : memref<16x32xf32, #tpu.memory_space<vmem>>, vector<16x8xf32>,
    %85 = vector.extract_strided_slice %78 {offsets = [4, 0, 0], sizes = [2, 8, 8], strides = [1, 1, 1]} : vector<8x8x8xf32> to vector<2x8x8xf32>
    %86 = vector.shape_cast %85 : vector<2x8x8xf32> to vector<16x8xf32>
    %c0_30 = arith.constant 0 : index
    %c16 = arith.constant 16 : index
    %87 = vector.load %arg5[%c0_30, %c16] : memref<16x32xf32, #tpu.memory_space<vmem>>, vector<16x8xf32>
    tpu.vector_store %arg5[%c0_30, %c16], %86 {strides = array<i32>} : memref<16x32xf32, #tpu.memory_space<vmem>>, vector<16x8xf32>,
    %88 = vector.extract_strided_slice %78 {offsets = [6, 0, 0], sizes = [2, 8, 8], strides = [1, 1, 1]} : vector<8x8x8xf32> to vector<2x8x8xf32>
    %89 = vector.shape_cast %88 : vector<2x8x8xf32> to vector<16x8xf32>
    %c0_31 = arith.constant 0 : index
    %c24 = arith.constant 24 : index
    %90 = vector.load %arg5[%c0_31, %c24] : memref<16x32xf32, #tpu.memory_space<vmem>>, vector<16x8xf32>
    tpu.vector_store %arg5[%c0_31, %c24], %89 {strides = array<i32>} : memref<16x32xf32, #tpu.memory_space<vmem>>, vector<16x8xf32>,
    %c0_32 = arith.constant 0 : index
    %c0_33 = arith.constant 0 : index
    %91 = vector.load %arg5[%c0_32, %c0_33] : memref<16x32xf32, #tpu.memory_space<vmem>>, vector<16x32xf32>
    %cst_34 = arith.constant dense<0.000000e+00> : vector<16x32xf32>
    %92 = tpu.matmul %91, %5, %cst_34 {dimension_numbers = #tpu.dot_dimension_numbers<[1], [0], [0], [1], [0, 0, 1, 1], [], []>} : vector<16x32xf32>, vector<32x32xf32>, vector<16x32xf32> -> vector<16x32xf32>
    %93 = arith.addf %1, %92 : vector<16x32xf32>
    %94 = vector.broadcast %9 : vector<1x32xf32> to vector<16x32xf32>
    %95 = arith.addf %93, %94 : vector<16x32xf32>
    %cst_35 = arith.constant dense<0.000000e+00> : vector<16xf32>
    %96 = vector.multi_reduction <add>, %95, %cst_35 [1] : vector<16x32xf32> to vector<16xf32>
    %97 = vector.shape_cast %96 : vector<16xf32> to vector<16x1xf32>
    %cst_36 = arith.constant 3.200000e+01 : f32
    %98 = vector.broadcast %cst_36 : f32 to vector<16x1xf32>
    %99 = arith.divf %97, %98 : vector<16x1xf32>
    %100 = vector.broadcast %99 : vector<16x1xf32> to vector<16x32xf32>
    %101 = arith.subf %95, %100 : vector<16x32xf32>
    %102 = arith.mulf %101, %101 : vector<16x32xf32>
    %cst_37 = arith.constant dense<0.000000e+00> : vector<16xf32>
    %103 = vector.multi_reduction <add>, %102, %cst_37 [1] : vector<16x32xf32> to vector<16xf32>
    %104 = vector.shape_cast %103 : vector<16xf32> to vector<16x1xf32>
    %cst_38 = arith.constant 0.0322580636 : f32
    %105 = vector.broadcast %cst_38 : f32 to vector<16x1xf32>
    %106 = arith.mulf %104, %105 : vector<16x1xf32>
    %107 = math.sqrt %106 : vector<16x1xf32>
    %cst_39 = arith.constant 9.99999997E-7 : f32
    %108 = vector.broadcast %cst_39 : f32 to vector<16x1xf32>
    %109 = arith.addf %107, %108 : vector<16x1xf32>
    %110 = vector.broadcast %109 : vector<16x1xf32> to vector<16x32xf32>
    %111 = arith.divf %101, %110 : vector<16x32xf32>
    %112 = vector.broadcast %14 : vector<1x32xf32> to vector<16x32xf32>
    %113 = arith.mulf %112, %111 : vector<16x32xf32>
    %114 = vector.broadcast %15 : vector<1x32xf32> to vector<16x32xf32>
    %115 = arith.addf %113, %114 : vector<16x32xf32>
    %cst_40 = arith.constant dense<0.000000e+00> : vector<16x64xf32>
    %116 = tpu.matmul %115, %6, %cst_40 {dimension_numbers = #tpu.dot_dimension_numbers<[1], [0], [0], [1], [0, 0, 1, 1], [], []>} : vector<16x32xf32>, vector<32x64xf32>, vector<16x64xf32> -> vector<16x64xf32>
    %117 = vector.broadcast %10 : vector<1x64xf32> to vector<16x64xf32>
    %118 = arith.addf %116, %117 : vector<16x64xf32>
    %cst_41 = arith.constant 0.000000e+00 : f32
    %119 = vector.broadcast %cst_41 : f32 to vector<16x64xf32>
    %120 = arith.maximumf %118, %119 : vector<16x64xf32>
    %cst_42 = arith.constant dense<0.000000e+00> : vector<16x32xf32>
    %121 = tpu.matmul %120, %7, %cst_42 {dimension_numbers = #tpu.dot_dimension_numbers<[1], [0], [0], [1], [0, 0, 1, 1], [], []>} : vector<16x64xf32>, vector<64x32xf32>, vector<16x32xf32> -> vector<16x32xf32>
    %122 = arith.addf %95, %121 : vector<16x32xf32>
    %123 = vector.broadcast %11 : vector<1x32xf32> to vector<16x32xf32>
    %124 = arith.addf %122, %123 : vector<16x32xf32>
    %c1_43 = arith.constant 1 : index
    %c0_44 = arith.constant 0 : index
    %c0_45 = arith.constant 0 : index
    %125 = vector.load %arg2[%c1_43, %c0_44, %c0_45] : memref<2x64x256xf32, #tpu.memory_space<vmem>>, vector<1x64x256xf32>
    %126 = vector.shape_cast %125 : vector<1x64x256xf32> to vector<64x256xf32>
    %127 = vector.extract_strided_slice %126 {offsets = [0, 0], sizes = [32, 96], strides = [1, 1]} : vector<64x256xf32> to vector<32x96xf32>
    %128 = vector.extract_strided_slice %126 {offsets = [0, 96], sizes = [32, 32], strides = [1, 1]} : vector<64x256xf32> to vector<32x32xf32>
    %129 = vector.extract_strided_slice %126 {offsets = [0, 128], sizes = [32, 64], strides = [1, 1]} : vector<64x256xf32> to vector<32x64xf32>
    %130 = vector.extract_strided_slice %126 {offsets = [0, 192], sizes = [64, 32], strides = [1, 1]} : vector<64x256xf32> to vector<64x32xf32>
    %c3 = arith.constant 3 : index
    %c0_46 = arith.constant 0 : index
    %131 = vector.load %arg3[%c3, %c0_46] : memref<8x128xf32, #tpu.memory_space<vmem>>, vector<1x96xf32>
    %c4 = arith.constant 4 : index
    %c0_47 = arith.constant 0 : index
    %132 = vector.load %arg3[%c4, %c0_47] : memref<8x128xf32, #tpu.memory_space<vmem>>, vector<1x32xf32>
    %c4_48 = arith.constant 4 : index
    %c32_49 = arith.constant 32 : index
    %133 = vector.load %arg3[%c4_48, %c32_49] : memref<8x128xf32, #tpu.memory_space<vmem>>, vector<1x64xf32>
    %c4_50 = arith.constant 4 : index
    %c96_51 = arith.constant 96 : index
    %134 = vector.load %arg3[%c4_50, %c96_51] : memref<8x128xf32, #tpu.memory_space<vmem>>, vector<1x32xf32>
    %c5 = arith.constant 5 : index
    %c0_52 = arith.constant 0 : index
    %135 = vector.load %arg3[%c5, %c0_52] : memref<8x128xf32, #tpu.memory_space<vmem>>, vector<1x32xf32>
    %c5_53 = arith.constant 5 : index
    %c32_54 = arith.constant 32 : index
    %136 = vector.load %arg3[%c5_53, %c32_54] : memref<8x128xf32, #tpu.memory_space<vmem>>, vector<1x32xf32>
    %c5_55 = arith.constant 5 : index
    %c64_56 = arith.constant 64 : index
    %137 = vector.load %arg3[%c5_55, %c64_56] : memref<8x128xf32, #tpu.memory_space<vmem>>, vector<1x32xf32>
    %c5_57 = arith.constant 5 : index
    %c96_58 = arith.constant 96 : index
    %138 = vector.load %arg3[%c5_57, %c96_58] : memref<8x128xf32, #tpu.memory_space<vmem>>, vector<1x32xf32>
    %cst_59 = arith.constant dense<0.000000e+00> : vector<16xf32>
    %139 = vector.multi_reduction <add>, %124, %cst_59 [1] : vector<16x32xf32> to vector<16xf32>
    %140 = vector.shape_cast %139 : vector<16xf32> to vector<16x1xf32>
    %cst_60 = arith.constant 3.200000e+01 : f32
    %141 = vector.broadcast %cst_60 : f32 to vector<16x1xf32>
    %142 = arith.divf %140, %141 : vector<16x1xf32>
    %143 = vector.broadcast %142 : vector<16x1xf32> to vector<16x32xf32>
    %144 = arith.subf %124, %143 : vector<16x32xf32>
    %145 = arith.mulf %144, %144 : vector<16x32xf32>
    %cst_61 = arith.constant dense<0.000000e+00> : vector<16xf32>
    %146 = vector.multi_reduction <add>, %145, %cst_61 [1] : vector<16x32xf32> to vector<16xf32>
    %147 = vector.shape_cast %146 : vector<16xf32> to vector<16x1xf32>
    %cst_62 = arith.constant 0.0322580636 : f32
    %148 = vector.broadcast %cst_62 : f32 to vector<16x1xf32>
    %149 = arith.mulf %147, %148 : vector<16x1xf32>
    %150 = math.sqrt %149 : vector<16x1xf32>
    %cst_63 = arith.constant 9.99999997E-7 : f32
    %151 = vector.broadcast %cst_63 : f32 to vector<16x1xf32>
    %152 = arith.addf %150, %151 : vector<16x1xf32>
    %153 = vector.broadcast %152 : vector<16x1xf32> to vector<16x32xf32>
    %154 = arith.divf %144, %153 : vector<16x32xf32>
    %155 = vector.broadcast %135 : vector<1x32xf32> to vector<16x32xf32>
    %156 = arith.mulf %155, %154 : vector<16x32xf32>
    %157 = vector.broadcast %136 : vector<1x32xf32> to vector<16x32xf32>
    %158 = arith.addf %156, %157 : vector<16x32xf32>
    %cst_64 = arith.constant dense<0.000000e+00> : vector<16x96xf32>
    %159 = tpu.matmul %158, %127, %cst_64 {dimension_numbers = #tpu.dot_dimension_numbers<[1], [0], [0], [1], [0, 0, 1, 1], [], []>} : vector<16x32xf32>, vector<32x96xf32>, vector<16x96xf32> -> vector<16x96xf32>
    %160 = vector.broadcast %131 : vector<1x96xf32> to vector<16x96xf32>
    %161 = arith.addf %159, %160 : vector<16x96xf32>
    %162 = vector.extract_strided_slice %161 {offsets = [0, 0], sizes = [16, 8], strides = [1, 1]} : vector<16x96xf32> to vector<16x8xf32>
    %163 = vector.shape_cast %162 : vector<16x8xf32> to vector<2x8x8xf32>
    %164 = vector.extract_strided_slice %161 {offsets = [0, 8], sizes = [16, 8], strides = [1, 1]} : vector<16x96xf32> to vector<16x8xf32>
    %165 = vector.shape_cast %164 : vector<16x8xf32> to vector<2x8x8xf32>
    %166 = vector.extract_strided_slice %161 {offsets = [0, 16], sizes = [16, 8], strides = [1, 1]} : vector<16x96xf32> to vector<16x8xf32>
    %167 = vector.shape_cast %166 : vector<16x8xf32> to vector<2x8x8xf32>
    %168 = vector.extract_strided_slice %161 {offsets = [0, 24], sizes = [16, 8], strides = [1, 1]} : vector<16x96xf32> to vector<16x8xf32>
    %169 = vector.shape_cast %168 : vector<16x8xf32> to vector<2x8x8xf32>
    %170 = tpu.concatenate %163, %165, %167, %169 in 0 : vector<2x8x8xf32>, vector<2x8x8xf32>, vector<2x8x8xf32>, vector<2x8x8xf32> -> vector<8x8x8xf32>
    %171 = vector.extract_strided_slice %161 {offsets = [0, 32], sizes = [16, 8], strides = [1, 1]} : vector<16x96xf32> to vector<16x8xf32>
    %172 = vector.shape_cast %171 : vector<16x8xf32> to vector<2x8x8xf32>
    %173 = vector.extract_strided_slice %161 {offsets = [0, 40], sizes = [16, 8], strides = [1, 1]} : vector<16x96xf32> to vector<16x8xf32>
    %174 = vector.shape_cast %173 : vector<16x8xf32> to vector<2x8x8xf32>
    %175 = vector.extract_strided_slice %161 {offsets = [0, 48], sizes = [16, 8], strides = [1, 1]} : vector<16x96xf32> to vector<16x8xf32>
    %176 = vector.shape_cast %175 : vector<16x8xf32> to vector<2x8x8xf32>
    %177 = vector.extract_strided_slice %161 {offsets = [0, 56], sizes = [16, 8], strides = [1, 1]} : vector<16x96xf32> to vector<16x8xf32>
    %178 = vector.shape_cast %177 : vector<16x8xf32> to vector<2x8x8xf32>
    %179 = tpu.concatenate %172, %174, %176, %178 in 0 : vector<2x8x8xf32>, vector<2x8x8xf32>, vector<2x8x8xf32>, vector<2x8x8xf32> -> vector<8x8x8xf32>
    %180 = vector.extract_strided_slice %161 {offsets = [0, 64], sizes = [16, 8], strides = [1, 1]} : vector<16x96xf32> to vector<16x8xf32>
    %181 = vector.shape_cast %180 : vector<16x8xf32> to vector<2x8x8xf32>
    %182 = vector.extract_strided_slice %161 {offsets = [0, 72], sizes = [16, 8], strides = [1, 1]} : vector<16x96xf32> to vector<16x8xf32>
    %183 = vector.shape_cast %182 : vector<16x8xf32> to vector<2x8x8xf32>
    %184 = vector.extract_strided_slice %161 {offsets = [0, 80], sizes = [16, 8], strides = [1, 1]} : vector<16x96xf32> to vector<16x8xf32>
    %185 = vector.shape_cast %184 : vector<16x8xf32> to vector<2x8x8xf32>
    %186 = vector.extract_strided_slice %161 {offsets = [0, 88], sizes = [16, 8], strides = [1, 1]} : vector<16x96xf32> to vector<16x8xf32>
    %187 = vector.shape_cast %186 : vector<16x8xf32> to vector<2x8x8xf32>
    %188 = tpu.concatenate %181, %183, %185, %187 in 0 : vector<2x8x8xf32>, vector<2x8x8xf32>, vector<2x8x8xf32>, vector<2x8x8xf32> -> vector<8x8x8xf32>
    "tpu.trace_start"() <{level = 10 : i32, message = "nqd,nkd->nqk"}> : () -> ()
    %cst_65 = arith.constant dense<0.000000e+00> : vector<8x8x8xf32>
    %189 = tpu.matmul %170, %179, %cst_65 {dimension_numbers = #tpu.dot_dimension_numbers<[2], [2], [1], [1], [0, 0, 0, 1, 1, 1], [0], [0]>} : vector<8x8x8xf32>, vector<8x8x8xf32>, vector<8x8x8xf32> -> vector<8x8x8xf32>
    "tpu.trace_stop"() : () -> ()
    %190 = arith.addf %189, %0 : vector<8x8x8xf32>
    %cst_66 = arith.constant dense<0xFF800000> : vector<8x8xf32>
    %191 = vector.multi_reduction <maximumf>, %190, %cst_66 [2] : vector<8x8x8xf32> to vector<8x8xf32>
    %192 = vector.shape_cast %191 : vector<8x8xf32> to vector<8x8x1xf32>
    %193 = vector.broadcast %192 : vector<8x8x1xf32> to vector<8x8x8xf32>
    %194 = arith.subf %190, %193 : vector<8x8x8xf32>
    %195 = math.exp %194 : vector<8x8x8xf32>
    %cst_67 = arith.constant dense<0.000000e+00> : vector<8x8xf32>
    %196 = vector.multi_reduction <add>, %195, %cst_67 [2] : vector<8x8x8xf32> to vector<8x8xf32>
    %197 = vector.shape_cast %196 : vector<8x8xf32> to vector<8x8x1xf32>
    %198 = tpu.reciprocal %197 {approx = true} : vector<8x8x1xf32> -> vector<8x8x1xf32>
    %199 = vector.broadcast %198 : vector<8x8x1xf32> to vector<8x8x8xf32>
    %200 = arith.mulf %195, %199 : vector<8x8x8xf32>
    "tpu.trace_start"() <{level = 10 : i32, message = "nqk,nkd->nqd"}> : () -> ()
    %cst_68 = arith.constant dense<0.000000e+00> : vector<8x8x8xf32>
    %201 = tpu.matmul %200, %188, %cst_68 {dimension_numbers = #tpu.dot_dimension_numbers<[2], [1], [1], [2], [0, 0, 0, 1, 1, 2], [0], [0]>} : vector<8x8x8xf32>, vector<8x8x8xf32>, vector<8x8x8xf32> -> vector<8x8x8xf32>
    "tpu.trace_stop"() : () -> ()
    %202 = vector.extract_strided_slice %201 {offsets = [0, 0, 0], sizes = [2, 8, 8], strides = [1, 1, 1]} : vector<8x8x8xf32> to vector<2x8x8xf32>
    %203 = vector.shape_cast %202 : vector<2x8x8xf32> to vector<16x8xf32>
    %c0_69 = arith.constant 0 : index
    %c0_70 = arith.constant 0 : index
    %204 = vector.load %arg5[%c0_69, %c0_70] : memref<16x32xf32, #tpu.memory_space<vmem>>, vector<16x8xf32>
    tpu.vector_store %arg5[%c0_69, %c0_70], %203 {strides = array<i32>} : memref<16x32xf32, #tpu.memory_space<vmem>>, vector<16x8xf32>,
    %205 = vector.extract_strided_slice %201 {offsets = [2, 0, 0], sizes = [2, 8, 8], strides = [1, 1, 1]} : vector<8x8x8xf32> to vector<2x8x8xf32>
    %206 = vector.shape_cast %205 : vector<2x8x8xf32> to vector<16x8xf32>
    %c0_71 = arith.constant 0 : index
    %c8_72 = arith.constant 8 : index
    %207 = vector.load %arg5[%c0_71, %c8_72] : memref<16x32xf32, #tpu.memory_space<vmem>>, vector<16x8xf32>
    tpu.vector_store %arg5[%c0_71, %c8_72], %206 {strides = array<i32>} : memref<16x32xf32, #tpu.memory_space<vmem>>, vector<16x8xf32>,
    %208 = vector.extract_strided_slice %201 {offsets = [4, 0, 0], sizes = [2, 8, 8], strides = [1, 1, 1]} : vector<8x8x8xf32> to vector<2x8x8xf32>
    %209 = vector.shape_cast %208 : vector<2x8x8xf32> to vector<16x8xf32>
    %c0_73 = arith.constant 0 : index
    %c16_74 = arith.constant 16 : index
    %210 = vector.load %arg5[%c0_73, %c16_74] : memref<16x32xf32, #tpu.memory_space<vmem>>, vector<16x8xf32>
    tpu.vector_store %arg5[%c0_73, %c16_74], %209 {strides = array<i32>} : memref<16x32xf32, #tpu.memory_space<vmem>>, vector<16x8xf32>,
    %211 = vector.extract_strided_slice %201 {offsets = [6, 0, 0], sizes = [2, 8, 8], strides = [1, 1, 1]} : vector<8x8x8xf32> to vector<2x8x8xf32>
    %212 = vector.shape_cast %211 : vector<2x8x8xf32> to vector<16x8xf32>
    %c0_75 = arith.constant 0 : index
    %c24_76 = arith.constant 24 : index
    %213 = vector.load %arg5[%c0_75, %c24_76] : memref<16x32xf32, #tpu.memory_space<vmem>>, vector<16x8xf32>
    tpu.vector_store %arg5[%c0_75, %c24_76], %212 {strides = array<i32>} : memref<16x32xf32, #tpu.memory_space<vmem>>, vector<16x8xf32>,
    %c0_77 = arith.constant 0 : index
    %c0_78 = arith.constant 0 : index
    %214 = vector.load %arg5[%c0_77, %c0_78] : memref<16x32xf32, #tpu.memory_space<vmem>>, vector<16x32xf32>
    %cst_79 = arith.constant dense<0.000000e+00> : vector<16x32xf32>
    %215 = tpu.matmul %214, %128, %cst_79 {dimension_numbers = #tpu.dot_dimension_numbers<[1], [0], [0], [1], [0, 0, 1, 1], [], []>} : vector<16x32xf32>, vector<32x32xf32>, vector<16x32xf32> -> vector<16x32xf32>
    %216 = arith.addf %124, %215 : vector<16x32xf32>
    %217 = vector.broadcast %132 : vector<1x32xf32> to vector<16x32xf32>
    %218 = arith.addf %216, %217 : vector<16x32xf32>
    %cst_80 = arith.constant dense<0.000000e+00> : vector<16xf32>
    %219 = vector.multi_reduction <add>, %218, %cst_80 [1] : vector<16x32xf32> to vector<16xf32>
    %220 = vector.shape_cast %219 : vector<16xf32> to vector<16x1xf32>
    %cst_81 = arith.constant 3.200000e+01 : f32
    %221 = vector.broadcast %cst_81 : f32 to vector<16x1xf32>
    %222 = arith.divf %220, %221 : vector<16x1xf32>
    %223 = vector.broadcast %222 : vector<16x1xf32> to vector<16x32xf32>
    %224 = arith.subf %218, %223 : vector<16x32xf32>
    %225 = arith.mulf %224, %224 : vector<16x32xf32>
    %cst_82 = arith.constant dense<0.000000e+00> : vector<16xf32>
    %226 = vector.multi_reduction <add>, %225, %cst_82 [1] : vector<16x32xf32> to vector<16xf32>
    %227 = vector.shape_cast %226 : vector<16xf32> to vector<16x1xf32>
    %cst_83 = arith.constant 0.0322580636 : f32
    %228 = vector.broadcast %cst_83 : f32 to vector<16x1xf32>
    %229 = arith.mulf %227, %228 : vector<16x1xf32>
    %230 = math.sqrt %229 : vector<16x1xf32>
    %cst_84 = arith.constant 9.99999997E-7 : f32
    %231 = vector.broadcast %cst_84 : f32 to vector<16x1xf32>
    %232 = arith.addf %230, %231 : vector<16x1xf32>
    %233 = vector.broadcast %232 : vector<16x1xf32> to vector<16x32xf32>
    %234 = arith.divf %224, %233 : vector<16x32xf32>
    %235 = vector.broadcast %137 : vector<1x32xf32> to vector<16x32xf32>
    %236 = arith.mulf %235, %234 : vector<16x32xf32>
    %237 = vector.broadcast %138 : vector<1x32xf32> to vector<16x32xf32>
    %238 = arith.addf %236, %237 : vector<16x32xf32>
    %cst_85 = arith.constant dense<0.000000e+00> : vector<16x64xf32>
    %239 = tpu.matmul %238, %129, %cst_85 {dimension_numbers = #tpu.dot_dimension_numbers<[1], [0], [0], [1], [0, 0, 1, 1], [], []>} : vector<16x32xf32>, vector<32x64xf32>, vector<16x64xf32> -> vector<16x64xf32>
    %240 = vector.broadcast %133 : vector<1x64xf32> to vector<16x64xf32>
    %241 = arith.addf %239, %240 : vector<16x64xf32>
    %cst_86 = arith.constant 0.000000e+00 : f32
    %242 = vector.broadcast %cst_86 : f32 to vector<16x64xf32>
    %243 = arith.maximumf %241, %242 : vector<16x64xf32>
    %cst_87 = arith.constant dense<0.000000e+00> : vector<16x32xf32>
    %244 = tpu.matmul %243, %130, %cst_87 {dimension_numbers = #tpu.dot_dimension_numbers<[1], [0], [0], [1], [0, 0, 1, 1], [], []>} : vector<16x64xf32>, vector<64x32xf32>, vector<16x32xf32> -> vector<16x32xf32>
    %245 = arith.addf %218, %244 : vector<16x32xf32>
    %246 = vector.broadcast %134 : vector<1x32xf32> to vector<16x32xf32>
    %247 = arith.addf %245, %246 : vector<16x32xf32>
    %c6 = arith.constant 6 : index
    %c0_88 = arith.constant 0 : index
    %248 = vector.load %arg3[%c6, %c0_88] : memref<8x128xf32, #tpu.memory_space<vmem>>, vector<1x32xf32>
    %c6_89 = arith.constant 6 : index
    %c32_90 = arith.constant 32 : index
    %249 = vector.load %arg3[%c6_89, %c32_90] : memref<8x128xf32, #tpu.memory_space<vmem>>, vector<1x32xf32>
    %cst_91 = arith.constant dense<0.000000e+00> : vector<16xf32>
    %250 = vector.multi_reduction <add>, %247, %cst_91 [1] : vector<16x32xf32> to vector<16xf32>
    %251 = vector.shape_cast %250 : vector<16xf32> to vector<16x1xf32>
    %cst_92 = arith.constant 3.200000e+01 : f32
    %252 = vector.broadcast %cst_92 : f32 to vector<16x1xf32>
    %253 = arith.divf %251, %252 : vector<16x1xf32>
    %254 = vector.broadcast %253 : vector<16x1xf32> to vector<16x32xf32>
    %255 = arith.subf %247, %254 : vector<16x32xf32>
    %256 = arith.mulf %255, %255 : vector<16x32xf32>
    %cst_93 = arith.constant dense<0.000000e+00> : vector<16xf32>
    %257 = vector.multi_reduction <add>, %256, %cst_93 [1] : vector<16x32xf32> to vector<16xf32>
    %258 = vector.shape_cast %257 : vector<16xf32> to vector<16x1xf32>
    %cst_94 = arith.constant 0.0322580636 : f32
    %259 = vector.broadcast %cst_94 : f32 to vector<16x1xf32>
    %260 = arith.mulf %258, %259 : vector<16x1xf32>
    %261 = math.sqrt %260 : vector<16x1xf32>
    %cst_95 = arith.constant 9.99999997E-7 : f32
    %262 = vector.broadcast %cst_95 : f32 to vector<16x1xf32>
    %263 = arith.addf %261, %262 : vector<16x1xf32>
    %264 = vector.broadcast %263 : vector<16x1xf32> to vector<16x32xf32>
    %265 = arith.divf %255, %264 : vector<16x32xf32>
    %266 = vector.broadcast %248 : vector<1x32xf32> to vector<16x32xf32>
    %267 = arith.mulf %266, %265 : vector<16x32xf32>
    %268 = vector.broadcast %249 : vector<1x32xf32> to vector<16x32xf32>
    %269 = arith.addf %267, %268 : vector<16x32xf32>
    %270 = tpu.iota {dimensions = array<i32: 0>} : vector<32x128xi32>
    %271 = tpu.iota {dimensions = array<i32: 1>} : vector<32x128xi32>
    %272 = arith.cmpi eq, %270, %271 : vector<32x128xi32>
    %273 = arith.extui %272 : vector<32x128xi1> to vector<32x128xi32>
    %274 = arith.sitofp %273 : vector<32x128xi32> to vector<32x128xf32>
    %cst_96 = arith.constant dense<0.000000e+00> : vector<16x128xf32>
    %275 = tpu.matmul %269, %274, %cst_96 {dimension_numbers = #tpu.dot_dimension_numbers<[1], [0], [0], [1], [0, 0, 1, 1], [], []>} : vector<16x32xf32>, vector<32x128xf32>, vector<16x128xf32> -> vector<16x128xf32>
    %c0_97 = arith.constant 0 : index
    %c0_98 = arith.constant 0 : index
    %276 = vector.load %arg4[%c0_97, %c0_98] : memref<16x128xf32, #tpu.memory_space<vmem>>, vector<16x128xf32>
    tpu.vector_store %arg4[%c0_97, %c0_98], %275 {strides = array<i32>} : memref<16x128xf32, #tpu.memory_space<vmem>>, vector<16x128xf32>,
    return
  }
}

</mosaic_0001>

<llo_original>
// kernel: tpu_custom_call.1
$region0: #{tpu_custom_call.1}
  #allocation0 [shape = 'u32[]', space=smem, size = 0x4, offset = 0x4, fixed_abs, tag = 'smem constant byte address 0x4 - core index']
  #allocation1 [shape = 'u32[144,128]{1,0:T(1,128)}', space=vmem, size = 0x12000, scoped, tag = 'internal scratch']
  #allocation2 [shape = 'f32[16,32]{1,0:T(8,128)}', space=vmem, size = 0x2000, scoped, tag = 'scratch operand']
  %s0 = inlined_call_operand.hbm [shape: f32[16,32], index: 0, kind: input, shape index: {}]
  %s1 = inlined_call_operand.hbm [shape: f32[8,8,8], index: 1, kind: input, shape index: {}]
  %s2 = inlined_call_operand.hbm [shape: f32[2,64,256], index: 2, kind: input, shape index: {}]
  %s3 = inlined_call_operand.vmem [shape: f32[8,128], index: 3, kind: input, shape index: {}]
  %s4 = inlined_call_operand.hbm [shape: f32[16,128], index: 4, kind: output, shape index: {}]
  %s5 = sld [smem:[#allocation0]]
  $region38: #{tpu_custom_call.1} parent=0
    _
  %s7 = ssub.s32 1, %s5
  %s8 = scalar_select 0, %s7, %s5
  $region1: #{tpu_custom_call.1} parent=0
    #allocation3 [shape = 'u8[8192]{0}', space=vmem, size = 0x2000, scoped, tag = 'input window, operand 0, single buffered']
    #allocation4 [shape = 's32[1]{0}', space=sflag, size = 0x4, scoped, tag = 'scoped memory for tpu_custom_call.1']
    #allocation5 [shape = 's32[1]{0}', space=sflag, size = 0x4, scoped, tag = 'scoped memory for tpu_custom_call.1']
    #allocation6 [shape = 'u8[32768]{0}', space=vmem, size = 0x8000, scoped, tag = 'input window, operand 1, single buffered']
    #allocation7 [shape = 's32[1]{0}', space=sflag, size = 0x4, scoped, tag = 'scoped memory for tpu_custom_call.1']
    #allocation8 [shape = 'u8[131072]{0}', space=vmem, size = 0x20000, scoped, tag = 'input window, operand 2, single buffered']
    #allocation9 [shape = 'u8[8192]{0}', space=vmem, size = 0x2000, scoped, tag = 'output window, operand 0, single buffered']
    %9 = vsyncpa [#allocation4], 0
    %10 = vsyncpa [#allocation7], 0
    %11 = vsyncpa [#allocation5], 0
    // Predicated region
    $region2: #{tpu_custom_call.1} parent=1 // pred_check
      _
    $region3: #{tpu_custom_call.1} parent=1 // pred_check_branch
      %13 = sbr.rel (0) target = $region5
    $region4: #{tpu_custom_call.1} parent=1 // pred_region
      %s15 = ssub.s32 256, 256
      %16 = vsyncadd [#allocation4], %s15
      %s17 = sshll.u32 [#allocation3], 4
      %s18 = int_to_ptr.vmem [resolvable:$true] %s17
      %23 = dma.hbm_to_vmem [thread:$0]  %s0, 256, %s18, [#allocation4], 128, 128, 8
    $region5: #{tpu_custom_call.1} parent=1 // pred_fallthru
      _
    // Predicated region
    $region6: #{tpu_custom_call.1} parent=1 // pred_check
      _
    $region7: #{tpu_custom_call.1} parent=1 // pred_check_branch
      %25 = sbr.rel (0) target = $region9
    $region8: #{tpu_custom_call.1} parent=1 // pred_region
      %s27 = ssub.s32 1024, 1024
      %28 = vsyncadd [#allocation7], %s27
      %s29 = sshll.u32 [#allocation6], 4
      %s30 = int_to_ptr.vmem [resolvable:$true] %s29
      %35 = dma.hbm_to_vmem [thread:$0]  %s1, 1024, %s30, [#allocation7], 128, 128, 8
    $region9: #{tpu_custom_call.1} parent=1 // pred_fallthru
      _
    // Predicated region
    $region10: #{tpu_custom_call.1} parent=1 // pred_check
      _
    $region11: #{tpu_custom_call.1} parent=1 // pred_check_branch
      %37 = sbr.rel (0) target = $region13
    $region12: #{tpu_custom_call.1} parent=1 // pred_region
      %s39 = ssub.s32 4096, 4096
      %40 = vsyncadd [#allocation7], %s39
      %s41 = sshll.u32 [#allocation8], 4
      %s42 = int_to_ptr.vmem [resolvable:$true] %s41
      %47 = dma.hbm_to_vmem [thread:$0]  %s2, 4096, %s42, [#allocation7], 256, 256, 16
    $region13: #{tpu_custom_call.1} parent=1 // pred_fallthru
      _
    // Predicated region
    $region14: #{tpu_custom_call.1} parent=1 // pred_check
      _
    $region15: #{tpu_custom_call.1} parent=1 // pred_check_branch
      %49 = sbr.rel (0) target = $region17
    $region16: #{tpu_custom_call.1} parent=1 // pred_region
      _
    $region17: #{tpu_custom_call.1} parent=1 // pred_fallthru
      _
    // Predicated region
    $region18: #{tpu_custom_call.1} parent=1 // pred_check
      _
    $region19: #{tpu_custom_call.1} parent=1 // pred_check_branch
      %51 = sbr.rel (0) target = $region21
    $region20: #{tpu_custom_call.1} parent=1 // pred_region
      %52 = dma.done [#allocation4], 256
    $region21: #{tpu_custom_call.1} parent=1 // pred_fallthru
      _
    // Predicated region
    $region22: #{tpu_custom_call.1} parent=1 // pred_check
      _
    $region23: #{tpu_custom_call.1} parent=1 // pred_check_branch
      %54 = sbr.rel (0) target = $region25
    $region24: #{tpu_custom_call.1} parent=1 // pred_region
      %55 = dma.done [#allocation7], 1024
    $region25: #{tpu_custom_call.1} parent=1 // pred_fallthru
      _
    // Predicated region
    $region26: #{tpu_custom_call.1} parent=1 // pred_check
      _
    $region27: #{tpu_custom_call.1} parent=1 // pred_check_branch
      %57 = sbr.rel (0) target = $region29
    $region28: #{tpu_custom_call.1} parent=1 // pred_region
      %58 = dma.done [#allocation7], 4096
    $region29: #{tpu_custom_call.1} parent=1 // pred_fallthru
      _
    %v59 = vld [vmem:[#allocation6] sm:$0xff]
    %v60 = vld [vmem:[#allocation6 + $0x8] sm:$0xff]
    %v61 = vld [vmem:[#allocation6 + $0x10] sm:$0xff]
    %v62 = vld [vmem:[#allocation6 + $0x18] sm:$0xff]
    %v63 = vld [vmem:[#allocation6 + $0x20] sm:$0xff]
    %v64 = vld [vmem:[#allocation6 + $0x28] sm:$0xff]
    %v65 = vld [vmem:[#allocation6 + $0x30] sm:$0xff]
    %v66 = vld [vmem:[#allocation6 + $0x38] sm:$0xff]
    %v67 = vld [vmem:[#allocation3] sm:$0xff]
    %v68 = vld [vmem:[#allocation3 + $0x8] sm:$0xff]
    %v69 = vld [vmem:[#allocation8] sm:$0xff]
    %v70 = vld [vmem:[#allocation8 + $0x8] sm:$0xff]
    %v71 = vld [vmem:[#allocation8 + $0x10] sm:$0xff]
    %v72 = vld [vmem:[#allocation8 + $0x18] sm:$0xff]
    %v73 = vld [vmem:[#allocation8 + $0x20] sm:$0xff]
    %v74 = vld [vmem:[#allocation8 + $0x28] sm:$0xff]
    %v75 = vld [vmem:[#allocation8 + $0x30] sm:$0xff]
    %v76 = vld [vmem:[#allocation8 + $0x38] sm:$0xff]
    %v77 = vld [vmem:[#allocation8 + $0x48] sm:$0xff]
    %v78 = vld [vmem:[#allocation8 + $0x58] sm:$0xff]
    %v79 = vld [vmem:[#allocation8 + $0x68] sm:$0xff]
    %v80 = vld [vmem:[#allocation8 + $0x78] sm:$0xff]
    %v81 = vld [vmem:[%s3] sm:$0x1]
    %v82 = vld [vmem:[%s3 + $0x1] sm:$0x1]
    %v83 = vld [vmem:[%s3 + $0x2] sm:$0x1]
    %vm84 = vcmask 261120
    %v85 = vsel %vm84, %v67, 0.0
    %86 = vadd.xlane.f32.xlu0 %v85
    %v87 = vpop.xlane.xlu0 %86
    %v88 = vsel %vm84, %v68, 0.0
    %89 = vadd.xlane.f32.xlu0 %v88
    %v90 = vpop.xlane.xlu0 %89
    %v91 = vrcp.pop 32.0
    %v92 = vmul.f32 %v87, %v91
    %v93 = vmul.f32 %v90, %v91
    %v94 = vsub.f32 %v67, %v92
    %v95 = vsub.f32 %v68, %v93
    %v96 = vmul.f32 %v94, %v94
    %v97 = vmul.f32 %v95, %v95
    %v98 = vsel %vm84, %v96, 0.0
    %99 = vadd.xlane.f32.xlu0 %v98
    %v100 = vpop.xlane.xlu0 %99
    %v101 = vsel %vm84, %v97, 0.0
    %102 = vadd.xlane.f32.xlu0 %v101
    %v103 = vpop.xlane.xlu0 %102
    %v104 = vmul.f32 %v100, 0.032258064
    %v105 = vmul.f32 %v103, 0.032258064
    %v106 = vrsqrt.pop %v104
    %v107 = vmul.f32 %v104, %v106
    %vm108 = vcmp.eq.f32.partialorder %v104, inf
    %v109 = vsel %vm108, %v104, %v107
    %vm110 = vcmp.eq.f32.partialorder %v104, 0.0
    %v111 = vand.u32 %v104, 2147483648
    %v112 = vsel %vm110, %v111, %v109
    %v113 = vrsqrt.pop %v105
    %v114 = vmul.f32 %v105, %v113
    %vm115 = vcmp.eq.f32.partialorder %v105, inf
    %v116 = vsel %vm115, %v105, %v114
    %vm117 = vcmp.eq.f32.partialorder %v105, 0.0
    %v118 = vand.u32 %v105, 2147483648
    %v119 = vsel %vm117, %v118, %v116
    %v120 = vadd.f32 %v112, 1e-06
    %v121 = vadd.f32 %v119, 1e-06
    %v122 = vrcp.pop %v120
    %v123 = vmul.f32 %v94, %v122
    %v124 = vrcp.pop %v121
    %v125 = vmul.f32 %v95, %v124
    %v126 = vlaneseq
    %v127 = vshrl.u32 %v126, 7
    %v128 = vsub.s32 0, %v127
    %v129 = vrot.slane %v83, %v128
    %v130 = vmul.f32 %v129, %v123
    %v131 = vmul.f32 %v129, %v125
    %133 = vrot.lane.b32.xlu0 %v129, 96
    %v134 = vpop.permute.xlu0 %133
    %v136 = vadd.f32 %v130, %v134
    %v137 = vadd.f32 %v131, %v134
    %v138 = vlaneseq
    %v139 = vshrl.u32 %v138, 7
    %v140 = vsub.s32 0, %v139
    %v141 = vrot.slane %v81, %v140
    %v143 = vsel %vm84, %v136, 0
    %v146 = vsel %vm84, %v137, 0
    %148 = vmatprep.subr.mxu0 0.0
    %149 = vmatpush1.msra.mxu0 %v69
    %150 = vmatprep.subr.mxu0 0.0
    %151 = vmatpush1.msra.mxu0 %v71
    %152 = vmatprep.subr.mxu0 0.0
    %153 = vmatpush1.msra.mxu0 %v73
    %154 = vmatprep.subr.mxu0 0.0
    %155 = vmatpush1.msra.mxu0 %v75
    %156 = vmatprep.subr.mxu0 0.0
    %157 = vmatpush1.msra.mxu0 0.0
    %158 = vmatprep.subr.mxu0 0.0
    %159 = vmatpush1.msra.mxu0 0.0
    %160 = vmatprep.subr.mxu0 0.0
    %161 = vmatpush1.msra.mxu0 0.0
    %162 = vmatprep.subr.mxu0 0.0
    %163 = vmatpush1.msra.mxu0 0.0
    %164 = vmatprep.subr.mxu0 0.0
    %165 = vmatpush1.msra.mxu0 0.0
    %166 = vmatprep.subr.mxu0 0.0
    %167 = vmatpush1.msra.mxu0 0.0
    %168 = vmatprep.subr.mxu0 0.0
    %169 = vmatpush1.msra.mxu0 0.0
    %170 = vmatprep.subr.mxu0 0.0
    %171 = vmatpush1.msra.mxu0 0.0
    %172 = vmatprep.subr.mxu0 0.0
    %173 = vmatpush1.msra.mxu0 0.0
    %174 = vmatprep.subr.mxu0 0.0
    %175 = vmatpush1.msra.mxu0 0.0
    %176 = vmatprep.subr.mxu0 0.0
    %177 = vmatpush1.msra.mxu0 0.0
    %178 = vmatprep.subr.mxu0 0.0
    %179 = vmatpush1.msra.mxu0 0.0
    %180 = vmatprep.subr.mxu0 0.0
    %181 = vmatpush1.msra.mxu0 0.0
    %182 = vmatprep.subr.mxu0 0.0
    %183 = vmatpush1.msra.mxu0 0.0
    %184 = vmatprep.subr.mxu0 0.0
    %185 = vmatpush1.msra.mxu0 0.0
    %186 = vmatprep.subr.mxu0 0.0
    %187 = vmatpush1.msra.mxu0 0.0
    %188 = vmatprep.subr.mxu0 0.0
    %189 = vmatpush1.msra.mxu0 0.0
    %190 = vmatprep.subr.mxu0 0.0
    %191 = vmatpush1.msra.mxu0 0.0
    %192 = vmatprep.subr.mxu0 0.0
    %193 = vmatpush1.msra.mxu0 0.0
    %194 = vmatprep.subr.mxu0 0.0
    %195 = vmatpush1.msra.mxu0 0.0
    %196 = vmatprep.subr.mxu0 0.0
    %197 = vmatpush1.msra.mxu0 0.0
    %198 = vmatprep.subr.mxu0 0.0
    %199 = vmatpush1.msra.mxu0 0.0
    %200 = vmatprep.subr.mxu0 0.0
    %201 = vmatpush1.msra.mxu0 0.0
    %202 = vmatprep.subr.mxu0 0.0
    %203 = vmatpush1.msra.mxu0 0.0
    %204 = vmatprep.subr.mxu0 0.0
    %205 = vmatpush1.msra.mxu0 0.0
    %206 = vmatprep.subr.mxu0 0.0
    %207 = vmatpush1.msra.mxu0 0.0
    %208 = vmatprep.subr.mxu0 0.0
    %209 = vmatpush1.msra.mxu0 0.0
    %210 = vmatprep.subr.mxu0 0.0
    %211 = vmatpush1.msra.mxu0 0.0
    %212 = vmatprep.mubr.f32.mxu0 0.0
    %213 = vmatmul.mubr.f32.gmra.mrb[0].mxu0 %v143
    %v214 = vpop.f32.mrb[0].mxu0
    %v215 = vadd.f32 %v141, %v214
    %v216 = vpop.f32.mrb[0].mxu0
    %217 = vmatprep.mubr.f32.mxu0 0.0
    %218 = vmatmul.mubr.f32.gmra.mrb[0].mxu0 %v146
    %v219 = vpop.f32.mrb[0].mxu0
    %v220 = vadd.f32 %v141, %v219
    %v221 = vpop.f32.mrb[0].mxu0
    %222 = vdwg.mxu0
    %225 = vrot.lane.b32.xlu0 %v215, 120
    %v226 = vpop.permute.xlu0 %225
    %227 = vrot.lane.b32.xlu0 %v220, 120
    %v228 = vpop.permute.xlu0 %227
    %229 = vrot.lane.b32.xlu0 %v215, 112
    %v230 = vpop.permute.xlu0 %229
    %231 = vrot.lane.b32.xlu0 %v220, 112
    %v232 = vpop.permute.xlu0 %231
    %233 = vrot.lane.b32.xlu0 %v215, 104
    %v234 = vpop.permute.xlu0 %233
    %235 = vrot.lane.b32.xlu0 %v220, 104
    %v236 = vpop.permute.xlu0 %235
    %237 = vrot.lane.b32.xlu0 %v215, 96
    %v238 = vpop.permute.xlu0 %237
    %vm239 = vcmask 64512
    %v240 = vsel %vm239, %v215, 0
    %v242 = vsel %vm239, %v238, 0
    %244 = vmatprep.subr.mxu0 0.0
    %245 = vmatpush1.xpose.msra.mxu0 %v242
    %246 = vmatprep.subr.mxu0 0.0
    %247 = vmatpush1.xpose.msra.mxu0 0.0
    %248 = vmatprep.subr.mxu0 0.0
    %249 = vmatpush1.xpose.msra.mxu0 0.0
    %250 = vmatprep.subr.mxu0 0.0
    %251 = vmatpush1.xpose.msra.mxu0 0.0
    %252 = vmatprep.subr.mxu0 0.0
    %253 = vmatpush1.xpose.msra.mxu0 0.0
    %254 = vmatprep.subr.mxu0 0.0
    %255 = vmatpush1.xpose.msra.mxu0 0.0
    %256 = vmatprep.subr.mxu0 0.0
    %257 = vmatpush1.xpose.msra.mxu0 0.0
    %258 = vmatprep.subr.mxu0 0.0
    %259 = vmatpush1.xpose.msra.mxu0 0.0
    %260 = vmatprep.subr.mxu0 0.0
    %261 = vmatpush1.xpose.msra.mxu0 0.0
    %262 = vmatprep.subr.mxu0 0.0
    %263 = vmatpush1.xpose.msra.mxu0 0.0
    %264 = vmatprep.subr.mxu0 0.0
    %265 = vmatpush1.xpose.msra.mxu0 0.0
    %266 = vmatprep.subr.mxu0 0.0
    %267 = vmatpush1.xpose.msra.mxu0 0.0
    %268 = vmatprep.subr.mxu0 0.0
    %269 = vmatpush1.xpose.msra.mxu0 0.0
    %270 = vmatprep.subr.mxu0 0.0
    %271 = vmatpush1.xpose.msra.mxu0 0.0
    %272 = vmatprep.subr.mxu0 0.0
    %273 = vmatpush1.xpose.msra.mxu0 0.0
    %274 = vmatprep.subr.mxu0 0.0
    %275 = vmatpush1.xpose.msra.mxu0 0.0
    %276 = vmatprep.subr.mxu0 0.0
    %277 = vmatpush1.xpose.msra.mxu0 0.0
    %278 = vmatprep.subr.mxu0 0.0
    %279 = vmatpush1.xpose.msra.mxu0 0.0
    %280 = vmatprep.subr.mxu0 0.0
    %281 = vmatpush1.xpose.msra.mxu0 0.0
    %282 = vmatprep.subr.mxu0 0.0
    %283 = vmatpush1.xpose.msra.mxu0 0.0
    %284 = vmatprep.subr.mxu0 0.0
    %285 = vmatpush1.xpose.msra.mxu0 0.0
    %286 = vmatprep.subr.mxu0 0.0
    %287 = vmatpush1.xpose.msra.mxu0 0.0
    %288 = vmatprep.subr.mxu0 0.0
    %289 = vmatpush1.xpose.msra.mxu0 0.0
    %290 = vmatprep.subr.mxu0 0.0
    %291 = vmatpush1.xpose.msra.mxu0 0.0
    %292 = vmatprep.subr.mxu0 0.0
    %293 = vmatpush1.xpose.msra.mxu0 0.0
    %294 = vmatprep.subr.mxu0 0.0
    %295 = vmatpush1.xpose.msra.mxu0 0.0
    %296 = vmatprep.subr.mxu0 0.0
    %297 = vmatpush1.xpose.msra.mxu0 0.0
    %298 = vmatprep.subr.mxu0 0.0
    %299 = vmatpush1.xpose.msra.mxu0 0.0
    %300 = vmatprep.subr.mxu0 0.0
    %301 = vmatpush1.xpose.msra.mxu0 0.0
    %302 = vmatprep.subr.mxu0 0.0
    %303 = vmatpush1.xpose.msra.mxu0 0.0
    %304 = vmatprep.subr.mxu0 0.0
    %305 = vmatpush1.xpose.msra.mxu0 0.0
    %306 = vmatprep.subr.mxu0 0.0
    %307 = vmatpush1.xpose.msra.mxu0 0.0
    %308 = vmatprep.mubr.f32.mxu0 0.0
    %309 = vmatmul.mubr.f32.gmra.mrb[0].mxu0 %v240
    %v310 = vpop.f32.mrb[0].mxu0
    %v311 = vadd.f32 %v59, %v310
    %v312 = vpop.f32.mrb[0].mxu0
    %313 = vdwg.mxu0
    %314 = vrot.lane.b32.xlu0 %v220, 96
    %v315 = vpop.permute.xlu0 %314
    %v316 = vsel %vm239, %v220, 0
    %v318 = vsel %vm239, %v315, 0
    %320 = vmatprep.subr.mxu0 0.0
    %321 = vmatpush1.xpose.msra.mxu0 %v318
    %322 = vmatprep.subr.mxu0 0.0
    %323 = vmatpush1.xpose.msra.mxu0 0.0
    %324 = vmatprep.subr.mxu0 0.0
    %325 = vmatpush1.xpose.msra.mxu0 0.0
    %326 = vmatprep.subr.mxu0 0.0
    %327 = vmatpush1.xpose.msra.mxu0 0.0
    %328 = vmatprep.subr.mxu0 0.0
    %329 = vmatpush1.xpose.msra.mxu0 0.0
    %330 = vmatprep.subr.mxu0 0.0
    %331 = vmatpush1.xpose.msra.mxu0 0.0
    %332 = vmatprep.subr.mxu0 0.0
    %333 = vmatpush1.xpose.msra.mxu0 0.0
    %334 = vmatprep.subr.mxu0 0.0
    %335 = vmatpush1.xpose.msra.mxu0 0.0
    %336 = vmatprep.subr.mxu0 0.0
    %337 = vmatpush1.xpose.msra.mxu0 0.0
    %338 = vmatprep.subr.mxu0 0.0
    %339 = vmatpush1.xpose.msra.mxu0 0.0
    %340 = vmatprep.subr.mxu0 0.0
    %341 = vmatpush1.xpose.msra.mxu0 0.0
    %342 = vmatprep.subr.mxu0 0.0
    %343 = vmatpush1.xpose.msra.mxu0 0.0
    %344 = vmatprep.subr.mxu0 0.0
    %345 = vmatpush1.xpose.msra.mxu0 0.0
    %346 = vmatprep.subr.mxu0 0.0
    %347 = vmatpush1.xpose.msra.mxu0 0.0
    %348 = vmatprep.subr.mxu0 0.0
    %349 = vmatpush1.xpose.msra.mxu0 0.0
    %350 = vmatprep.subr.mxu0 0.0
    %351 = vmatpush1.xpose.msra.mxu0 0.0
    %352 = vmatprep.subr.mxu0 0.0
    %353 = vmatpush1.xpose.msra.mxu0 0.0
    %354 = vmatprep.subr.mxu0 0.0
    %355 = vmatpush1.xpose.msra.mxu0 0.0
    %356 = vmatprep.subr.mxu0 0.0
    %357 = vmatpush1.xpose.msra.mxu0 0.0
    %358 = vmatprep.subr.mxu0 0.0
    %359 = vmatpush1.xpose.msra.mxu0 0.0
    %360 = vmatprep.subr.mxu0 0.0
    %361 = vmatpush1.xpose.msra.mxu0 0.0
    %362 = vmatprep.subr.mxu0 0.0
    %363 = vmatpush1.xpose.msra.mxu0 0.0
    %364 = vmatprep.subr.mxu0 0.0
    %365 = vmatpush1.xpose.msra.mxu0 0.0
    %366 = vmatprep.subr.mxu0 0.0
    %367 = vmatpush1.xpose.msra.mxu0 0.0
    %368 = vmatprep.subr.mxu0 0.0
    %369 = vmatpush1.xpose.msra.mxu0 0.0
    %370 = vmatprep.subr.mxu0 0.0
    %371 = vmatpush1.xpose.msra.mxu0 0.0
    %372 = vmatprep.subr.mxu0 0.0
    %373 = vmatpush1.xpose.msra.mxu0 0.0
    %374 = vmatprep.subr.mxu0 0.0
    %375 = vmatpush1.xpose.msra.mxu0 0.0
    %376 = vmatprep.subr.mxu0 0.0
    %377 = vmatpush1.xpose.msra.mxu0 0.0
    %378 = vmatprep.subr.mxu0 0.0
    %379 = vmatpush1.xpose.msra.mxu0 0.0
    %380 = vmatprep.subr.mxu0 0.0
    %381 = vmatpush1.xpose.msra.mxu0 0.0
    %382 = vmatprep.subr.mxu0 0.0
    %383 = vmatpush1.xpose.msra.mxu0 0.0
    %384 = vmatprep.mubr.f32.mxu0 0.0
    %385 = vmatmul.mubr.f32.gmra.mrb[0].mxu0 %v316
    %v386 = vpop.f32.mrb[0].mxu0
    %v387 = vadd.f32 %v60, %v386
    %v388 = vpop.f32.mrb[0].mxu0
    %389 = vdwg.mxu0
    %390 = vrot.lane.b32.xlu0 %v226, 96
    %v391 = vpop.permute.xlu0 %390
    %v392 = vsel %vm239, %v226, 0
    %v394 = vsel %vm239, %v391, 0
    %396 = vmatprep.subr.mxu0 0.0
    %397 = vmatpush1.xpose.msra.mxu0 %v394
    %398 = vmatprep.subr.mxu0 0.0
    %399 = vmatpush1.xpose.msra.mxu0 0.0
    %400 = vmatprep.subr.mxu0 0.0
    %401 = vmatpush1.xpose.msra.mxu0 0.0
    %402 = vmatprep.subr.mxu0 0.0
    %403 = vmatpush1.xpose.msra.mxu0 0.0
    %404 = vmatprep.subr.mxu0 0.0
    %405 = vmatpush1.xpose.msra.mxu0 0.0
    %406 = vmatprep.subr.mxu0 0.0
    %407 = vmatpush1.xpose.msra.mxu0 0.0
    %408 = vmatprep.subr.mxu0 0.0
    %409 = vmatpush1.xpose.msra.mxu0 0.0
    %410 = vmatprep.subr.mxu0 0.0
    %411 = vmatpush1.xpose.msra.mxu0 0.0
    %412 = vmatprep.subr.mxu0 0.0
    %413 = vmatpush1.xpose.msra.mxu0 0.0
    %414 = vmatprep.subr.mxu0 0.0
    %415 = vmatpush1.xpose.msra.mxu0 0.0
    %416 = vmatprep.subr.mxu0 0.0
    %417 = vmatpush1.xpose.msra.mxu0 0.0
    %418 = vmatprep.subr.mxu0 0.0
    %419 = vmatpush1.xpose.msra.mxu0 0.0
    %420 = vmatprep.subr.mxu0 0.0
    %421 = vmatpush1.xpose.msra.mxu0 0.0
    %422 = vmatprep.subr.mxu0 0.0
    %423 = vmatpush1.xpose.msra.mxu0 0.0
    %424 = vmatprep.subr.mxu0 0.0
    %425 = vmatpush1.xpose.msra.mxu0 0.0
    %426 = vmatprep.subr.mxu0 0.0
    %427 = vmatpush1.xpose.msra.mxu0 0.0
    %428 = vmatprep.subr.mxu0 0.0
    %429 = vmatpush1.xpose.msra.mxu0 0.0
    %430 = vmatprep.subr.mxu0 0.0
    %431 = vmatpush1.xpose.msra.mxu0 0.0
    %432 = vmatprep.subr.mxu0 0.0
    %433 = vmatpush1.xpose.msra.mxu0 0.0
    %434 = vmatprep.subr.mxu0 0.0
    %435 = vmatpush1.xpose.msra.mxu0 0.0
    %436 = vmatprep.subr.mxu0 0.0
    %437 = vmatpush1.xpose.msra.mxu0 0.0
    %438 = vmatprep.subr.mxu0 0.0
    %439 = vmatpush1.xpose.msra.mxu0 0.0
    %440 = vmatprep.subr.mxu0 0.0
    %441 = vmatpush1.xpose.msra.mxu0 0.0
    %442 = vmatprep.subr.mxu0 0.0
    %443 = vmatpush1.xpose.msra.mxu0 0.0
    %444 = vmatprep.subr.mxu0 0.0
    %445 = vmatpush1.xpose.msra.mxu0 0.0
    %446 = vmatprep.subr.mxu0 0.0
    %447 = vmatpush1.xpose.msra.mxu0 0.0
    %448 = vmatprep.subr.mxu0 0.0
    %449 = vmatpush1.xpose.msra.mxu0 0.0
    %450 = vmatprep.subr.mxu0 0.0
    %451 = vmatpush1.xpose.msra.mxu0 0.0
    %452 = vmatprep.subr.mxu0 0.0
    %453 = vmatpush1.xpose.msra.mxu0 0.0
    %454 = vmatprep.subr.mxu0 0.0
    %455 = vmatpush1.xpose.msra.mxu0 0.0
    %456 = vmatprep.subr.mxu0 0.0
    %457 = vmatpush1.xpose.msra.mxu0 0.0
    %458 = vmatprep.subr.mxu0 0.0
    %459 = vmatpush1.xpose.msra.mxu0 0.0
    %460 = vmatprep.mubr.f32.mxu0 0.0
    %461 = vmatmul.mubr.f32.gmra.mrb[0].mxu0 %v392
    %v462 = vpop.f32.mrb[0].mxu0
    %v463 = vadd.f32 %v61, %v462
    %v464 = vpop.f32.mrb[0].mxu0
    %465 = vdwg.mxu0
    %466 = vrot.lane.b32.xlu0 %v228, 96
    %v467 = vpop.permute.xlu0 %466
    %v468 = vsel %vm239, %v228, 0
    %v470 = vsel %vm239, %v467, 0
    %472 = vmatprep.subr.mxu0 0.0
    %473 = vmatpush1.xpose.msra.mxu0 %v470
    %474 = vmatprep.subr.mxu0 0.0
    %475 = vmatpush1.xpose.msra.mxu0 0.0
    %476 = vmatprep.subr.mxu0 0.0
    %477 = vmatpush1.xpose.msra.mxu0 0.0
    %478 = vmatprep.subr.mxu0 0.0
    %479 = vmatpush1.xpose.msra.mxu0 0.0
    %480 = vmatprep.subr.mxu0 0.0
    %481 = vmatpush1.xpose.msra.mxu0 0.0
    %482 = vmatprep.subr.mxu0 0.0
    %483 = vmatpush1.xpose.msra.mxu0 0.0
    %484 = vmatprep.subr.mxu0 0.0
    %485 = vmatpush1.xpose.msra.mxu0 0.0
    %486 = vmatprep.subr.mxu0 0.0
    %487 = vmatpush1.xpose.msra.mxu0 0.0
    %488 = vmatprep.subr.mxu0 0.0
    %489 = vmatpush1.xpose.msra.mxu0 0.0
    %490 = vmatprep.subr.mxu0 0.0
    %491 = vmatpush1.xpose.msra.mxu0 0.0
    %492 = vmatprep.subr.mxu0 0.0
    %493 = vmatpush1.xpose.msra.mxu0 0.0
    %494 = vmatprep.subr.mxu0 0.0
    %495 = vmatpush1.xpose.msra.mxu0 0.0
    %496 = vmatprep.subr.mxu0 0.0
    %497 = vmatpush1.xpose.msra.mxu0 0.0
    %498 = vmatprep.subr.mxu0 0.0
    %499 = vmatpush1.xpose.msra.mxu0 0.0
    %500 = vmatprep.subr.mxu0 0.0
    %501 = vmatpush1.xpose.msra.mxu0 0.0
    %502 = vmatprep.subr.mxu0 0.0
    %503 = vmatpush1.xpose.msra.mxu0 0.0
    %504 = vmatprep.subr.mxu0 0.0
    %505 = vmatpush1.xpose.msra.mxu0 0.0
    %506 = vmatprep.subr.mxu0 0.0
    %507 = vmatpush1.xpose.msra.mxu0 0.0
    %508 = vmatprep.subr.mxu0 0.0
    %509 = vmatpush1.xpose.msra.mxu0 0.0
    %510 = vmatprep.subr.mxu0 0.0
    %511 = vmatpush1.xpose.msra.mxu0 0.0
    %512 = vmatprep.subr.mxu0 0.0
    %513 = vmatpush1.xpose.msra.mxu0 0.0
    %514 = vmatprep.subr.mxu0 0.0
    %515 = vmatpush1.xpose.msra.mxu0 0.0
    %516 = vmatprep.subr.mxu0 0.0
    %517 = vmatpush1.xpose.msra.mxu0 0.0
    %518 = vmatprep.subr.mxu0 0.0
    %519 = vmatpush1.xpose.msra.mxu0 0.0
    %520 = vmatprep.subr.mxu0 0.0
    %521 = vmatpush1.xpose.msra.mxu0 0.0
    %522 = vmatprep.subr.mxu0 0.0
    %523 = vmatpush1.xpose.msra.mxu0 0.0
    %524 = vmatprep.subr.mxu0 0.0
    %525 = vmatpush1.xpose.msra.mxu0 0.0
    %526 = vmatprep.subr.mxu0 0.0
    %527 = vmatpush1.xpose.msra.mxu0 0.0
    %528 = vmatprep.subr.mxu0 0.0
    %529 = vmatpush1.xpose.msra.mxu0 0.0
    %530 = vmatprep.subr.mxu0 0.0
    %531 = vmatpush1.xpose.msra.mxu0 0.0
    %532 = vmatprep.subr.mxu0 0.0
    %533 = vmatpush1.xpose.msra.mxu0 0.0
    %534 = vmatprep.subr.mxu0 0.0
    %535 = vmatpush1.xpose.msra.mxu0 0.0
    %536 = vmatprep.mubr.f32.mxu0 0.0
    %537 = vmatmul.mubr.f32.gmra.mrb[0].mxu0 %v468
    %v538 = vpop.f32.mrb[0].mxu0
    %v539 = vadd.f32 %v62, %v538
    %v540 = vpop.f32.mrb[0].mxu0
    %541 = vdwg.mxu0
    %542 = vrot.lane.b32.xlu0 %v230, 96
    %v543 = vpop.permute.xlu0 %542
    %v544 = vsel %vm239, %v230, 0
    %v546 = vsel %vm239, %v543, 0
    %548 = vmatprep.subr.mxu0 0.0
    %549 = vmatpush1.xpose.msra.mxu0 %v546
    %550 = vmatprep.subr.mxu0 0.0
    %551 = vmatpush1.xpose.msra.mxu0 0.0
    %552 = vmatprep.subr.mxu0 0.0
    %553 = vmatpush1.xpose.msra.mxu0 0.0
    %554 = vmatprep.subr.mxu0 0.0
    %555 = vmatpush1.xpose.msra.mxu0 0.0
    %556 = vmatprep.subr.mxu0 0.0
    %557 = vmatpush1.xpose.msra.mxu0 0.0
    %558 = vmatprep.subr.mxu0 0.0
    %559 = vmatpush1.xpose.msra.mxu0 0.0
    %560 = vmatprep.subr.mxu0 0.0
    %561 = vmatpush1.xpose.msra.mxu0 0.0
    %562 = vmatprep.subr.mxu0 0.0
    %563 = vmatpush1.xpose.msra.mxu0 0.0
    %564 = vmatprep.subr.mxu0 0.0
    %565 = vmatpush1.xpose.msra.mxu0 0.0
    %566 = vmatprep.subr.mxu0 0.0
    %567 = vmatpush1.xpose.msra.mxu0 0.0
    %568 = vmatprep.subr.mxu0 0.0
    %569 = vmatpush1.xpose.msra.mxu0 0.0
    %570 = vmatprep.subr.mxu0 0.0
    %571 = vmatpush1.xpose.msra.mxu0 0.0
    %572 = vmatprep.subr.mxu0 0.0
    %573 = vmatpush1.xpose.msra.mxu0 0.0
    %574 = vmatprep.subr.mxu0 0.0
    %575 = vmatpush1.xpose.msra.mxu0 0.0
    %576 = vmatprep.subr.mxu0 0.0
    %577 = vmatpush1.xpose.msra.mxu0 0.0
    %578 = vmatprep.subr.mxu0 0.0
    %579 = vmatpush1.xpose.msra.mxu0 0.0
    %580 = vmatprep.subr.mxu0 0.0
    %581 = vmatpush1.xpose.msra.mxu0 0.0
    %582 = vmatprep.subr.mxu0 0.0
    %583 = vmatpush1.xpose.msra.mxu0 0.0
    %584 = vmatprep.subr.mxu0 0.0
    %585 = vmatpush1.xpose.msra.mxu0 0.0
    %586 = vmatprep.subr.mxu0 0.0
    %587 = vmatpush1.xpose.msra.mxu0 0.0
    %588 = vmatprep.subr.mxu0 0.0
    %589 = vmatpush1.xpose.msra.mxu0 0.0
    %590 = vmatprep.subr.mxu0 0.0
    %591 = vmatpush1.xpose.msra.mxu0 0.0
    %592 = vmatprep.subr.mxu0 0.0
    %593 = vmatpush1.xpose.msra.mxu0 0.0
    %594 = vmatprep.subr.mxu0 0.0
    %595 = vmatpush1.xpose.msra.mxu0 0.0
    %596 = vmatprep.subr.mxu0 0.0
    %597 = vmatpush1.xpose.msra.mxu0 0.0
    %598 = vmatprep.subr.mxu0 0.0
    %599 = vmatpush1.xpose.msra.mxu0 0.0
    %600 = vmatprep.subr.mxu0 0.0
    %601 = vmatpush1.xpose.msra.mxu0 0.0
    %602 = vmatprep.subr.mxu0 0.0
    %603 = vmatpush1.xpose.msra.mxu0 0.0
    %604 = vmatprep.subr.mxu0 0.0
    %605 = vmatpush1.xpose.msra.mxu0 0.0
    %606 = vmatprep.subr.mxu0 0.0
    %607 = vmatpush1.xpose.msra.mxu0 0.0
    %608 = vmatprep.subr.mxu0 0.0
    %609 = vmatpush1.xpose.msra.mxu0 0.0
    %610 = vmatprep.subr.mxu0 0.0
    %611 = vmatpush1.xpose.msra.mxu0 0.0
    %612 = vmatprep.mubr.f32.mxu0 0.0
    %613 = vmatmul.mubr.f32.gmra.mrb[0].mxu0 %v544
    %v614 = vpop.f32.mrb[0].mxu0
    %v615 = vadd.f32 %v63, %v614
    %v616 = vpop.f32.mrb[0].mxu0
    %617 = vdwg.mxu0
    %618 = vrot.lane.b32.xlu0 %v232, 96
    %v619 = vpop.permute.xlu0 %618
    %v620 = vsel %vm239, %v232, 0
    %v622 = vsel %vm239, %v619, 0
    %624 = vmatprep.subr.mxu0 0.0
    %625 = vmatpush1.xpose.msra.mxu0 %v622
    %626 = vmatprep.subr.mxu0 0.0
    %627 = vmatpush1.xpose.msra.mxu0 0.0
    %628 = vmatprep.subr.mxu0 0.0
    %629 = vmatpush1.xpose.msra.mxu0 0.0
    %630 = vmatprep.subr.mxu0 0.0
    %631 = vmatpush1.xpose.msra.mxu0 0.0
    %632 = vmatprep.subr.mxu0 0.0
    %633 = vmatpush1.xpose.msra.mxu0 0.0
    %634 = vmatprep.subr.mxu0 0.0
    %635 = vmatpush1.xpose.msra.mxu0 0.0
    %636 = vmatprep.subr.mxu0 0.0
    %637 = vmatpush1.xpose.msra.mxu0 0.0
    %638 = vmatprep.subr.mxu0 0.0
    %639 = vmatpush1.xpose.msra.mxu0 0.0
    %640 = vmatprep.subr.mxu0 0.0
    %641 = vmatpush1.xpose.msra.mxu0 0.0
    %642 = vmatprep.subr.mxu0 0.0
    %643 = vmatpush1.xpose.msra.mxu0 0.0
    %644 = vmatprep.subr.mxu0 0.0
    %645 = vmatpush1.xpose.msra.mxu0 0.0
    %646 = vmatprep.subr.mxu0 0.0
    %647 = vmatpush1.xpose.msra.mxu0 0.0
    %648 = vmatprep.subr.mxu0 0.0
    %649 = vmatpush1.xpose.msra.mxu0 0.0
    %650 = vmatprep.subr.mxu0 0.0
    %651 = vmatpush1.xpose.msra.mxu0 0.0
    %652 = vmatprep.subr.mxu0 0.0
    %653 = vmatpush1.xpose.msra.mxu0 0.0
    %654 = vmatprep.subr.mxu0 0.0
    %655 = vmatpush1.xpose.msra.mxu0 0.0
    %656 = vmatprep.subr.mxu0 0.0
    %657 = vmatpush1.xpose.msra.mxu0 0.0
    %658 = vmatprep.subr.mxu0 0.0
    %659 = vmatpush1.xpose.msra.mxu0 0.0
    %660 = vmatprep.subr.mxu0 0.0
    %661 = vmatpush1.xpose.msra.mxu0 0.0
    %662 = vmatprep.subr.mxu0 0.0
    %663 = vmatpush1.xpose.msra.mxu0 0.0
    %664 = vmatprep.subr.mxu0 0.0
    %665 = vmatpush1.xpose.msra.mxu0 0.0
    %666 = vmatprep.subr.mxu0 0.0
    %667 = vmatpush1.xpose.msra.mxu0 0.0
    %668 = vmatprep.subr.mxu0 0.0
    %669 = vmatpush1.xpose.msra.mxu0 0.0
    %670 = vmatprep.subr.mxu0 0.0
    %671 = vmatpush1.xpose.msra.mxu0 0.0
    %672 = vmatprep.subr.mxu0 0.0
    %673 = vmatpush1.xpose.msra.mxu0 0.0
    %674 = vmatprep.subr.mxu0 0.0
    %675 = vmatpush1.xpose.msra.mxu0 0.0
    %676 = vmatprep.subr.mxu0 0.0
    %677 = vmatpush1.xpose.msra.mxu0 0.0
    %678 = vmatprep.subr.mxu0 0.0
    %679 = vmatpush1.xpose.msra.mxu0 0.0
    %680 = vmatprep.subr.mxu0 0.0
    %681 = vmatpush1.xpose.msra.mxu0 0.0
    %682 = vmatprep.subr.mxu0 0.0
    %683 = vmatpush1.xpose.msra.mxu0 0.0
    %684 = vmatprep.subr.mxu0 0.0
    %685 = vmatpush1.xpose.msra.mxu0 0.0
    %686 = vmatprep.subr.mxu0 0.0
    %687 = vmatpush1.xpose.msra.mxu0 0.0
    %688 = vmatprep.mubr.f32.mxu0 0.0
    %689 = vmatmul.mubr.f32.gmra.mrb[0].mxu0 %v620
    %v690 = vpop.f32.mrb[0].mxu0
    %v691 = vadd.f32 %v64, %v690
    %v692 = vpop.f32.mrb[0].mxu0
    %693 = vdwg.mxu0
    %694 = vrot.lane.b32.xlu0 %v234, 96
    %v695 = vpop.permute.xlu0 %694
    %v696 = vsel %vm239, %v234, 0
    %v698 = vsel %vm239, %v695, 0
    %700 = vmatprep.subr.mxu0 0.0
    %701 = vmatpush1.xpose.msra.mxu0 %v698
    %702 = vmatprep.subr.mxu0 0.0
    %703 = vmatpush1.xpose.msra.mxu0 0.0
    %704 = vmatprep.subr.mxu0 0.0
    %705 = vmatpush1.xpose.msra.mxu0 0.0
    %706 = vmatprep.subr.mxu0 0.0
    %707 = vmatpush1.xpose.msra.mxu0 0.0
    %708 = vmatprep.subr.mxu0 0.0
    %709 = vmatpush1.xpose.msra.mxu0 0.0
    %710 = vmatprep.subr.mxu0 0.0
    %711 = vmatpush1.xpose.msra.mxu0 0.0
    %712 = vmatprep.subr.mxu0 0.0
    %713 = vmatpush1.xpose.msra.mxu0 0.0
    %714 = vmatprep.subr.mxu0 0.0
    %715 = vmatpush1.xpose.msra.mxu0 0.0
    %716 = vmatprep.subr.mxu0 0.0
    %717 = vmatpush1.xpose.msra.mxu0 0.0
    %718 = vmatprep.subr.mxu0 0.0
    %719 = vmatpush1.xpose.msra.mxu0 0.0
    %720 = vmatprep.subr.mxu0 0.0
    %721 = vmatpush1.xpose.msra.mxu0 0.0
    %722 = vmatprep.subr.mxu0 0.0
    %723 = vmatpush1.xpose.msra.mxu0 0.0
    %724 = vmatprep.subr.mxu0 0.0
    %725 = vmatpush1.xpose.msra.mxu0 0.0
    %726 = vmatprep.subr.mxu0 0.0
    %727 = vmatpush1.xpose.msra.mxu0 0.0
    %728 = vmatprep.subr.mxu0 0.0
    %729 = vmatpush1.xpose.msra.mxu0 0.0
    %730 = vmatprep.subr.mxu0 0.0
    %731 = vmatpush1.xpose.msra.mxu0 0.0
    %732 = vmatprep.subr.mxu0 0.0
    %733 = vmatpush1.xpose.msra.mxu0 0.0
    %734 = vmatprep.subr.mxu0 0.0
    %735 = vmatpush1.xpose.msra.mxu0 0.0
    %736 = vmatprep.subr.mxu0 0.0
    %737 = vmatpush1.xpose.msra.mxu0 0.0
    %738 = vmatprep.subr.mxu0 0.0
    %739 = vmatpush1.xpose.msra.mxu0 0.0
    %740 = vmatprep.subr.mxu0 0.0
    %741 = vmatpush1.xpose.msra.mxu0 0.0
    %742 = vmatprep.subr.mxu0 0.0
    %743 = vmatpush1.xpose.msra.mxu0 0.0
    %744 = vmatprep.subr.mxu0 0.0
    %745 = vmatpush1.xpose.msra.mxu0 0.0
    %746 = vmatprep.subr.mxu0 0.0
    %747 = vmatpush1.xpose.msra.mxu0 0.0
    %748 = vmatprep.subr.mxu0 0.0
    %749 = vmatpush1.xpose.msra.mxu0 0.0
    %750 = vmatprep.subr.mxu0 0.0
    %751 = vmatpush1.xpose.msra.mxu0 0.0
    %752 = vmatprep.subr.mxu0 0.0
    %753 = vmatpush1.xpose.msra.mxu0 0.0
    %754 = vmatprep.subr.mxu0 0.0
    %755 = vmatpush1.xpose.msra.mxu0 0.0
    %756 = vmatprep.subr.mxu0 0.0
    %757 = vmatpush1.xpose.msra.mxu0 0.0
    %758 = vmatprep.subr.mxu0 0.0
    %759 = vmatpush1.xpose.msra.mxu0 0.0
    %760 = vmatprep.subr.mxu0 0.0
    %761 = vmatpush1.xpose.msra.mxu0 0.0
    %762 = vmatprep.subr.mxu0 0.0
    %763 = vmatpush1.xpose.msra.mxu0 0.0
    %764 = vmatprep.mubr.f32.mxu0 0.0
    %765 = vmatmul.mubr.f32.gmra.mrb[0].mxu0 %v696
    %v766 = vpop.f32.mrb[0].mxu0
    %v767 = vadd.f32 %v65, %v766
    %v768 = vpop.f32.mrb[0].mxu0
    %769 = vdwg.mxu0
    %770 = vrot.lane.b32.xlu0 %v236, 96
    %v771 = vpop.permute.xlu0 %770
    %v772 = vsel %vm239, %v236, 0
    %v774 = vsel %vm239, %v771, 0
    %776 = vmatprep.subr.mxu0 0.0
    %777 = vmatpush1.xpose.msra.mxu0 %v774
    %778 = vmatprep.subr.mxu0 0.0
    %779 = vmatpush1.xpose.msra.mxu0 0.0
    %780 = vmatprep.subr.mxu0 0.0
    %781 = vmatpush1.xpose.msra.mxu0 0.0
    %782 = vmatprep.subr.mxu0 0.0
    %783 = vmatpush1.xpose.msra.mxu0 0.0
    %784 = vmatprep.subr.mxu0 0.0
    %785 = vmatpush1.xpose.msra.mxu0 0.0
    %786 = vmatprep.subr.mxu0 0.0
    %787 = vmatpush1.xpose.msra.mxu0 0.0
    %788 = vmatprep.subr.mxu0 0.0
    %789 = vmatpush1.xpose.msra.mxu0 0.0
    %790 = vmatprep.subr.mxu0 0.0
    %791 = vmatpush1.xpose.msra.mxu0 0.0
    %792 = vmatprep.subr.mxu0 0.0
    %793 = vmatpush1.xpose.msra.mxu0 0.0
    %794 = vmatprep.subr.mxu0 0.0
    %795 = vmatpush1.xpose.msra.mxu0 0.0
    %796 = vmatprep.subr.mxu0 0.0
    %797 = vmatpush1.xpose.msra.mxu0 0.0
    %798 = vmatprep.subr.mxu0 0.0
    %799 = vmatpush1.xpose.msra.mxu0 0.0
    %800 = vmatprep.subr.mxu0 0.0
    %801 = vmatpush1.xpose.msra.mxu0 0.0
    %802 = vmatprep.subr.mxu0 0.0
    %803 = vmatpush1.xpose.msra.mxu0 0.0
    %804 = vmatprep.subr.mxu0 0.0
    %805 = vmatpush1.xpose.msra.mxu0 0.0
    %806 = vmatprep.subr.mxu0 0.0
    %807 = vmatpush1.xpose.msra.mxu0 0.0
    %808 = vmatprep.subr.mxu0 0.0
    %809 = vmatpush1.xpose.msra.mxu0 0.0
    %810 = vmatprep.subr.mxu0 0.0
    %811 = vmatpush1.xpose.msra.mxu0 0.0
    %812 = vmatprep.subr.mxu0 0.0
    %813 = vmatpush1.xpose.msra.mxu0 0.0
    %814 = vmatprep.subr.mxu0 0.0
    %815 = vmatpush1.xpose.msra.mxu0 0.0
    %816 = vmatprep.subr.mxu0 0.0
    %817 = vmatpush1.xpose.msra.mxu0 0.0
    %818 = vmatprep.subr.mxu0 0.0
    %819 = vmatpush1.xpose.msra.mxu0 0.0
    %820 = vmatprep.subr.mxu0 0.0
    %821 = vmatpush1.xpose.msra.mxu0 0.0
    %822 = vmatprep.subr.mxu0 0.0
    %823 = vmatpush1.xpose.msra.mxu0 0.0
    %824 = vmatprep.subr.mxu0 0.0
    %825 = vmatpush1.xpose.msra.mxu0 0.0
    %826 = vmatprep.subr.mxu0 0.0
    %827 = vmatpush1.xpose.msra.mxu0 0.0
    %828 = vmatprep.subr.mxu0 0.0
    %829 = vmatpush1.xpose.msra.mxu0 0.0
    %830 = vmatprep.subr.mxu0 0.0
    %831 = vmatpush1.xpose.msra.mxu0 0.0
    %832 = vmatprep.subr.mxu0 0.0
    %833 = vmatpush1.xpose.msra.mxu0 0.0
    %834 = vmatprep.subr.mxu0 0.0
    %835 = vmatpush1.xpose.msra.mxu0 0.0
    %836 = vmatprep.subr.mxu0 0.0
    %837 = vmatpush1.xpose.msra.mxu0 0.0
    %838 = vmatprep.subr.mxu0 0.0
    %839 = vmatpush1.xpose.msra.mxu0 0.0
    %840 = vmatprep.mubr.f32.mxu0 0.0
    %841 = vmatmul.mubr.f32.gmra.mrb[0].mxu0 %v772
    %v842 = vpop.f32.mrb[0].mxu0
    %v843 = vadd.f32 %v66, %v842
    %v844 = vpop.f32.mrb[0].mxu0
    %845 = vdwg.mxu0
    %v846 = vsel %vm239, %v311, -inf
    %847 = vmax.xlane.f32.xlu0 %v846
    %v848 = vpop.xlane.xlu0 %847
    %v849 = vsel %vm239, %v387, -inf
    %850 = vmax.xlane.f32.xlu0 %v849
    %v851 = vpop.xlane.xlu0 %850
    %v852 = vsel %vm239, %v463, -inf
    %853 = vmax.xlane.f32.xlu0 %v852
    %v854 = vpop.xlane.xlu0 %853
    %v855 = vsel %vm239, %v539, -inf
    %856 = vmax.xlane.f32.xlu0 %v855
    %v857 = vpop.xlane.xlu0 %856
    %v858 = vsel %vm239, %v615, -inf
    %859 = vmax.xlane.f32.xlu0 %v858
    %v860 = vpop.xlane.xlu0 %859
    %v861 = vsel %vm239, %v691, -inf
    %862 = vmax.xlane.f32.xlu0 %v861
    %v863 = vpop.xlane.xlu0 %862
    %v864 = vsel %vm239, %v767, -inf
    %865 = vmax.xlane.f32.xlu0 %v864
    %v866 = vpop.xlane.xlu0 %865
    %v867 = vsel %vm239, %v843, -inf
    %868 = vmax.xlane.f32.xlu0 %v867
    %v869 = vpop.xlane.xlu0 %868
    %v870 = vsub.f32 %v311, %v848
    %v871 = vsub.f32 %v387, %v851
    %v872 = vsub.f32 %v463, %v854
    %v873 = vsub.f32 %v539, %v857
    %v874 = vsub.f32 %v615, %v860
    %v875 = vsub.f32 %v691, %v863
    %v876 = vsub.f32 %v767, %v866
    %v877 = vsub.f32 %v843, %v869
    %v878 = vmul.f32 %v870, 1.442695
    %v879 = vpow.pop %v878
    %v880 = vmul.f32 %v871, 1.442695
    %v881 = vpow.pop %v880
    %v882 = vmul.f32 %v872, 1.442695
    %v883 = vpow.pop %v882
    %v884 = vmul.f32 %v873, 1.442695
    %v885 = vpow.pop %v884
    %v886 = vmul.f32 %v874, 1.442695
    %v887 = vpow.pop %v886
    %v888 = vmul.f32 %v875, 1.442695
    %v889 = vpow.pop %v888
    %v890 = vmul.f32 %v876, 1.442695
    %v891 = vpow.pop %v890
    %v892 = vmul.f32 %v877, 1.442695
    %v893 = vpow.pop %v892
    %v894 = vsel %vm239, %v879, 0.0
    %895 = vadd.xlane.f32.xlu0 %v894
    %v896 = vpop.xlane.xlu0 %895
    %v897 = vsel %vm239, %v881, 0.0
    %898 = vadd.xlane.f32.xlu0 %v897
    %v899 = vpop.xlane.xlu0 %898
    %v900 = vsel %vm239, %v883, 0.0
    %901 = vadd.xlane.f32.xlu0 %v900
    %v902 = vpop.xlane.xlu0 %901
    %v903 = vsel %vm239, %v885, 0.0
    %904 = vadd.xlane.f32.xlu0 %v903
    %v905 = vpop.xlane.xlu0 %904
    %v906 = vsel %vm239, %v887, 0.0
    %907 = vadd.xlane.f32.xlu0 %v906
    %v908 = vpop.xlane.xlu0 %907
    %v909 = vsel %vm239, %v889, 0.0
    %910 = vadd.xlane.f32.xlu0 %v909
    %v911 = vpop.xlane.xlu0 %910
    %v912 = vsel %vm239, %v891, 0.0
    %913 = vadd.xlane.f32.xlu0 %v912
    %v914 = vpop.xlane.xlu0 %913
    %v915 = vsel %vm239, %v893, 0.0
    %916 = vadd.xlane.f32.xlu0 %v915
    %v917 = vpop.xlane.xlu0 %916
    %v918 = vrcp.pop %v896
    %v919 = vrcp.pop %v899
    %v920 = vrcp.pop %v902
    %v921 = vrcp.pop %v905
    %v922 = vrcp.pop %v908
    %v923 = vrcp.pop %v911
    %v924 = vrcp.pop %v914
    %v925 = vrcp.pop %v917
    %v926 = vmul.f32 %v879, %v918
    %v927 = vmul.f32 %v881, %v919
    %v928 = vmul.f32 %v883, %v920
    %v929 = vmul.f32 %v885, %v921
    %v930 = vmul.f32 %v887, %v922
    %v931 = vmul.f32 %v889, %v923
    %v932 = vmul.f32 %v891, %v924
    %v933 = vmul.f32 %v893, %v925
    %934 = vrot.lane.b32.xlu0 %v215, 64
    %v935 = vpop.permute.xlu0 %934
    %v938 = vsel %vm239, %v926, 0
    %940 = vmatprep.subr.mxu0 0.0
    %941 = vmatpush1.msra.mxu0 %v935
    %942 = vmatprep.subr.mxu0 0.0
    %943 = vmatpush1.msra.mxu0 0.0
    %944 = vmatprep.subr.mxu0 0.0
    %945 = vmatpush1.msra.mxu0 0.0
    %946 = vmatprep.subr.mxu0 0.0
    %947 = vmatpush1.msra.mxu0 0.0
    %948 = vmatprep.subr.mxu0 0.0
    %949 = vmatpush1.msra.mxu0 0.0
    %950 = vmatprep.subr.mxu0 0.0
    %951 = vmatpush1.msra.mxu0 0.0
    %952 = vmatprep.subr.mxu0 0.0
    %953 = vmatpush1.msra.mxu0 0.0
    %954 = vmatprep.subr.mxu0 0.0
    %955 = vmatpush1.msra.mxu0 0.0
    %956 = vmatprep.subr.mxu0 0.0
    %957 = vmatpush1.msra.mxu0 0.0
    %958 = vmatprep.subr.mxu0 0.0
    %959 = vmatpush1.msra.mxu0 0.0
    %960 = vmatprep.subr.mxu0 0.0
    %961 = vmatpush1.msra.mxu0 0.0
    %962 = vmatprep.subr.mxu0 0.0
    %963 = vmatpush1.msra.mxu0 0.0
    %964 = vmatprep.subr.mxu0 0.0
    %965 = vmatpush1.msra.mxu0 0.0
    %966 = vmatprep.subr.mxu0 0.0
    %967 = vmatpush1.msra.mxu0 0.0
    %968 = vmatprep.subr.mxu0 0.0
    %969 = vmatpush1.msra.mxu0 0.0
    %970 = vmatprep.subr.mxu0 0.0
    %971 = vmatpush1.msra.mxu0 0.0
    %972 = vmatprep.subr.mxu0 0.0
    %973 = vmatpush1.msra.mxu0 0.0
    %974 = vmatprep.subr.mxu0 0.0
    %975 = vmatpush1.msra.mxu0 0.0
    %976 = vmatprep.subr.mxu0 0.0
    %977 = vmatpush1.msra.mxu0 0.0
    %978 = vmatprep.subr.mxu0 0.0
    %979 = vmatpush1.msra.mxu0 0.0
    %980 = vmatprep.subr.mxu0 0.0
    %981 = vmatpush1.msra.mxu0 0.0
    %982 = vmatprep.subr.mxu0 0.0
    %983 = vmatpush1.msra.mxu0 0.0
    %984 = vmatprep.subr.mxu0 0.0
    %985 = vmatpush1.msra.mxu0 0.0
    %986 = vmatprep.subr.mxu0 0.0
    %987 = vmatpush1.msra.mxu0 0.0
    %988 = vmatprep.subr.mxu0 0.0
    %989 = vmatpush1.msra.mxu0 0.0
    %990 = vmatprep.subr.mxu0 0.0
    %991 = vmatpush1.msra.mxu0 0.0
    %992 = vmatprep.subr.mxu0 0.0
    %993 = vmatpush1.msra.mxu0 0.0
    %994 = vmatprep.subr.mxu0 0.0
    %995 = vmatpush1.msra.mxu0 0.0
    %996 = vmatprep.subr.mxu0 0.0
    %997 = vmatpush1.msra.mxu0 0.0
    %998 = vmatprep.subr.mxu0 0.0
    %999 = vmatpush1.msra.mxu0 0.0
    %1000 = vmatprep.subr.mxu0 0.0
    %1001 = vmatpush1.msra.mxu0 0.0
    %1002 = vmatprep.subr.mxu0 0.0
    %1003 = vmatpush1.msra.mxu0 0.0
    %1004 = vmatprep.mubr.f32.mxu0 0.0
    %1005 = vmatmul.mubr.f32.gmra.mrb[0].mxu0 %v938
    %v1006 = vpop.f32.mrb[0].mxu0
    %v1007 = vadd.f32 0.0, %v1006
    %v1008 = vpop.f32.mrb[0].mxu0
    %1009 = vdwg.mxu0
    %1010 = vrot.lane.b32.xlu0 %v220, 64
    %v1011 = vpop.permute.xlu0 %1010
    %v1014 = vsel %vm239, %v927, 0
    %1016 = vmatprep.subr.mxu0 0.0
    %1017 = vmatpush1.msra.mxu0 %v1011
    %1018 = vmatprep.subr.mxu0 0.0
    %1019 = vmatpush1.msra.mxu0 0.0
    %1020 = vmatprep.subr.mxu0 0.0
    %1021 = vmatpush1.msra.mxu0 0.0
    %1022 = vmatprep.subr.mxu0 0.0
    %1023 = vmatpush1.msra.mxu0 0.0
    %1024 = vmatprep.subr.mxu0 0.0
    %1025 = vmatpush1.msra.mxu0 0.0
    %1026 = vmatprep.subr.mxu0 0.0
    %1027 = vmatpush1.msra.mxu0 0.0
    %1028 = vmatprep.subr.mxu0 0.0
    %1029 = vmatpush1.msra.mxu0 0.0
    %1030 = vmatprep.subr.mxu0 0.0
    %1031 = vmatpush1.msra.mxu0 0.0
    %1032 = vmatprep.subr.mxu0 0.0
    %1033 = vmatpush1.msra.mxu0 0.0
    %1034 = vmatprep.subr.mxu0 0.0
    %1035 = vmatpush1.msra.mxu0 0.0
    %1036 = vmatprep.subr.mxu0 0.0
    %1037 = vmatpush1.msra.mxu0 0.0
    %1038 = vmatprep.subr.mxu0 0.0
    %1039 = vmatpush1.msra.mxu0 0.0
    %1040 = vmatprep.subr.mxu0 0.0
    %1041 = vmatpush1.msra.mxu0 0.0
    %1042 = vmatprep.subr.mxu0 0.0
    %1043 = vmatpush1.msra.mxu0 0.0
    %1044 = vmatprep.subr.mxu0 0.0
    %1045 = vmatpush1.msra.mxu0 0.0
    %1046 = vmatprep.subr.mxu0 0.0
    %1047 = vmatpush1.msra.mxu0 0.0
    %1048 = vmatprep.subr.mxu0 0.0
    %1049 = vmatpush1.msra.mxu0 0.0
    %1050 = vmatprep.subr.mxu0 0.0
    %1051 = vmatpush1.msra.mxu0 0.0
    %1052 = vmatprep.subr.mxu0 0.0
    %1053 = vmatpush1.msra.mxu0 0.0
    %1054 = vmatprep.subr.mxu0 0.0
    %1055 = vmatpush1.msra.mxu0 0.0
    %1056 = vmatprep.subr.mxu0 0.0
    %1057 = vmatpush1.msra.mxu0 0.0
    %1058 = vmatprep.subr.mxu0 0.0
    %1059 = vmatpush1.msra.mxu0 0.0
    %1060 = vmatprep.subr.mxu0 0.0
    %1061 = vmatpush1.msra.mxu0 0.0
    %1062 = vmatprep.subr.mxu0 0.0
    %1063 = vmatpush1.msra.mxu0 0.0
    %1064 = vmatprep.subr.mxu0 0.0
    %1065 = vmatpush1.msra.mxu0 0.0
    %1066 = vmatprep.subr.mxu0 0.0
    %1067 = vmatpush1.msra.mxu0 0.0
    %1068 = vmatprep.subr.mxu0 0.0
    %1069 = vmatpush1.msra.mxu0 0.0
    %1070 = vmatprep.subr.mxu0 0.0
    %1071 = vmatpush1.msra.mxu0 0.0
    %1072 = vmatprep.subr.mxu0 0.0
    %1073 = vmatpush1.msra.mxu0 0.0
    %1074 = vmatprep.subr.mxu0 0.0
    %1075 = vmatpush1.msra.mxu0 0.0
    %1076 = vmatprep.subr.mxu0 0.0
    %1077 = vmatpush1.msra.mxu0 0.0
    %1078 = vmatprep.subr.mxu0 0.0
    %1079 = vmatpush1.msra.mxu0 0.0
    %1080 = vmatprep.mubr.f32.mxu0 0.0
    %1081 = vmatmul.mubr.f32.gmra.mrb[0].mxu0 %v1014
    %v1082 = vpop.f32.mrb[0].mxu0
    %v1083 = vadd.f32 0.0, %v1082
    %v1084 = vpop.f32.mrb[0].mxu0
    %1085 = vdwg.mxu0
    %1086 = vrot.lane.b32.xlu0 %v226, 64
    %v1087 = vpop.permute.xlu0 %1086
    %v1090 = vsel %vm239, %v928, 0
    %1092 = vmatprep.subr.mxu0 0.0
    %1093 = vmatpush1.msra.mxu0 %v1087
    %1094 = vmatprep.subr.mxu0 0.0
    %1095 = vmatpush1.msra.mxu0 0.0
    %1096 = vmatprep.subr.mxu0 0.0
    %1097 = vmatpush1.msra.mxu0 0.0
    %1098 = vmatprep.subr.mxu0 0.0
    %1099 = vmatpush1.msra.mxu0 0.0
    %1100 = vmatprep.subr.mxu0 0.0
    %1101 = vmatpush1.msra.mxu0 0.0
    %1102 = vmatprep.subr.mxu0 0.0
    %1103 = vmatpush1.msra.mxu0 0.0
    %1104 = vmatprep.subr.mxu0 0.0
    %1105 = vmatpush1.msra.mxu0 0.0
    %1106 = vmatprep.subr.mxu0 0.0
    %1107 = vmatpush1.msra.mxu0 0.0
    %1108 = vmatprep.subr.mxu0 0.0
    %1109 = vmatpush1.msra.mxu0 0.0
    %1110 = vmatprep.subr.mxu0 0.0
    %1111 = vmatpush1.msra.mxu0 0.0
    %1112 = vmatprep.subr.mxu0 0.0
    %1113 = vmatpush1.msra.mxu0 0.0
    %1114 = vmatprep.subr.mxu0 0.0
    %1115 = vmatpush1.msra.mxu0 0.0
    %1116 = vmatprep.subr.mxu0 0.0
    %1117 = vmatpush1.msra.mxu0 0.0
    %1118 = vmatprep.subr.mxu0 0.0
    %1119 = vmatpush1.msra.mxu0 0.0
    %1120 = vmatprep.subr.mxu0 0.0
    %1121 = vmatpush1.msra.mxu0 0.0
    %1122 = vmatprep.subr.mxu0 0.0
    %1123 = vmatpush1.msra.mxu0 0.0
    %1124 = vmatprep.subr.mxu0 0.0
    %1125 = vmatpush1.msra.mxu0 0.0
    %1126 = vmatprep.subr.mxu0 0.0
    %1127 = vmatpush1.msra.mxu0 0.0
    %1128 = vmatprep.subr.mxu0 0.0
    %1129 = vmatpush1.msra.mxu0 0.0
    %1130 = vmatprep.subr.mxu0 0.0
    %1131 = vmatpush1.msra.mxu0 0.0
    %1132 = vmatprep.subr.mxu0 0.0
    %1133 = vmatpush1.msra.mxu0 0.0
    %1134 = vmatprep.subr.mxu0 0.0
    %1135 = vmatpush1.msra.mxu0 0.0
    %1136 = vmatprep.subr.mxu0 0.0
    %1137 = vmatpush1.msra.mxu0 0.0
    %1138 = vmatprep.subr.mxu0 0.0
    %1139 = vmatpush1.msra.mxu0 0.0
    %1140 = vmatprep.subr.mxu0 0.0
    %1141 = vmatpush1.msra.mxu0 0.0
    %1142 = vmatprep.subr.mxu0 0.0
    %1143 = vmatpush1.msra.mxu0 0.0
    %1144 = vmatprep.subr.mxu0 0.0
    %1145 = vmatpush1.msra.mxu0 0.0
    %1146 = vmatprep.subr.mxu0 0.0
    %1147 = vmatpush1.msra.mxu0 0.0
    %1148 = vmatprep.subr.mxu0 0.0
    %1149 = vmatpush1.msra.mxu0 0.0
    %1150 = vmatprep.subr.mxu0 0.0
    %1151 = vmatpush1.msra.mxu0 0.0
    %1152 = vmatprep.subr.mxu0 0.0
    %1153 = vmatpush1.msra.mxu0 0.0
    %1154 = vmatprep.subr.mxu0 0.0
    %1155 = vmatpush1.msra.mxu0 0.0
    %1156 = vmatprep.mubr.f32.mxu0 0.0
    %1157 = vmatmul.mubr.f32.gmra.mrb[0].mxu0 %v1090
    %v1158 = vpop.f32.mrb[0].mxu0
    %v1159 = vadd.f32 0.0, %v1158
    %v1160 = vpop.f32.mrb[0].mxu0
    %1161 = vdwg.mxu0
    %1162 = vrot.lane.b32.xlu0 %v228, 64
    %v1163 = vpop.permute.xlu0 %1162
    %v1166 = vsel %vm239, %v929, 0
    %1168 = vmatprep.subr.mxu0 0.0
    %1169 = vmatpush1.msra.mxu0 %v1163
    %1170 = vmatprep.subr.mxu0 0.0
    %1171 = vmatpush1.msra.mxu0 0.0
    %1172 = vmatprep.subr.mxu0 0.0
    %1173 = vmatpush1.msra.mxu0 0.0
    %1174 = vmatprep.subr.mxu0 0.0
    %1175 = vmatpush1.msra.mxu0 0.0
    %1176 = vmatprep.subr.mxu0 0.0
    %1177 = vmatpush1.msra.mxu0 0.0
    %1178 = vmatprep.subr.mxu0 0.0
    %1179 = vmatpush1.msra.mxu0 0.0
    %1180 = vmatprep.subr.mxu0 0.0
    %1181 = vmatpush1.msra.mxu0 0.0
    %1182 = vmatprep.subr.mxu0 0.0
    %1183 = vmatpush1.msra.mxu0 0.0
    %1184 = vmatprep.subr.mxu0 0.0
    %1185 = vmatpush1.msra.mxu0 0.0
    %1186 = vmatprep.subr.mxu0 0.0
    %1187 = vmatpush1.msra.mxu0 0.0
    %1188 = vmatprep.subr.mxu0 0.0
    %1189 = vmatpush1.msra.mxu0 0.0
    %1190 = vmatprep.subr.mxu0 0.0
    %1191 = vmatpush1.msra.mxu0 0.0
    %1192 = vmatprep.subr.mxu0 0.0
    %1193 = vmatpush1.msra.mxu0 0.0
    %1194 = vmatprep.subr.mxu0 0.0
    %1195 = vmatpush1.msra.mxu0 0.0
    %1196 = vmatprep.subr.mxu0 0.0
    %1197 = vmatpush1.msra.mxu0 0.0
    %1198 = vmatprep.subr.mxu0 0.0
    %1199 = vmatpush1.msra.mxu0 0.0
    %1200 = vmatprep.subr.mxu0 0.0
    %1201 = vmatpush1.msra.mxu0 0.0
    %1202 = vmatprep.subr.mxu0 0.0
    %1203 = vmatpush1.msra.mxu0 0.0
    %1204 = vmatprep.subr.mxu0 0.0
    %1205 = vmatpush1.msra.mxu0 0.0
    %1206 = vmatprep.subr.mxu0 0.0
    %1207 = vmatpush1.msra.mxu0 0.0
    %1208 = vmatprep.subr.mxu0 0.0
    %1209 = vmatpush1.msra.mxu0 0.0
    %1210 = vmatprep.subr.mxu0 0.0
    %1211 = vmatpush1.msra.mxu0 0.0
    %1212 = vmatprep.subr.mxu0 0.0
    %1213 = vmatpush1.msra.mxu0 0.0
    %1214 = vmatprep.subr.mxu0 0.0
    %1215 = vmatpush1.msra.mxu0 0.0
    %1216 = vmatprep.subr.mxu0 0.0
    %1217 = vmatpush1.msra.mxu0 0.0
    %1218 = vmatprep.subr.mxu0 0.0
    %1219 = vmatpush1.msra.mxu0 0.0
    %1220 = vmatprep.subr.mxu0 0.0
    %1221 = vmatpush1.msra.mxu0 0.0
    %1222 = vmatprep.subr.mxu0 0.0
    %1223 = vmatpush1.msra.mxu0 0.0
    %1224 = vmatprep.subr.mxu0 0.0
    %1225 = vmatpush1.msra.mxu0 0.0
    %1226 = vmatprep.subr.mxu0 0.0
    %1227 = vmatpush1.msra.mxu0 0.0
    %1228 = vmatprep.subr.mxu0 0.0
    %1229 = vmatpush1.msra.mxu0 0.0
    %1230 = vmatprep.subr.mxu0 0.0
    %1231 = vmatpush1.msra.mxu0 0.0
    %1232 = vmatprep.mubr.f32.mxu0 0.0
    %1233 = vmatmul.mubr.f32.gmra.mrb[0].mxu0 %v1166
    %v1234 = vpop.f32.mrb[0].mxu0
    %v1235 = vadd.f32 0.0, %v1234
    %v1236 = vpop.f32.mrb[0].mxu0
    %1237 = vdwg.mxu0
    %1238 = vrot.lane.b32.xlu0 %v230, 64
    %v1239 = vpop.permute.xlu0 %1238
    %v1242 = vsel %vm239, %v930, 0
    %1244 = vmatprep.subr.mxu0 0.0
    %1245 = vmatpush1.msra.mxu0 %v1239
    %1246 = vmatprep.subr.mxu0 0.0
    %1247 = vmatpush1.msra.mxu0 0.0
    %1248 = vmatprep.subr.mxu0 0.0
    %1249 = vmatpush1.msra.mxu0 0.0
    %1250 = vmatprep.subr.mxu0 0.0
    %1251 = vmatpush1.msra.mxu0 0.0
    %1252 = vmatprep.subr.mxu0 0.0
    %1253 = vmatpush1.msra.mxu0 0.0
    %1254 = vmatprep.subr.mxu0 0.0
    %1255 = vmatpush1.msra.mxu0 0.0
    %1256 = vmatprep.subr.mxu0 0.0
    %1257 = vmatpush1.msra.mxu0 0.0
    %1258 = vmatprep.subr.mxu0 0.0
    %1259 = vmatpush1.msra.mxu0 0.0
    %1260 = vmatprep.subr.mxu0 0.0
    %1261 = vmatpush1.msra.mxu0 0.0
    %1262 = vmatprep.subr.mxu0 0.0
    %1263 = vmatpush1.msra.mxu0 0.0
    %1264 = vmatprep.subr.mxu0 0.0
    %1265 = vmatpush1.msra.mxu0 0.0
    %1266 = vmatprep.subr.mxu0 0.0
    %1267 = vmatpush1.msra.mxu0 0.0
    %1268 = vmatprep.subr.mxu0 0.0
    %1269 = vmatpush1.msra.mxu0 0.0
    %1270 = vmatprep.subr.mxu0 0.0
    %1271 = vmatpush1.msra.mxu0 0.0
    %1272 = vmatprep.subr.mxu0 0.0
    %1273 = vmatpush1.msra.mxu0 0.0
    %1274 = vmatprep.subr.mxu0 0.0
    %1275 = vmatpush1.msra.mxu0 0.0
    %1276 = vmatprep.subr.mxu0 0.0
    %1277 = vmatpush1.msra.mxu0 0.0
    %1278 = vmatprep.subr.mxu0 0.0
    %1279 = vmatpush1.msra.mxu0 0.0
    %1280 = vmatprep.subr.mxu0 0.0
    %1281 = vmatpush1.msra.mxu0 0.0
    %1282 = vmatprep.subr.mxu0 0.0
    %1283 = vmatpush1.msra.mxu0 0.0
    %1284 = vmatprep.subr.mxu0 0.0
    %1285 = vmatpush1.msra.mxu0 0.0
    %1286 = vmatprep.subr.mxu0 0.0
    %1287 = vmatpush1.msra.mxu0 0.0
    %1288 = vmatprep.subr.mxu0 0.0
    %1289 = vmatpush1.msra.mxu0 0.0
    %1290 = vmatprep.subr.mxu0 0.0
    %1291 = vmatpush1.msra.mxu0 0.0
    %1292 = vmatprep.subr.mxu0 0.0
    %1293 = vmatpush1.msra.mxu0 0.0
    %1294 = vmatprep.subr.mxu0 0.0
    %1295 = vmatpush1.msra.mxu0 0.0
    %1296 = vmatprep.subr.mxu0 0.0
    %1297 = vmatpush1.msra.mxu0 0.0
    %1298 = vmatprep.subr.mxu0 0.0
    %1299 = vmatpush1.msra.mxu0 0.0
    %1300 = vmatprep.subr.mxu0 0.0
    %1301 = vmatpush1.msra.mxu0 0.0
    %1302 = vmatprep.subr.mxu0 0.0
    %1303 = vmatpush1.msra.mxu0 0.0
    %1304 = vmatprep.subr.mxu0 0.0
    %1305 = vmatpush1.msra.mxu0 0.0
    %1306 = vmatprep.subr.mxu0 0.0
    %1307 = vmatpush1.msra.mxu0 0.0
    %1308 = vmatprep.mubr.f32.mxu0 0.0
    %1309 = vmatmul.mubr.f32.gmra.mrb[0].mxu0 %v1242
    %v1310 = vpop.f32.mrb[0].mxu0
    %v1311 = vadd.f32 0.0, %v1310
    %v1312 = vpop.f32.mrb[0].mxu0
    %1313 = vdwg.mxu0
    %1314 = vrot.lane.b32.xlu0 %v232, 64
    %v1315 = vpop.permute.xlu0 %1314
    %v1318 = vsel %vm239, %v931, 0
    %1320 = vmatprep.subr.mxu0 0.0
    %1321 = vmatpush1.msra.mxu0 %v1315
    %1322 = vmatprep.subr.mxu0 0.0
    %1323 = vmatpush1.msra.mxu0 0.0
    %1324 = vmatprep.subr.mxu0 0.0
    %1325 = vmatpush1.msra.mxu0 0.0
    %1326 = vmatprep.subr.mxu0 0.0
    %1327 = vmatpush1.msra.mxu0 0.0
    %1328 = vmatprep.subr.mxu0 0.0
    %1329 = vmatpush1.msra.mxu0 0.0
    %1330 = vmatprep.subr.mxu0 0.0
    %1331 = vmatpush1.msra.mxu0 0.0
    %1332 = vmatprep.subr.mxu0 0.0
    %1333 = vmatpush1.msra.mxu0 0.0
    %1334 = vmatprep.subr.mxu0 0.0
    %1335 = vmatpush1.msra.mxu0 0.0
    %1336 = vmatprep.subr.mxu0 0.0
    %1337 = vmatpush1.msra.mxu0 0.0
    %1338 = vmatprep.subr.mxu0 0.0
    %1339 = vmatpush1.msra.mxu0 0.0
    %1340 = vmatprep.subr.mxu0 0.0
    %1341 = vmatpush1.msra.mxu0 0.0
    %1342 = vmatprep.subr.mxu0 0.0
    %1343 = vmatpush1.msra.mxu0 0.0
    %1344 = vmatprep.subr.mxu0 0.0
    %1345 = vmatpush1.msra.mxu0 0.0
    %1346 = vmatprep.subr.mxu0 0.0
    %1347 = vmatpush1.msra.mxu0 0.0
    %1348 = vmatprep.subr.mxu0 0.0
    %1349 = vmatpush1.msra.mxu0 0.0
    %1350 = vmatprep.subr.mxu0 0.0
    %1351 = vmatpush1.msra.mxu0 0.0
    %1352 = vmatprep.subr.mxu0 0.0
    %1353 = vmatpush1.msra.mxu0 0.0
    %1354 = vmatprep.subr.mxu0 0.0
    %1355 = vmatpush1.msra.mxu0 0.0
    %1356 = vmatprep.subr.mxu0 0.0
    %1357 = vmatpush1.msra.mxu0 0.0
    %1358 = vmatprep.subr.mxu0 0.0
    %1359 = vmatpush1.msra.mxu0 0.0
    %1360 = vmatprep.subr.mxu0 0.0
    %1361 = vmatpush1.msra.mxu0 0.0
    %1362 = vmatprep.subr.mxu0 0.0
    %1363 = vmatpush1.msra.mxu0 0.0
    %1364 = vmatprep.subr.mxu0 0.0
    %1365 = vmatpush1.msra.mxu0 0.0
    %1366 = vmatprep.subr.mxu0 0.0
    %1367 = vmatpush1.msra.mxu0 0.0
    %1368 = vmatprep.subr.mxu0 0.0
    %1369 = vmatpush1.msra.mxu0 0.0
    %1370 = vmatprep.subr.mxu0 0.0
    %1371 = vmatpush1.msra.mxu0 0.0
    %1372 = vmatprep.subr.mxu0 0.0
    %1373 = vmatpush1.msra.mxu0 0.0
    %1374 = vmatprep.subr.mxu0 0.0
    %1375 = vmatpush1.msra.mxu0 0.0
    %1376 = vmatprep.subr.mxu0 0.0
    %1377 = vmatpush1.msra.mxu0 0.0
    %1378 = vmatprep.subr.mxu0 0.0
    %1379 = vmatpush1.msra.mxu0 0.0
    %1380 = vmatprep.subr.mxu0 0.0
    %1381 = vmatpush1.msra.mxu0 0.0
    %1382 = vmatprep.subr.mxu0 0.0
    %1383 = vmatpush1.msra.mxu0 0.0
    %1384 = vmatprep.mubr.f32.mxu0 0.0
    %1385 = vmatmul.mubr.f32.gmra.mrb[0].mxu0 %v1318
    %v1386 = vpop.f32.mrb[0].mxu0
    %v1387 = vadd.f32 0.0, %v1386
    %v1388 = vpop.f32.mrb[0].mxu0
    %1389 = vdwg.mxu0
    %1390 = vrot.lane.b32.xlu0 %v234, 64
    %v1391 = vpop.permute.xlu0 %1390
    %v1394 = vsel %vm239, %v932, 0
    %1396 = vmatprep.subr.mxu0 0.0
    %1397 = vmatpush1.msra.mxu0 %v1391
    %1398 = vmatprep.subr.mxu0 0.0
    %1399 = vmatpush1.msra.mxu0 0.0
    %1400 = vmatprep.subr.mxu0 0.0
    %1401 = vmatpush1.msra.mxu0 0.0
    %1402 = vmatprep.subr.mxu0 0.0
    %1403 = vmatpush1.msra.mxu0 0.0
    %1404 = vmatprep.subr.mxu0 0.0
    %1405 = vmatpush1.msra.mxu0 0.0
    %1406 = vmatprep.subr.mxu0 0.0
    %1407 = vmatpush1.msra.mxu0 0.0
    %1408 = vmatprep.subr.mxu0 0.0
    %1409 = vmatpush1.msra.mxu0 0.0
    %1410 = vmatprep.subr.mxu0 0.0
    %1411 = vmatpush1.msra.mxu0 0.0
    %1412 = vmatprep.subr.mxu0 0.0
    %1413 = vmatpush1.msra.mxu0 0.0
    %1414 = vmatprep.subr.mxu0 0.0
    %1415 = vmatpush1.msra.mxu0 0.0
    %1416 = vmatprep.subr.mxu0 0.0
    %1417 = vmatpush1.msra.mxu0 0.0
    %1418 = vmatprep.subr.mxu0 0.0
    %1419 = vmatpush1.msra.mxu0 0.0
    %1420 = vmatprep.subr.mxu0 0.0
    %1421 = vmatpush1.msra.mxu0 0.0
    %1422 = vmatprep.subr.mxu0 0.0
    %1423 = vmatpush1.msra.mxu0 0.0
    %1424 = vmatprep.subr.mxu0 0.0
    %1425 = vmatpush1.msra.mxu0 0.0
    %1426 = vmatprep.subr.mxu0 0.0
    %1427 = vmatpush1.msra.mxu0 0.0
    %1428 = vmatprep.subr.mxu0 0.0
    %1429 = vmatpush1.msra.mxu0 0.0
    %1430 = vmatprep.subr.mxu0 0.0
    %1431 = vmatpush1.msra.mxu0 0.0
    %1432 = vmatprep.subr.mxu0 0.0
    %1433 = vmatpush1.msra.mxu0 0.0
    %1434 = vmatprep.subr.mxu0 0.0
    %1435 = vmatpush1.msra.mxu0 0.0
    %1436 = vmatprep.subr.mxu0 0.0
    %1437 = vmatpush1.msra.mxu0 0.0
    %1438 = vmatprep.subr.mxu0 0.0
    %1439 = vmatpush1.msra.mxu0 0.0
    %1440 = vmatprep.subr.mxu0 0.0
    %1441 = vmatpush1.msra.mxu0 0.0
    %1442 = vmatprep.subr.mxu0 0.0
    %1443 = vmatpush1.msra.mxu0 0.0
    %1444 = vmatprep.subr.mxu0 0.0
    %1445 = vmatpush1.msra.mxu0 0.0
    %1446 = vmatprep.subr.mxu0 0.0
    %1447 = vmatpush1.msra.mxu0 0.0
    %1448 = vmatprep.subr.mxu0 0.0
    %1449 = vmatpush1.msra.mxu0 0.0
    %1450 = vmatprep.subr.mxu0 0.0
    %1451 = vmatpush1.msra.mxu0 0.0
    %1452 = vmatprep.subr.mxu0 0.0
    %1453 = vmatpush1.msra.mxu0 0.0
    %1454 = vmatprep.subr.mxu0 0.0
    %1455 = vmatpush1.msra.mxu0 0.0
    %1456 = vmatprep.subr.mxu0 0.0
    %1457 = vmatpush1.msra.mxu0 0.0
    %1458 = vmatprep.subr.mxu0 0.0
    %1459 = vmatpush1.msra.mxu0 0.0
    %1460 = vmatprep.mubr.f32.mxu0 0.0
    %1461 = vmatmul.mubr.f32.gmra.mrb[0].mxu0 %v1394
    %v1462 = vpop.f32.mrb[0].mxu0
    %v1463 = vadd.f32 0.0, %v1462
    %v1464 = vpop.f32.mrb[0].mxu0
    %1465 = vdwg.mxu0
    %1466 = vrot.lane.b32.xlu0 %v236, 64
    %v1467 = vpop.permute.xlu0 %1466
    %v1470 = vsel %vm239, %v933, 0
    %1472 = vmatprep.subr.mxu0 0.0
    %1473 = vmatpush1.msra.mxu0 %v1467
    %1474 = vmatprep.subr.mxu0 0.0
    %1475 = vmatpush1.msra.mxu0 0.0
    %1476 = vmatprep.subr.mxu0 0.0
    %1477 = vmatpush1.msra.mxu0 0.0
    %1478 = vmatprep.subr.mxu0 0.0
    %1479 = vmatpush1.msra.mxu0 0.0
    %1480 = vmatprep.subr.mxu0 0.0
    %1481 = vmatpush1.msra.mxu0 0.0
    %1482 = vmatprep.subr.mxu0 0.0
    %1483 = vmatpush1.msra.mxu0 0.0
    %1484 = vmatprep.subr.mxu0 0.0
    %1485 = vmatpush1.msra.mxu0 0.0
    %1486 = vmatprep.subr.mxu0 0.0
    %1487 = vmatpush1.msra.mxu0 0.0
    %1488 = vmatprep.subr.mxu0 0.0
    %1489 = vmatpush1.msra.mxu0 0.0
    %1490 = vmatprep.subr.mxu0 0.0
    %1491 = vmatpush1.msra.mxu0 0.0
    %1492 = vmatprep.subr.mxu0 0.0
    %1493 = vmatpush1.msra.mxu0 0.0
    %1494 = vmatprep.subr.mxu0 0.0
    %1495 = vmatpush1.msra.mxu0 0.0
    %1496 = vmatprep.subr.mxu0 0.0
    %1497 = vmatpush1.msra.mxu0 0.0
    %1498 = vmatprep.subr.mxu0 0.0
    %1499 = vmatpush1.msra.mxu0 0.0
    %1500 = vmatprep.subr.mxu0 0.0
    %1501 = vmatpush1.msra.mxu0 0.0
    %1502 = vmatprep.subr.mxu0 0.0
    %1503 = vmatpush1.msra.mxu0 0.0
    %1504 = vmatprep.subr.mxu0 0.0
    %1505 = vmatpush1.msra.mxu0 0.0
    %1506 = vmatprep.subr.mxu0 0.0
    %1507 = vmatpush1.msra.mxu0 0.0
    %1508 = vmatprep.subr.mxu0 0.0
    %1509 = vmatpush1.msra.mxu0 0.0
    %1510 = vmatprep.subr.mxu0 0.0
    %1511 = vmatpush1.msra.mxu0 0.0
    %1512 = vmatprep.subr.mxu0 0.0
    %1513 = vmatpush1.msra.mxu0 0.0
    %1514 = vmatprep.subr.mxu0 0.0
    %1515 = vmatpush1.msra.mxu0 0.0
    %1516 = vmatprep.subr.mxu0 0.0
    %1517 = vmatpush1.msra.mxu0 0.0
    %1518 = vmatprep.subr.mxu0 0.0
    %1519 = vmatpush1.msra.mxu0 0.0
    %1520 = vmatprep.subr.mxu0 0.0
    %1521 = vmatpush1.msra.mxu0 0.0
    %1522 = vmatprep.subr.mxu0 0.0
    %1523 = vmatpush1.msra.mxu0 0.0
    %1524 = vmatprep.subr.mxu0 0.0
    %1525 = vmatpush1.msra.mxu0 0.0
    %1526 = vmatprep.subr.mxu0 0.0
    %1527 = vmatpush1.msra.mxu0 0.0
    %1528 = vmatprep.subr.mxu0 0.0
    %1529 = vmatpush1.msra.mxu0 0.0
    %1530 = vmatprep.subr.mxu0 0.0
    %1531 = vmatpush1.msra.mxu0 0.0
    %1532 = vmatprep.subr.mxu0 0.0
    %1533 = vmatpush1.msra.mxu0 0.0
    %1534 = vmatprep.subr.mxu0 0.0
    %1535 = vmatpush1.msra.mxu0 0.0
    %1536 = vmatprep.mubr.f32.mxu0 0.0
    %1537 = vmatmul.mubr.f32.gmra.mrb[0].mxu0 %v1470
    %v1538 = vpop.f32.mrb[0].mxu0
    %v1539 = vadd.f32 0.0, %v1538
    %v1540 = vpop.f32.mrb[0].mxu0
    %1541 = vdwg.mxu0
    %1542 = vst.msk [vmem:[#allocation2] sm:$0xff] %vm239, %v1007
    %1543 = vst.msk [vmem:[#allocation2 + $0x8] sm:$0xff] %vm239, %v1083
    %1546 = vrot.lane.b32.xlu0 %v1159, 8
    %v1547 = vpop.permute.xlu0 %1546
    %1548 = vrot.lane.b32.xlu0 %v1235, 8
    %v1549 = vpop.permute.xlu0 %1548
    %vm1552 = vcmask 130112
    %1553 = vst.msk [vmem:[#allocation2] sm:$0xff] %vm1552, %v1547
    %1554 = vst.msk [vmem:[#allocation2 + $0x8] sm:$0xff] %vm1552, %v1549
    %1557 = vrot.lane.b32.xlu0 %v1311, 16
    %v1558 = vpop.permute.xlu0 %1557
    %1559 = vrot.lane.b32.xlu0 %v1387, 16
    %v1560 = vpop.permute.xlu0 %1559
    %vm1563 = vcmask 195712
    %1564 = vst.msk [vmem:[#allocation2] sm:$0xff] %vm1563, %v1558
    %1565 = vst.msk [vmem:[#allocation2 + $0x8] sm:$0xff] %vm1563, %v1560
    %1568 = vrot.lane.b32.xlu0 %v1463, 24
    %v1569 = vpop.permute.xlu0 %1568
    %1570 = vrot.lane.b32.xlu0 %v1539, 24
    %v1571 = vpop.permute.xlu0 %1570
    %vm1574 = vcmask 261312
    %1575 = vst.msk [vmem:[#allocation2] sm:$0xff] %vm1574, %v1569
    %1576 = vst.msk [vmem:[#allocation2 + $0x8] sm:$0xff] %vm1574, %v1571
    %v1577 = vld [vmem:[#allocation2] sm:$0xff]
    %v1578 = vld [vmem:[#allocation2 + $0x8] sm:$0xff]
    %1583 = vrot.lane.b32.xlu0 %v69, 32
    %v1584 = vpop.permute.xlu0 %1583
    %1585 = vrot.lane.b32.xlu0 %v71, 32
    %v1586 = vpop.permute.xlu0 %1585
    %1587 = vrot.lane.b32.xlu0 %v73, 32
    %v1588 = vpop.permute.xlu0 %1587
    %1589 = vrot.lane.b32.xlu0 %v75, 32
    %v1590 = vpop.permute.xlu0 %1589
    %v1596 = vsel %vm84, %v1577, 0
    %v1599 = vsel %vm84, %v1578, 0
    %1601 = vmatprep.subr.mxu0 0.0
    %1602 = vmatpush1.msra.mxu0 %v1584
    %1603 = vmatprep.subr.mxu0 0.0
    %1604 = vmatpush1.msra.mxu0 %v1586
    %1605 = vmatprep.subr.mxu0 0.0
    %1606 = vmatpush1.msra.mxu0 %v1588
    %1607 = vmatprep.subr.mxu0 0.0
    %1608 = vmatpush1.msra.mxu0 %v1590
    %1609 = vmatprep.subr.mxu0 0.0
    %1610 = vmatpush1.msra.mxu0 0.0
    %1611 = vmatprep.subr.mxu0 0.0
    %1612 = vmatpush1.msra.mxu0 0.0
    %1613 = vmatprep.subr.mxu0 0.0
    %1614 = vmatpush1.msra.mxu0 0.0
    %1615 = vmatprep.subr.mxu0 0.0
    %1616 = vmatpush1.msra.mxu0 0.0
    %1617 = vmatprep.subr.mxu0 0.0
    %1618 = vmatpush1.msra.mxu0 0.0
    %1619 = vmatprep.subr.mxu0 0.0
    %1620 = vmatpush1.msra.mxu0 0.0
    %1621 = vmatprep.subr.mxu0 0.0
    %1622 = vmatpush1.msra.mxu0 0.0
    %1623 = vmatprep.subr.mxu0 0.0
    %1624 = vmatpush1.msra.mxu0 0.0
    %1625 = vmatprep.subr.mxu0 0.0
    %1626 = vmatpush1.msra.mxu0 0.0
    %1627 = vmatprep.subr.mxu0 0.0
    %1628 = vmatpush1.msra.mxu0 0.0
    %1629 = vmatprep.subr.mxu0 0.0
    %1630 = vmatpush1.msra.mxu0 0.0
    %1631 = vmatprep.subr.mxu0 0.0
    %1632 = vmatpush1.msra.mxu0 0.0
    %1633 = vmatprep.subr.mxu0 0.0
    %1634 = vmatpush1.msra.mxu0 0.0
    %1635 = vmatprep.subr.mxu0 0.0
    %1636 = vmatpush1.msra.mxu0 0.0
    %1637 = vmatprep.subr.mxu0 0.0
    %1638 = vmatpush1.msra.mxu0 0.0
    %1639 = vmatprep.subr.mxu0 0.0
    %1640 = vmatpush1.msra.mxu0 0.0
    %1641 = vmatprep.subr.mxu0 0.0
    %1642 = vmatpush1.msra.mxu0 0.0
    %1643 = vmatprep.subr.mxu0 0.0
    %1644 = vmatpush1.msra.mxu0 0.0
    %1645 = vmatprep.subr.mxu0 0.0
    %1646 = vmatpush1.msra.mxu0 0.0
    %1647 = vmatprep.subr.mxu0 0.0
    %1648 = vmatpush1.msra.mxu0 0.0
    %1649 = vmatprep.subr.mxu0 0.0
    %1650 = vmatpush1.msra.mxu0 0.0
    %1651 = vmatprep.subr.mxu0 0.0
    %1652 = vmatpush1.msra.mxu0 0.0
    %1653 = vmatprep.subr.mxu0 0.0
    %1654 = vmatpush1.msra.mxu0 0.0
    %1655 = vmatprep.subr.mxu0 0.0
    %1656 = vmatpush1.msra.mxu0 0.0
    %1657 = vmatprep.subr.mxu0 0.0
    %1658 = vmatpush1.msra.mxu0 0.0
    %1659 = vmatprep.subr.mxu0 0.0
    %1660 = vmatpush1.msra.mxu0 0.0
    %1661 = vmatprep.subr.mxu0 0.0
    %1662 = vmatpush1.msra.mxu0 0.0
    %1663 = vmatprep.subr.mxu0 0.0
    %1664 = vmatpush1.msra.mxu0 0.0
    %1665 = vmatprep.mubr.f32.mxu0 0.0
    %1666 = vmatmul.mubr.f32.gmra.mrb[0].mxu0 %v1596
    %v1667 = vpop.f32.mrb[0].mxu0
    %v1668 = vadd.f32 0.0, %v1667
    %v1669 = vpop.f32.mrb[0].mxu0
    %1670 = vmatprep.mubr.f32.mxu0 0.0
    %1671 = vmatmul.mubr.f32.gmra.mrb[0].mxu0 %v1599
    %v1672 = vpop.f32.mrb[0].mxu0
    %v1673 = vadd.f32 0.0, %v1672
    %v1674 = vpop.f32.mrb[0].mxu0
    %1675 = vdwg.mxu0
    %v1676 = vadd.f32 %v67, %v1668
    %v1677 = vadd.f32 %v68, %v1673
    %v1678 = vlaneseq
    %v1679 = vshrl.u32 %v1678, 7
    %v1680 = vsub.s32 0, %v1679
    %v1681 = vrot.slane %v82, %v1680
    %v1682 = vadd.f32 %v1676, %v1681
    %v1683 = vadd.f32 %v1677, %v1681
    %v1684 = vsel %vm84, %v1682, 0.0
    %1685 = vadd.xlane.f32.xlu0 %v1684
    %v1686 = vpop.xlane.xlu0 %1685
    %v1687 = vsel %vm84, %v1683, 0.0
    %1688 = vadd.xlane.f32.xlu0 %v1687
    %v1689 = vpop.xlane.xlu0 %1688
    %v1690 = vmul.f32 %v1686, %v91
    %v1691 = vmul.f32 %v1689, %v91
    %v1692 = vsub.f32 %v1682, %v1690
    %v1693 = vsub.f32 %v1683, %v1691
    %v1694 = vmul.f32 %v1692, %v1692
    %v1695 = vmul.f32 %v1693, %v1693
    %v1696 = vsel %vm84, %v1694, 0.0
    %1697 = vadd.xlane.f32.xlu0 %v1696
    %v1698 = vpop.xlane.xlu0 %1697
    %v1699 = vsel %vm84, %v1695, 0.0
    %1700 = vadd.xlane.f32.xlu0 %v1699
    %v1701 = vpop.xlane.xlu0 %1700
    %v1702 = vmul.f32 %v1698, 0.032258064
    %v1703 = vmul.f32 %v1701, 0.032258064
    %v1704 = vrsqrt.pop %v1702
    %v1705 = vmul.f32 %v1702, %v1704
    %vm1706 = vcmp.eq.f32.partialorder %v1702, inf
    %v1707 = vsel %vm1706, %v1702, %v1705
    %vm1708 = vcmp.eq.f32.partialorder %v1702, 0.0
    %v1709 = vand.u32 %v1702, 2147483648
    %v1710 = vsel %vm1708, %v1709, %v1707
    %v1711 = vrsqrt.pop %v1703
    %v1712 = vmul.f32 %v1703, %v1711
    %vm1713 = vcmp.eq.f32.partialorder %v1703, inf
    %v1714 = vsel %vm1713, %v1703, %v1712
    %vm1715 = vcmp.eq.f32.partialorder %v1703, 0.0
    %v1716 = vand.u32 %v1703, 2147483648
    %v1717 = vsel %vm1715, %v1716, %v1714
    %v1718 = vadd.f32 %v1710, 1e-06
    %v1719 = vadd.f32 %v1717, 1e-06
    %v1720 = vrcp.pop %v1718
    %v1721 = vmul.f32 %v1692, %v1720
    %v1722 = vrcp.pop %v1719
    %v1723 = vmul.f32 %v1693, %v1722
    %1726 = vrot.lane.b32.xlu0 %v1721, 64
    %v1727 = vpop.permute.xlu0 %1726
    %1728 = vrot.lane.b32.xlu0 %v1723, 64
    %v1729 = vpop.permute.xlu0 %1728
    %v1732 = vmul.f32 %v129, %v1727
    %v1733 = vmul.f32 %v129, %v1729
    %v1734 = vadd.f32 %v1732, %v134
    %v1735 = vadd.f32 %v1733, %v134
    %1738 = vrot.lane.b32.xlu0 %v1734, 64
    %v1739 = vpop.permute.xlu0 %1738
    %1740 = vrot.lane.b32.xlu0 %v1735, 64
    %v1741 = vpop.permute.xlu0 %1740
    %1743 = vrot.lane.b32.xlu0 %v1681, 96
    %v1744 = vpop.permute.xlu0 %1743
    %v1746 = vsel %vm84, %v1739, 0
    %v1748 = vsel %vm84, %v1741, 0
    %1750 = vmatprep.subr.mxu0 0.0
    %1751 = vmatpush1.msra.mxu0 %v70
    %1752 = vmatprep.subr.mxu0 0.0
    %1753 = vmatpush1.msra.mxu0 %v72
    %1754 = vmatprep.subr.mxu0 0.0
    %1755 = vmatpush1.msra.mxu0 %v74
    %1756 = vmatprep.subr.mxu0 0.0
    %1757 = vmatpush1.msra.mxu0 %v76
    %1758 = vmatprep.subr.mxu0 0.0
    %1759 = vmatpush1.msra.mxu0 0.0
    %1760 = vmatprep.subr.mxu0 0.0
    %1761 = vmatpush1.msra.mxu0 0.0
    %1762 = vmatprep.subr.mxu0 0.0
    %1763 = vmatpush1.msra.mxu0 0.0
    %1764 = vmatprep.subr.mxu0 0.0
    %1765 = vmatpush1.msra.mxu0 0.0
    %1766 = vmatprep.subr.mxu0 0.0
    %1767 = vmatpush1.msra.mxu0 0.0
    %1768 = vmatprep.subr.mxu0 0.0
    %1769 = vmatpush1.msra.mxu0 0.0
    %1770 = vmatprep.subr.mxu0 0.0
    %1771 = vmatpush1.msra.mxu0 0.0
    %1772 = vmatprep.subr.mxu0 0.0
    %1773 = vmatpush1.msra.mxu0 0.0
    %1774 = vmatprep.subr.mxu0 0.0
    %1775 = vmatpush1.msra.mxu0 0.0
    %1776 = vmatprep.subr.mxu0 0.0
    %1777 = vmatpush1.msra.mxu0 0.0
    %1778 = vmatprep.subr.mxu0 0.0
    %1779 = vmatpush1.msra.mxu0 0.0
    %1780 = vmatprep.subr.mxu0 0.0
    %1781 = vmatpush1.msra.mxu0 0.0
    %1782 = vmatprep.subr.mxu0 0.0
    %1783 = vmatpush1.msra.mxu0 0.0
    %1784 = vmatprep.subr.mxu0 0.0
    %1785 = vmatpush1.msra.mxu0 0.0
    %1786 = vmatprep.subr.mxu0 0.0
    %1787 = vmatpush1.msra.mxu0 0.0
    %1788 = vmatprep.subr.mxu0 0.0
    %1789 = vmatpush1.msra.mxu0 0.0
    %1790 = vmatprep.subr.mxu0 0.0
    %1791 = vmatpush1.msra.mxu0 0.0
    %1792 = vmatprep.subr.mxu0 0.0
    %1793 = vmatpush1.msra.mxu0 0.0
    %1794 = vmatprep.subr.mxu0 0.0
    %1795 = vmatpush1.msra.mxu0 0.0
    %1796 = vmatprep.subr.mxu0 0.0
    %1797 = vmatpush1.msra.mxu0 0.0
    %1798 = vmatprep.subr.mxu0 0.0
    %1799 = vmatpush1.msra.mxu0 0.0
    %1800 = vmatprep.subr.mxu0 0.0
    %1801 = vmatpush1.msra.mxu0 0.0
    %1802 = vmatprep.subr.mxu0 0.0
    %1803 = vmatpush1.msra.mxu0 0.0
    %1804 = vmatprep.subr.mxu0 0.0
    %1805 = vmatpush1.msra.mxu0 0.0
    %1806 = vmatprep.subr.mxu0 0.0
    %1807 = vmatpush1.msra.mxu0 0.0
    %1808 = vmatprep.subr.mxu0 0.0
    %1809 = vmatpush1.msra.mxu0 0.0
    %1810 = vmatprep.subr.mxu0 0.0
    %1811 = vmatpush1.msra.mxu0 0.0
    %1812 = vmatprep.subr.mxu0 0.0
    %1813 = vmatpush1.msra.mxu0 0.0
    %1814 = vmatprep.mubr.f32.mxu0 0.0
    %1815 = vmatmul.mubr.f32.gmra.mrb[0].mxu0 %v1746
    %v1816 = vpop.f32.mrb[0].mxu0
    %v1817 = vadd.f32 %v1744, %v1816
    %v1818 = vpop.f32.mrb[0].mxu0
    %1819 = vmatprep.mubr.f32.mxu0 0.0
    %1820 = vmatmul.mubr.f32.gmra.mrb[0].mxu0 %v1748
    %v1821 = vpop.f32.mrb[0].mxu0
    %v1822 = vadd.f32 %v1744, %v1821
    %v1823 = vpop.f32.mrb[0].mxu0
    %1824 = vdwg.mxu0
    %v1825 = vmax.f32 %v1817, 0.0
    %v1826 = vmax.f32 %v1822, 0.0
    %1835 = vrot.lane.b32.xlu0 %v70, 64
    %v1836 = vpop.permute.xlu0 %1835
    %1837 = vrot.lane.b32.xlu0 %v72, 64
    %v1838 = vpop.permute.xlu0 %1837
    %1839 = vrot.lane.b32.xlu0 %v74, 64
    %v1840 = vpop.permute.xlu0 %1839
    %1841 = vrot.lane.b32.xlu0 %v76, 64
    %v1842 = vpop.permute.xlu0 %1841
    %1843 = vrot.lane.b32.xlu0 %v77, 64
    %v1844 = vpop.permute.xlu0 %1843
    %1845 = vrot.lane.b32.xlu0 %v78, 64
    %v1846 = vpop.permute.xlu0 %1845
    %1847 = vrot.lane.b32.xlu0 %v79, 64
    %v1848 = vpop.permute.xlu0 %1847
    %1849 = vrot.lane.b32.xlu0 %v80, 64
    %v1850 = vpop.permute.xlu0 %1849
    %vm1859 = vcmask 523264
    %v1861 = vsel %vm1859, %v1825, 0
    %v1864 = vsel %vm1859, %v1826, 0
    %1866 = vmatprep.subr.mxu0 0.0
    %1867 = vmatpush1.msra.mxu0 %v1836
    %1868 = vmatprep.subr.mxu0 0.0
    %1869 = vmatpush1.msra.mxu0 %v1838
    %1870 = vmatprep.subr.mxu0 0.0
    %1871 = vmatpush1.msra.mxu0 %v1840
    %1872 = vmatprep.subr.mxu0 0.0
    %1873 = vmatpush1.msra.mxu0 %v1842
    %1874 = vmatprep.subr.mxu0 0.0
    %1875 = vmatpush1.msra.mxu0 %v1844
    %1876 = vmatprep.subr.mxu0 0.0
    %1877 = vmatpush1.msra.mxu0 %v1846
    %1878 = vmatprep.subr.mxu0 0.0
    %1879 = vmatpush1.msra.mxu0 %v1848
    %1880 = vmatprep.subr.mxu0 0.0
    %1881 = vmatpush1.msra.mxu0 %v1850
    %1882 = vmatprep.subr.mxu0 0.0
    %1883 = vmatpush1.msra.mxu0 0.0
    %1884 = vmatprep.subr.mxu0 0.0
    %1885 = vmatpush1.msra.mxu0 0.0
    %1886 = vmatprep.subr.mxu0 0.0
    %1887 = vmatpush1.msra.mxu0 0.0
    %1888 = vmatprep.subr.mxu0 0.0
    %1889 = vmatpush1.msra.mxu0 0.0
    %1890 = vmatprep.subr.mxu0 0.0
    %1891 = vmatpush1.msra.mxu0 0.0
    %1892 = vmatprep.subr.mxu0 0.0
    %1893 = vmatpush1.msra.mxu0 0.0
    %1894 = vmatprep.subr.mxu0 0.0
    %1895 = vmatpush1.msra.mxu0 0.0
    %1896 = vmatprep.subr.mxu0 0.0
    %1897 = vmatpush1.msra.mxu0 0.0
    %1898 = vmatprep.subr.mxu0 0.0
    %1899 = vmatpush1.msra.mxu0 0.0
    %1900 = vmatprep.subr.mxu0 0.0
    %1901 = vmatpush1.msra.mxu0 0.0
    %1902 = vmatprep.subr.mxu0 0.0
    %1903 = vmatpush1.msra.mxu0 0.0
    %1904 = vmatprep.subr.mxu0 0.0
    %1905 = vmatpush1.msra.mxu0 0.0
    %1906 = vmatprep.subr.mxu0 0.0
    %1907 = vmatpush1.msra.mxu0 0.0
    %1908 = vmatprep.subr.mxu0 0.0
    %1909 = vmatpush1.msra.mxu0 0.0
    %1910 = vmatprep.subr.mxu0 0.0
    %1911 = vmatpush1.msra.mxu0 0.0
    %1912 = vmatprep.subr.mxu0 0.0
    %1913 = vmatpush1.msra.mxu0 0.0
    %1914 = vmatprep.subr.mxu0 0.0
    %1915 = vmatpush1.msra.mxu0 0.0
    %1916 = vmatprep.subr.mxu0 0.0
    %1917 = vmatpush1.msra.mxu0 0.0
    %1918 = vmatprep.subr.mxu0 0.0
    %1919 = vmatpush1.msra.mxu0 0.0
    %1920 = vmatprep.subr.mxu0 0.0
    %1921 = vmatpush1.msra.mxu0 0.0
    %1922 = vmatprep.subr.mxu0 0.0
    %1923 = vmatpush1.msra.mxu0 0.0
    %1924 = vmatprep.subr.mxu0 0.0
    %1925 = vmatpush1.msra.mxu0 0.0
    %1926 = vmatprep.subr.mxu0 0.0
    %1927 = vmatpush1.msra.mxu0 0.0
    %1928 = vmatprep.subr.mxu0 0.0
    %1929 = vmatpush1.msra.mxu0 0.0
    %1930 = vmatprep.mubr.f32.mxu0 0.0
    %1931 = vmatmul.mubr.f32.gmra.mrb[0].mxu0 %v1861
    %v1932 = vpop.f32.mrb[0].mxu0
    %v1933 = vadd.f32 0.0, %v1932
    %v1934 = vpop.f32.mrb[0].mxu0
    %1935 = vmatprep.mubr.f32.mxu0 0.0
    %1936 = vmatmul.mubr.f32.gmra.mrb[0].mxu0 %v1864
    %v1937 = vpop.f32.mrb[0].mxu0
    %v1938 = vadd.f32 0.0, %v1937
    %v1939 = vpop.f32.mrb[0].mxu0
    %1940 = vdwg.mxu0
    %v1941 = vadd.f32 %v1682, %v1933
    %v1942 = vadd.f32 %v1683, %v1938
    %1943 = vrot.lane.b32.xlu0 %v1681, 32
    %v1944 = vpop.permute.xlu0 %1943
    %v1946 = vadd.f32 %v1941, %v1944
    %v1947 = vadd.f32 %v1942, %v1944
    %s1948 = scalar_lea.vmem [#allocation8], 128
    %v1949 = vld [vmem:[%s1948] sm:$0xff]
    %v1950 = vld [vmem:[%s1948 + $0x8] sm:$0xff]
    %v1951 = vld [vmem:[%s1948 + $0x10] sm:$0xff]
    %v1952 = vld [vmem:[%s1948 + $0x18] sm:$0xff]
    %v1953 = vld [vmem:[%s1948 + $0x20] sm:$0xff]
    %v1954 = vld [vmem:[%s1948 + $0x28] sm:$0xff]
    %v1955 = vld [vmem:[%s1948 + $0x30] sm:$0xff]
    %v1956 = vld [vmem:[%s1948 + $0x38] sm:$0xff]
    %v1957 = vld [vmem:[%s1948 + $0x48] sm:$0xff]
    %v1958 = vld [vmem:[%s1948 + $0x58] sm:$0xff]
    %v1959 = vld [vmem:[%s1948 + $0x68] sm:$0xff]
    %v1960 = vld [vmem:[%s1948 + $0x78] sm:$0xff]
    %v1961 = vld [vmem:[%s3 + $0x3] sm:$0x1]
    %v1962 = vld [vmem:[%s3 + $0x4] sm:$0x1]
    %v1963 = vld [vmem:[%s3 + $0x5] sm:$0x1]
    %v1964 = vsel %vm84, %v1946, 0.0
    %1965 = vadd.xlane.f32.xlu0 %v1964
    %v1966 = vpop.xlane.xlu0 %1965
    %v1967 = vsel %vm84, %v1947, 0.0
    %1968 = vadd.xlane.f32.xlu0 %v1967
    %v1969 = vpop.xlane.xlu0 %1968
    %v1970 = vmul.f32 %v1966, %v91
    %v1971 = vmul.f32 %v1969, %v91
    %v1972 = vsub.f32 %v1946, %v1970
    %v1973 = vsub.f32 %v1947, %v1971
    %v1974 = vmul.f32 %v1972, %v1972
    %v1975 = vmul.f32 %v1973, %v1973
    %v1976 = vsel %vm84, %v1974, 0.0
    %1977 = vadd.xlane.f32.xlu0 %v1976
    %v1978 = vpop.xlane.xlu0 %1977
    %v1979 = vsel %vm84, %v1975, 0.0
    %1980 = vadd.xlane.f32.xlu0 %v1979
    %v1981 = vpop.xlane.xlu0 %1980
    %v1982 = vmul.f32 %v1978, 0.032258064
    %v1983 = vmul.f32 %v1981, 0.032258064
    %v1984 = vrsqrt.pop %v1982
    %v1985 = vmul.f32 %v1982, %v1984
    %vm1986 = vcmp.eq.f32.partialorder %v1982, inf
    %v1987 = vsel %vm1986, %v1982, %v1985
    %vm1988 = vcmp.eq.f32.partialorder %v1982, 0.0
    %v1989 = vand.u32 %v1982, 2147483648
    %v1990 = vsel %vm1988, %v1989, %v1987
    %v1991 = vrsqrt.pop %v1983
    %v1992 = vmul.f32 %v1983, %v1991
    %vm1993 = vcmp.eq.f32.partialorder %v1983, inf
    %v1994 = vsel %vm1993, %v1983, %v1992
    %vm1995 = vcmp.eq.f32.partialorder %v1983, 0.0
    %v1996 = vand.u32 %v1983, 2147483648
    %v1997 = vsel %vm1995, %v1996, %v1994
    %v1998 = vadd.f32 %v1990, 1e-06
    %v1999 = vadd.f32 %v1997, 1e-06
    %v2000 = vrcp.pop %v1998
    %v2001 = vmul.f32 %v1972, %v2000
    %v2002 = vrcp.pop %v1999
    %v2003 = vmul.f32 %v1973, %v2002
    %v2004 = vlaneseq
    %v2005 = vshrl.u32 %v2004, 7
    %v2006 = vsub.s32 0, %v2005
    %v2007 = vrot.slane %v1963, %v2006
    %v2008 = vmul.f32 %v2007, %v2001
    %v2009 = vmul.f32 %v2007, %v2003
    %2011 = vrot.lane.b32.xlu0 %v2007, 96
    %v2012 = vpop.permute.xlu0 %2011
    %v2014 = vadd.f32 %v2008, %v2012
    %v2015 = vadd.f32 %v2009, %v2012
    %v2016 = vlaneseq
    %v2017 = vshrl.u32 %v2016, 7
    %v2018 = vsub.s32 0, %v2017
    %v2019 = vrot.slane %v1961, %v2018
    %v2021 = vsel %vm84, %v2014, 0
    %v2024 = vsel %vm84, %v2015, 0
    %2026 = vmatprep.subr.mxu0 0.0
    %2027 = vmatpush1.msra.mxu0 %v1949
    %2028 = vmatprep.subr.mxu0 0.0
    %2029 = vmatpush1.msra.mxu0 %v1951
    %2030 = vmatprep.subr.mxu0 0.0
    %2031 = vmatpush1.msra.mxu0 %v1953
    %2032 = vmatprep.subr.mxu0 0.0
    %2033 = vmatpush1.msra.mxu0 %v1955
    %2034 = vmatprep.subr.mxu0 0.0
    %2035 = vmatpush1.msra.mxu0 0.0
    %2036 = vmatprep.subr.mxu0 0.0
    %2037 = vmatpush1.msra.mxu0 0.0
    %2038 = vmatprep.subr.mxu0 0.0
    %2039 = vmatpush1.msra.mxu0 0.0
    %2040 = vmatprep.subr.mxu0 0.0
    %2041 = vmatpush1.msra.mxu0 0.0
    %2042 = vmatprep.subr.mxu0 0.0
    %2043 = vmatpush1.msra.mxu0 0.0
    %2044 = vmatprep.subr.mxu0 0.0
    %2045 = vmatpush1.msra.mxu0 0.0
    %2046 = vmatprep.subr.mxu0 0.0
    %2047 = vmatpush1.msra.mxu0 0.0
    %2048 = vmatprep.subr.mxu0 0.0
    %2049 = vmatpush1.msra.mxu0 0.0
    %2050 = vmatprep.subr.mxu0 0.0
    %2051 = vmatpush1.msra.mxu0 0.0
    %2052 = vmatprep.subr.mxu0 0.0
    %2053 = vmatpush1.msra.mxu0 0.0
    %2054 = vmatprep.subr.mxu0 0.0
    %2055 = vmatpush1.msra.mxu0 0.0
    %2056 = vmatprep.subr.mxu0 0.0
    %2057 = vmatpush1.msra.mxu0 0.0
    %2058 = vmatprep.subr.mxu0 0.0
    %2059 = vmatpush1.msra.mxu0 0.0
    %2060 = vmatprep.subr.mxu0 0.0
    %2061 = vmatpush1.msra.mxu0 0.0
    %2062 = vmatprep.subr.mxu0 0.0
    %2063 = vmatpush1.msra.mxu0 0.0
    %2064 = vmatprep.subr.mxu0 0.0
    %2065 = vmatpush1.msra.mxu0 0.0
    %2066 = vmatprep.subr.mxu0 0.0
    %2067 = vmatpush1.msra.mxu0 0.0
    %2068 = vmatprep.subr.mxu0 0.0
    %2069 = vmatpush1.msra.mxu0 0.0
    %2070 = vmatprep.subr.mxu0 0.0
    %2071 = vmatpush1.msra.mxu0 0.0
    %2072 = vmatprep.subr.mxu0 0.0
    %2073 = vmatpush1.msra.mxu0 0.0
    %2074 = vmatprep.subr.mxu0 0.0
    %2075 = vmatpush1.msra.mxu0 0.0
    %2076 = vmatprep.subr.mxu0 0.0
    %2077 = vmatpush1.msra.mxu0 0.0
    %2078 = vmatprep.subr.mxu0 0.0
    %2079 = vmatpush1.msra.mxu0 0.0
    %2080 = vmatprep.subr.mxu0 0.0
    %2081 = vmatpush1.msra.mxu0 0.0
    %2082 = vmatprep.subr.mxu0 0.0
    %2083 = vmatpush1.msra.mxu0 0.0
    %2084 = vmatprep.subr.mxu0 0.0
    %2085 = vmatpush1.msra.mxu0 0.0
    %2086 = vmatprep.subr.mxu0 0.0
    %2087 = vmatpush1.msra.mxu0 0.0
    %2088 = vmatprep.subr.mxu0 0.0
    %2089 = vmatpush1.msra.mxu0 0.0
    %2090 = vmatprep.mubr.f32.mxu0 0.0
    %2091 = vmatmul.mubr.f32.gmra.mrb[0].mxu0 %v2021
    %v2092 = vpop.f32.mrb[0].mxu0
    %v2093 = vadd.f32 %v2019, %v2092
    %v2094 = vpop.f32.mrb[0].mxu0
    %2095 = vmatprep.mubr.f32.mxu0 0.0
    %2096 = vmatmul.mubr.f32.gmra.mrb[0].mxu0 %v2024
    %v2097 = vpop.f32.mrb[0].mxu0
    %v2098 = vadd.f32 %v2019, %v2097
    %v2099 = vpop.f32.mrb[0].mxu0
    %2100 = vdwg.mxu0
    %2103 = vrot.lane.b32.xlu0 %v2093, 120
    %v2104 = vpop.permute.xlu0 %2103
    %2105 = vrot.lane.b32.xlu0 %v2098, 120
    %v2106 = vpop.permute.xlu0 %2105
    %2107 = vrot.lane.b32.xlu0 %v2093, 112
    %v2108 = vpop.permute.xlu0 %2107
    %2109 = vrot.lane.b32.xlu0 %v2098, 112
    %v2110 = vpop.permute.xlu0 %2109
    %2111 = vrot.lane.b32.xlu0 %v2093, 104
    %v2112 = vpop.permute.xlu0 %2111
    %2113 = vrot.lane.b32.xlu0 %v2098, 104
    %v2114 = vpop.permute.xlu0 %2113
    %2115 = vrot.lane.b32.xlu0 %v2093, 96
    %v2116 = vpop.permute.xlu0 %2115
    %v2117 = vsel %vm239, %v2093, 0
    %v2119 = vsel %vm239, %v2116, 0
    %2121 = vmatprep.subr.mxu0 0.0
    %2122 = vmatpush1.xpose.msra.mxu0 %v2119
    %2123 = vmatprep.subr.mxu0 0.0
    %2124 = vmatpush1.xpose.msra.mxu0 0.0
    %2125 = vmatprep.subr.mxu0 0.0
    %2126 = vmatpush1.xpose.msra.mxu0 0.0
    %2127 = vmatprep.subr.mxu0 0.0
    %2128 = vmatpush1.xpose.msra.mxu0 0.0
    %2129 = vmatprep.subr.mxu0 0.0
    %2130 = vmatpush1.xpose.msra.mxu0 0.0
    %2131 = vmatprep.subr.mxu0 0.0
    %2132 = vmatpush1.xpose.msra.mxu0 0.0
    %2133 = vmatprep.subr.mxu0 0.0
    %2134 = vmatpush1.xpose.msra.mxu0 0.0
    %2135 = vmatprep.subr.mxu0 0.0
    %2136 = vmatpush1.xpose.msra.mxu0 0.0
    %2137 = vmatprep.subr.mxu0 0.0
    %2138 = vmatpush1.xpose.msra.mxu0 0.0
    %2139 = vmatprep.subr.mxu0 0.0
    %2140 = vmatpush1.xpose.msra.mxu0 0.0
    %2141 = vmatprep.subr.mxu0 0.0
    %2142 = vmatpush1.xpose.msra.mxu0 0.0
    %2143 = vmatprep.subr.mxu0 0.0
    %2144 = vmatpush1.xpose.msra.mxu0 0.0
    %2145 = vmatprep.subr.mxu0 0.0
    %2146 = vmatpush1.xpose.msra.mxu0 0.0
    %2147 = vmatprep.subr.mxu0 0.0
    %2148 = vmatpush1.xpose.msra.mxu0 0.0
    %2149 = vmatprep.subr.mxu0 0.0
    %2150 = vmatpush1.xpose.msra.mxu0 0.0
    %2151 = vmatprep.subr.mxu0 0.0
    %2152 = vmatpush1.xpose.msra.mxu0 0.0
    %2153 = vmatprep.subr.mxu0 0.0
    %2154 = vmatpush1.xpose.msra.mxu0 0.0
    %2155 = vmatprep.subr.mxu0 0.0
    %2156 = vmatpush1.xpose.msra.mxu0 0.0
    %2157 = vmatprep.subr.mxu0 0.0
    %2158 = vmatpush1.xpose.msra.mxu0 0.0
    %2159 = vmatprep.subr.mxu0 0.0
    %2160 = vmatpush1.xpose.msra.mxu0 0.0
    %2161 = vmatprep.subr.mxu0 0.0
    %2162 = vmatpush1.xpose.msra.mxu0 0.0
    %2163 = vmatprep.subr.mxu0 0.0
    %2164 = vmatpush1.xpose.msra.mxu0 0.0
    %2165 = vmatprep.subr.mxu0 0.0
    %2166 = vmatpush1.xpose.msra.mxu0 0.0
    %2167 = vmatprep.subr.mxu0 0.0
    %2168 = vmatpush1.xpose.msra.mxu0 0.0
    %2169 = vmatprep.subr.mxu0 0.0
    %2170 = vmatpush1.xpose.msra.mxu0 0.0
    %2171 = vmatprep.subr.mxu0 0.0
    %2172 = vmatpush1.xpose.msra.mxu0 0.0
    %2173 = vmatprep.subr.mxu0 0.0
    %2174 = vmatpush1.xpose.msra.mxu0 0.0
    %2175 = vmatprep.subr.mxu0 0.0
    %2176 = vmatpush1.xpose.msra.mxu0 0.0
    %2177 = vmatprep.subr.mxu0 0.0
    %2178 = vmatpush1.xpose.msra.mxu0 0.0
    %2179 = vmatprep.subr.mxu0 0.0
    %2180 = vmatpush1.xpose.msra.mxu0 0.0
    %2181 = vmatprep.subr.mxu0 0.0
    %2182 = vmatpush1.xpose.msra.mxu0 0.0
    %2183 = vmatprep.subr.mxu0 0.0
    %2184 = vmatpush1.xpose.msra.mxu0 0.0
    %2185 = vmatprep.mubr.f32.mxu0 0.0
    %2186 = vmatmul.mubr.f32.gmra.mrb[0].mxu0 %v2117
    %v2187 = vpop.f32.mrb[0].mxu0
    %v2188 = vadd.f32 %v59, %v2187
    %v2189 = vpop.f32.mrb[0].mxu0
    %2190 = vdwg.mxu0
    %2191 = vrot.lane.b32.xlu0 %v2098, 96
    %v2192 = vpop.permute.xlu0 %2191
    %v2193 = vsel %vm239, %v2098, 0
    %v2195 = vsel %vm239, %v2192, 0
    %2197 = vmatprep.subr.mxu0 0.0
    %2198 = vmatpush1.xpose.msra.mxu0 %v2195
    %2199 = vmatprep.subr.mxu0 0.0
    %2200 = vmatpush1.xpose.msra.mxu0 0.0
    %2201 = vmatprep.subr.mxu0 0.0
    %2202 = vmatpush1.xpose.msra.mxu0 0.0
    %2203 = vmatprep.subr.mxu0 0.0
    %2204 = vmatpush1.xpose.msra.mxu0 0.0
    %2205 = vmatprep.subr.mxu0 0.0
    %2206 = vmatpush1.xpose.msra.mxu0 0.0
    %2207 = vmatprep.subr.mxu0 0.0
    %2208 = vmatpush1.xpose.msra.mxu0 0.0
    %2209 = vmatprep.subr.mxu0 0.0
    %2210 = vmatpush1.xpose.msra.mxu0 0.0
    %2211 = vmatprep.subr.mxu0 0.0
    %2212 = vmatpush1.xpose.msra.mxu0 0.0
    %2213 = vmatprep.subr.mxu0 0.0
    %2214 = vmatpush1.xpose.msra.mxu0 0.0
    %2215 = vmatprep.subr.mxu0 0.0
    %2216 = vmatpush1.xpose.msra.mxu0 0.0
    %2217 = vmatprep.subr.mxu0 0.0
    %2218 = vmatpush1.xpose.msra.mxu0 0.0
    %2219 = vmatprep.subr.mxu0 0.0
    %2220 = vmatpush1.xpose.msra.mxu0 0.0
    %2221 = vmatprep.subr.mxu0 0.0
    %2222 = vmatpush1.xpose.msra.mxu0 0.0
    %2223 = vmatprep.subr.mxu0 0.0
    %2224 = vmatpush1.xpose.msra.mxu0 0.0
    %2225 = vmatprep.subr.mxu0 0.0
    %2226 = vmatpush1.xpose.msra.mxu0 0.0
    %2227 = vmatprep.subr.mxu0 0.0
    %2228 = vmatpush1.xpose.msra.mxu0 0.0
    %2229 = vmatprep.subr.mxu0 0.0
    %2230 = vmatpush1.xpose.msra.mxu0 0.0
    %2231 = vmatprep.subr.mxu0 0.0
    %2232 = vmatpush1.xpose.msra.mxu0 0.0
    %2233 = vmatprep.subr.mxu0 0.0
    %2234 = vmatpush1.xpose.msra.mxu0 0.0
    %2235 = vmatprep.subr.mxu0 0.0
    %2236 = vmatpush1.xpose.msra.mxu0 0.0
    %2237 = vmatprep.subr.mxu0 0.0
    %2238 = vmatpush1.xpose.msra.mxu0 0.0
    %2239 = vmatprep.subr.mxu0 0.0
    %2240 = vmatpush1.xpose.msra.mxu0 0.0
    %2241 = vmatprep.subr.mxu0 0.0
    %2242 = vmatpush1.xpose.msra.mxu0 0.0
    %2243 = vmatprep.subr.mxu0 0.0
    %2244 = vmatpush1.xpose.msra.mxu0 0.0
    %2245 = vmatprep.subr.mxu0 0.0
    %2246 = vmatpush1.xpose.msra.mxu0 0.0
    %2247 = vmatprep.subr.mxu0 0.0
    %2248 = vmatpush1.xpose.msra.mxu0 0.0
    %2249 = vmatprep.subr.mxu0 0.0
    %2250 = vmatpush1.xpose.msra.mxu0 0.0
    %2251 = vmatprep.subr.mxu0 0.0
    %2252 = vmatpush1.xpose.msra.mxu0 0.0
    %2253 = vmatprep.subr.mxu0 0.0
    %2254 = vmatpush1.xpose.msra.mxu0 0.0
    %2255 = vmatprep.subr.mxu0 0.0
    %2256 = vmatpush1.xpose.msra.mxu0 0.0
    %2257 = vmatprep.subr.mxu0 0.0
    %2258 = vmatpush1.xpose.msra.mxu0 0.0
    %2259 = vmatprep.subr.mxu0 0.0
    %2260 = vmatpush1.xpose.msra.mxu0 0.0
    %2261 = vmatprep.mubr.f32.mxu0 0.0
    %2262 = vmatmul.mubr.f32.gmra.mrb[0].mxu0 %v2193
    %v2263 = vpop.f32.mrb[0].mxu0
    %v2264 = vadd.f32 %v60, %v2263
    %v2265 = vpop.f32.mrb[0].mxu0
    %2266 = vdwg.mxu0
    %2267 = vrot.lane.b32.xlu0 %v2104, 96
    %v2268 = vpop.permute.xlu0 %2267
    %v2269 = vsel %vm239, %v2104, 0
    %v2271 = vsel %vm239, %v2268, 0
    %2273 = vmatprep.subr.mxu0 0.0
    %2274 = vmatpush1.xpose.msra.mxu0 %v2271
    %2275 = vmatprep.subr.mxu0 0.0
    %2276 = vmatpush1.xpose.msra.mxu0 0.0
    %2277 = vmatprep.subr.mxu0 0.0
    %2278 = vmatpush1.xpose.msra.mxu0 0.0
    %2279 = vmatprep.subr.mxu0 0.0
    %2280 = vmatpush1.xpose.msra.mxu0 0.0
    %2281 = vmatprep.subr.mxu0 0.0
    %2282 = vmatpush1.xpose.msra.mxu0 0.0
    %2283 = vmatprep.subr.mxu0 0.0
    %2284 = vmatpush1.xpose.msra.mxu0 0.0
    %2285 = vmatprep.subr.mxu0 0.0
    %2286 = vmatpush1.xpose.msra.mxu0 0.0
    %2287 = vmatprep.subr.mxu0 0.0
    %2288 = vmatpush1.xpose.msra.mxu0 0.0
    %2289 = vmatprep.subr.mxu0 0.0
    %2290 = vmatpush1.xpose.msra.mxu0 0.0
    %2291 = vmatprep.subr.mxu0 0.0
    %2292 = vmatpush1.xpose.msra.mxu0 0.0
    %2293 = vmatprep.subr.mxu0 0.0
    %2294 = vmatpush1.xpose.msra.mxu0 0.0
    %2295 = vmatprep.subr.mxu0 0.0
    %2296 = vmatpush1.xpose.msra.mxu0 0.0
    %2297 = vmatprep.subr.mxu0 0.0
    %2298 = vmatpush1.xpose.msra.mxu0 0.0
    %2299 = vmatprep.subr.mxu0 0.0
    %2300 = vmatpush1.xpose.msra.mxu0 0.0
    %2301 = vmatprep.subr.mxu0 0.0
    %2302 = vmatpush1.xpose.msra.mxu0 0.0
    %2303 = vmatprep.subr.mxu0 0.0
    %2304 = vmatpush1.xpose.msra.mxu0 0.0
    %2305 = vmatprep.subr.mxu0 0.0
    %2306 = vmatpush1.xpose.msra.mxu0 0.0
    %2307 = vmatprep.subr.mxu0 0.0
    %2308 = vmatpush1.xpose.msra.mxu0 0.0
    %2309 = vmatprep.subr.mxu0 0.0
    %2310 = vmatpush1.xpose.msra.mxu0 0.0
    %2311 = vmatprep.subr.mxu0 0.0
    %2312 = vmatpush1.xpose.msra.mxu0 0.0
    %2313 = vmatprep.subr.mxu0 0.0
    %2314 = vmatpush1.xpose.msra.mxu0 0.0
    %2315 = vmatprep.subr.mxu0 0.0
    %2316 = vmatpush1.xpose.msra.mxu0 0.0
    %2317 = vmatprep.subr.mxu0 0.0
    %2318 = vmatpush1.xpose.msra.mxu0 0.0
    %2319 = vmatprep.subr.mxu0 0.0
    %2320 = vmatpush1.xpose.msra.mxu0 0.0
    %2321 = vmatprep.subr.mxu0 0.0
    %2322 = vmatpush1.xpose.msra.mxu0 0.0
    %2323 = vmatprep.subr.mxu0 0.0
    %2324 = vmatpush1.xpose.msra.mxu0 0.0
    %2325 = vmatprep.subr.mxu0 0.0
    %2326 = vmatpush1.xpose.msra.mxu0 0.0
    %2327 = vmatprep.subr.mxu0 0.0
    %2328 = vmatpush1.xpose.msra.mxu0 0.0
    %2329 = vmatprep.subr.mxu0 0.0
    %2330 = vmatpush1.xpose.msra.mxu0 0.0
    %2331 = vmatprep.subr.mxu0 0.0
    %2332 = vmatpush1.xpose.msra.mxu0 0.0
    %2333 = vmatprep.subr.mxu0 0.0
    %2334 = vmatpush1.xpose.msra.mxu0 0.0
    %2335 = vmatprep.subr.mxu0 0.0
    %2336 = vmatpush1.xpose.msra.mxu0 0.0
    %2337 = vmatprep.mubr.f32.mxu0 0.0
    %2338 = vmatmul.mubr.f32.gmra.mrb[0].mxu0 %v2269
    %v2339 = vpop.f32.mrb[0].mxu0
    %v2340 = vadd.f32 %v61, %v2339
    %v2341 = vpop.f32.mrb[0].mxu0
    %2342 = vdwg.mxu0
    %2343 = vrot.lane.b32.xlu0 %v2106, 96
    %v2344 = vpop.permute.xlu0 %2343
    %v2345 = vsel %vm239, %v2106, 0
    %v2347 = vsel %vm239, %v2344, 0
    %2349 = vmatprep.subr.mxu0 0.0
    %2350 = vmatpush1.xpose.msra.mxu0 %v2347
    %2351 = vmatprep.subr.mxu0 0.0
    %2352 = vmatpush1.xpose.msra.mxu0 0.0
    %2353 = vmatprep.subr.mxu0 0.0
    %2354 = vmatpush1.xpose.msra.mxu0 0.0
    %2355 = vmatprep.subr.mxu0 0.0
    %2356 = vmatpush1.xpose.msra.mxu0 0.0
    %2357 = vmatprep.subr.mxu0 0.0
    %2358 = vmatpush1.xpose.msra.mxu0 0.0
    %2359 = vmatprep.subr.mxu0 0.0
    %2360 = vmatpush1.xpose.msra.mxu0 0.0
    %2361 = vmatprep.subr.mxu0 0.0
    %2362 = vmatpush1.xpose.msra.mxu0 0.0
    %2363 = vmatprep.subr.mxu0 0.0
    %2364 = vmatpush1.xpose.msra.mxu0 0.0
    %2365 = vmatprep.subr.mxu0 0.0
    %2366 = vmatpush1.xpose.msra.mxu0 0.0
    %2367 = vmatprep.subr.mxu0 0.0
    %2368 = vmatpush1.xpose.msra.mxu0 0.0
    %2369 = vmatprep.subr.mxu0 0.0
    %2370 = vmatpush1.xpose.msra.mxu0 0.0
    %2371 = vmatprep.subr.mxu0 0.0
    %2372 = vmatpush1.xpose.msra.mxu0 0.0
    %2373 = vmatprep.subr.mxu0 0.0
    %2374 = vmatpush1.xpose.msra.mxu0 0.0
    %2375 = vmatprep.subr.mxu0 0.0
    %2376 = vmatpush1.xpose.msra.mxu0 0.0
    %2377 = vmatprep.subr.mxu0 0.0
    %2378 = vmatpush1.xpose.msra.mxu0 0.0
    %2379 = vmatprep.subr.mxu0 0.0
    %2380 = vmatpush1.xpose.msra.mxu0 0.0
    %2381 = vmatprep.subr.mxu0 0.0
    %2382 = vmatpush1.xpose.msra.mxu0 0.0
    %2383 = vmatprep.subr.mxu0 0.0
    %2384 = vmatpush1.xpose.msra.mxu0 0.0
    %2385 = vmatprep.subr.mxu0 0.0
    %2386 = vmatpush1.xpose.msra.mxu0 0.0
    %2387 = vmatprep.subr.mxu0 0.0
    %2388 = vmatpush1.xpose.msra.mxu0 0.0
    %2389 = vmatprep.subr.mxu0 0.0
    %2390 = vmatpush1.xpose.msra.mxu0 0.0
    %2391 = vmatprep.subr.mxu0 0.0
    %2392 = vmatpush1.xpose.msra.mxu0 0.0
    %2393 = vmatprep.subr.mxu0 0.0
    %2394 = vmatpush1.xpose.msra.mxu0 0.0
    %2395 = vmatprep.subr.mxu0 0.0
    %2396 = vmatpush1.xpose.msra.mxu0 0.0
    %2397 = vmatprep.subr.mxu0 0.0
    %2398 = vmatpush1.xpose.msra.mxu0 0.0
    %2399 = vmatprep.subr.mxu0 0.0
    %2400 = vmatpush1.xpose.msra.mxu0 0.0
    %2401 = vmatprep.subr.mxu0 0.0
    %2402 = vmatpush1.xpose.msra.mxu0 0.0
    %2403 = vmatprep.subr.mxu0 0.0
    %2404 = vmatpush1.xpose.msra.mxu0 0.0
    %2405 = vmatprep.subr.mxu0 0.0
    %2406 = vmatpush1.xpose.msra.mxu0 0.0
    %2407 = vmatprep.subr.mxu0 0.0
    %2408 = vmatpush1.xpose.msra.mxu0 0.0
    %2409 = vmatprep.subr.mxu0 0.0
    %2410 = vmatpush1.xpose.msra.mxu0 0.0
    %2411 = vmatprep.subr.mxu0 0.0
    %2412 = vmatpush1.xpose.msra.mxu0 0.0
    %2413 = vmatprep.mubr.f32.mxu0 0.0
    %2414 = vmatmul.mubr.f32.gmra.mrb[0].mxu0 %v2345
    %v2415 = vpop.f32.mrb[0].mxu0
    %v2416 = vadd.f32 %v62, %v2415
    %v2417 = vpop.f32.mrb[0].mxu0
    %2418 = vdwg.mxu0
    %2419 = vrot.lane.b32.xlu0 %v2108, 96
    %v2420 = vpop.permute.xlu0 %2419
    %v2421 = vsel %vm239, %v2108, 0
    %v2423 = vsel %vm239, %v2420, 0
    %2425 = vmatprep.subr.mxu0 0.0
    %2426 = vmatpush1.xpose.msra.mxu0 %v2423
    %2427 = vmatprep.subr.mxu0 0.0
    %2428 = vmatpush1.xpose.msra.mxu0 0.0
    %2429 = vmatprep.subr.mxu0 0.0
    %2430 = vmatpush1.xpose.msra.mxu0 0.0
    %2431 = vmatprep.subr.mxu0 0.0
    %2432 = vmatpush1.xpose.msra.mxu0 0.0
    %2433 = vmatprep.subr.mxu0 0.0
    %2434 = vmatpush1.xpose.msra.mxu0 0.0
    %2435 = vmatprep.subr.mxu0 0.0
    %2436 = vmatpush1.xpose.msra.mxu0 0.0
    %2437 = vmatprep.subr.mxu0 0.0
    %2438 = vmatpush1.xpose.msra.mxu0 0.0
    %2439 = vmatprep.subr.mxu0 0.0
    %2440 = vmatpush1.xpose.msra.mxu0 0.0
    %2441 = vmatprep.subr.mxu0 0.0
    %2442 = vmatpush1.xpose.msra.mxu0 0.0
    %2443 = vmatprep.subr.mxu0 0.0
    %2444 = vmatpush1.xpose.msra.mxu0 0.0
    %2445 = vmatprep.subr.mxu0 0.0
    %2446 = vmatpush1.xpose.msra.mxu0 0.0
    %2447 = vmatprep.subr.mxu0 0.0
    %2448 = vmatpush1.xpose.msra.mxu0 0.0
    %2449 = vmatprep.subr.mxu0 0.0
    %2450 = vmatpush1.xpose.msra.mxu0 0.0
    %2451 = vmatprep.subr.mxu0 0.0
    %2452 = vmatpush1.xpose.msra.mxu0 0.0
    %2453 = vmatprep.subr.mxu0 0.0
    %2454 = vmatpush1.xpose.msra.mxu0 0.0
    %2455 = vmatprep.subr.mxu0 0.0
    %2456 = vmatpush1.xpose.msra.mxu0 0.0
    %2457 = vmatprep.subr.mxu0 0.0
    %2458 = vmatpush1.xpose.msra.mxu0 0.0
    %2459 = vmatprep.subr.mxu0 0.0
    %2460 = vmatpush1.xpose.msra.mxu0 0.0
    %2461 = vmatprep.subr.mxu0 0.0
    %2462 = vmatpush1.xpose.msra.mxu0 0.0
    %2463 = vmatprep.subr.mxu0 0.0
    %2464 = vmatpush1.xpose.msra.mxu0 0.0
    %2465 = vmatprep.subr.mxu0 0.0
    %2466 = vmatpush1.xpose.msra.mxu0 0.0
    %2467 = vmatprep.subr.mxu0 0.0
    %2468 = vmatpush1.xpose.msra.mxu0 0.0
    %2469 = vmatprep.subr.mxu0 0.0
    %2470 = vmatpush1.xpose.msra.mxu0 0.0
    %2471 = vmatprep.subr.mxu0 0.0
    %2472 = vmatpush1.xpose.msra.mxu0 0.0
    %2473 = vmatprep.subr.mxu0 0.0
    %2474 = vmatpush1.xpose.msra.mxu0 0.0
    %2475 = vmatprep.subr.mxu0 0.0
    %2476 = vmatpush1.xpose.msra.mxu0 0.0
    %2477 = vmatprep.subr.mxu0 0.0
    %2478 = vmatpush1.xpose.msra.mxu0 0.0
    %2479 = vmatprep.subr.mxu0 0.0
    %2480 = vmatpush1.xpose.msra.mxu0 0.0
    %2481 = vmatprep.subr.mxu0 0.0
    %2482 = vmatpush1.xpose.msra.mxu0 0.0
    %2483 = vmatprep.subr.mxu0 0.0
    %2484 = vmatpush1.xpose.msra.mxu0 0.0
    %2485 = vmatprep.subr.mxu0 0.0
    %2486 = vmatpush1.xpose.msra.mxu0 0.0
    %2487 = vmatprep.subr.mxu0 0.0
    %2488 = vmatpush1.xpose.msra.mxu0 0.0
    %2489 = vmatprep.mubr.f32.mxu0 0.0
    %2490 = vmatmul.mubr.f32.gmra.mrb[0].mxu0 %v2421
    %v2491 = vpop.f32.mrb[0].mxu0
    %v2492 = vadd.f32 %v63, %v2491
    %v2493 = vpop.f32.mrb[0].mxu0
    %2494 = vdwg.mxu0
    %2495 = vrot.lane.b32.xlu0 %v2110, 96
    %v2496 = vpop.permute.xlu0 %2495
    %v2497 = vsel %vm239, %v2110, 0
    %v2499 = vsel %vm239, %v2496, 0
    %2501 = vmatprep.subr.mxu0 0.0
    %2502 = vmatpush1.xpose.msra.mxu0 %v2499
    %2503 = vmatprep.subr.mxu0 0.0
    %2504 = vmatpush1.xpose.msra.mxu0 0.0
    %2505 = vmatprep.subr.mxu0 0.0
    %2506 = vmatpush1.xpose.msra.mxu0 0.0
    %2507 = vmatprep.subr.mxu0 0.0
    %2508 = vmatpush1.xpose.msra.mxu0 0.0
    %2509 = vmatprep.subr.mxu0 0.0
    %2510 = vmatpush1.xpose.msra.mxu0 0.0
    %2511 = vmatprep.subr.mxu0 0.0
    %2512 = vmatpush1.xpose.msra.mxu0 0.0
    %2513 = vmatprep.subr.mxu0 0.0
    %2514 = vmatpush1.xpose.msra.mxu0 0.0
    %2515 = vmatprep.subr.mxu0 0.0
    %2516 = vmatpush1.xpose.msra.mxu0 0.0
    %2517 = vmatprep.subr.mxu0 0.0
    %2518 = vmatpush1.xpose.msra.mxu0 0.0
    %2519 = vmatprep.subr.mxu0 0.0
    %2520 = vmatpush1.xpose.msra.mxu0 0.0
    %2521 = vmatprep.subr.mxu0 0.0
    %2522 = vmatpush1.xpose.msra.mxu0 0.0
    %2523 = vmatprep.subr.mxu0 0.0
    %2524 = vmatpush1.xpose.msra.mxu0 0.0
    %2525 = vmatprep.subr.mxu0 0.0
    %2526 = vmatpush1.xpose.msra.mxu0 0.0
    %2527 = vmatprep.subr.mxu0 0.0
    %2528 = vmatpush1.xpose.msra.mxu0 0.0
    %2529 = vmatprep.subr.mxu0 0.0
    %2530 = vmatpush1.xpose.msra.mxu0 0.0
    %2531 = vmatprep.subr.mxu0 0.0
    %2532 = vmatpush1.xpose.msra.mxu0 0.0
    %2533 = vmatprep.subr.mxu0 0.0
    %2534 = vmatpush1.xpose.msra.mxu0 0.0
    %2535 = vmatprep.subr.mxu0 0.0
    %2536 = vmatpush1.xpose.msra.mxu0 0.0
    %2537 = vmatprep.subr.mxu0 0.0
    %2538 = vmatpush1.xpose.msra.mxu0 0.0
    %2539 = vmatprep.subr.mxu0 0.0
    %2540 = vmatpush1.xpose.msra.mxu0 0.0
    %2541 = vmatprep.subr.mxu0 0.0
    %2542 = vmatpush1.xpose.msra.mxu0 0.0
    %2543 = vmatprep.subr.mxu0 0.0
    %2544 = vmatpush1.xpose.msra.mxu0 0.0
    %2545 = vmatprep.subr.mxu0 0.0
    %2546 = vmatpush1.xpose.msra.mxu0 0.0
    %2547 = vmatprep.subr.mxu0 0.0
    %2548 = vmatpush1.xpose.msra.mxu0 0.0
    %2549 = vmatprep.subr.mxu0 0.0
    %2550 = vmatpush1.xpose.msra.mxu0 0.0
    %2551 = vmatprep.subr.mxu0 0.0
    %2552 = vmatpush1.xpose.msra.mxu0 0.0
    %2553 = vmatprep.subr.mxu0 0.0
    %2554 = vmatpush1.xpose.msra.mxu0 0.0
    %2555 = vmatprep.subr.mxu0 0.0
    %2556 = vmatpush1.xpose.msra.mxu0 0.0
    %2557 = vmatprep.subr.mxu0 0.0
    %2558 = vmatpush1.xpose.msra.mxu0 0.0
    %2559 = vmatprep.subr.mxu0 0.0
    %2560 = vmatpush1.xpose.msra.mxu0 0.0
    %2561 = vmatprep.subr.mxu0 0.0
    %2562 = vmatpush1.xpose.msra.mxu0 0.0
    %2563 = vmatprep.subr.mxu0 0.0
    %2564 = vmatpush1.xpose.msra.mxu0 0.0
    %2565 = vmatprep.mubr.f32.mxu0 0.0
    %2566 = vmatmul.mubr.f32.gmra.mrb[0].mxu0 %v2497
    %v2567 = vpop.f32.mrb[0].mxu0
    %v2568 = vadd.f32 %v64, %v2567
    %v2569 = vpop.f32.mrb[0].mxu0
    %2570 = vdwg.mxu0
    %2571 = vrot.lane.b32.xlu0 %v2112, 96
    %v2572 = vpop.permute.xlu0 %2571
    %v2573 = vsel %vm239, %v2112, 0
    %v2575 = vsel %vm239, %v2572, 0
    %2577 = vmatprep.subr.mxu0 0.0
    %2578 = vmatpush1.xpose.msra.mxu0 %v2575
    %2579 = vmatprep.subr.mxu0 0.0
    %2580 = vmatpush1.xpose.msra.mxu0 0.0
    %2581 = vmatprep.subr.mxu0 0.0
    %2582 = vmatpush1.xpose.msra.mxu0 0.0
    %2583 = vmatprep.subr.mxu0 0.0
    %2584 = vmatpush1.xpose.msra.mxu0 0.0
    %2585 = vmatprep.subr.mxu0 0.0
    %2586 = vmatpush1.xpose.msra.mxu0 0.0
    %2587 = vmatprep.subr.mxu0 0.0
    %2588 = vmatpush1.xpose.msra.mxu0 0.0
    %2589 = vmatprep.subr.mxu0 0.0
    %2590 = vmatpush1.xpose.msra.mxu0 0.0
    %2591 = vmatprep.subr.mxu0 0.0
    %2592 = vmatpush1.xpose.msra.mxu0 0.0
    %2593 = vmatprep.subr.mxu0 0.0
    %2594 = vmatpush1.xpose.msra.mxu0 0.0
    %2595 = vmatprep.subr.mxu0 0.0
    %2596 = vmatpush1.xpose.msra.mxu0 0.0
    %2597 = vmatprep.subr.mxu0 0.0
    %2598 = vmatpush1.xpose.msra.mxu0 0.0
    %2599 = vmatprep.subr.mxu0 0.0
    %2600 = vmatpush1.xpose.msra.mxu0 0.0
    %2601 = vmatprep.subr.mxu0 0.0
    %2602 = vmatpush1.xpose.msra.mxu0 0.0
    %2603 = vmatprep.subr.mxu0 0.0
    %2604 = vmatpush1.xpose.msra.mxu0 0.0
    %2605 = vmatprep.subr.mxu0 0.0
    %2606 = vmatpush1.xpose.msra.mxu0 0.0
    %2607 = vmatprep.subr.mxu0 0.0
    %2608 = vmatpush1.xpose.msra.mxu0 0.0
    %2609 = vmatprep.subr.mxu0 0.0
    %2610 = vmatpush1.xpose.msra.mxu0 0.0
    %2611 = vmatprep.subr.mxu0 0.0
    %2612 = vmatpush1.xpose.msra.mxu0 0.0
    %2613 = vmatprep.subr.mxu0 0.0
    %2614 = vmatpush1.xpose.msra.mxu0 0.0
    %2615 = vmatprep.subr.mxu0 0.0
    %2616 = vmatpush1.xpose.msra.mxu0 0.0
    %2617 = vmatprep.subr.mxu0 0.0
    %2618 = vmatpush1.xpose.msra.mxu0 0.0
    %2619 = vmatprep.subr.mxu0 0.0
    %2620 = vmatpush1.xpose.msra.mxu0 0.0
    %2621 = vmatprep.subr.mxu0 0.0
    %2622 = vmatpush1.xpose.msra.mxu0 0.0
    %2623 = vmatprep.subr.mxu0 0.0
    %2624 = vmatpush1.xpose.msra.mxu0 0.0
    %2625 = vmatprep.subr.mxu0 0.0
    %2626 = vmatpush1.xpose.msra.mxu0 0.0
    %2627 = vmatprep.subr.mxu0 0.0
    %2628 = vmatpush1.xpose.msra.mxu0 0.0
    %2629 = vmatprep.subr.mxu0 0.0
    %2630 = vmatpush1.xpose.msra.mxu0 0.0
    %2631 = vmatprep.subr.mxu0 0.0
    %2632 = vmatpush1.xpose.msra.mxu0 0.0
    %2633 = vmatprep.subr.mxu0 0.0
    %2634 = vmatpush1.xpose.msra.mxu0 0.0
    %2635 = vmatprep.subr.mxu0 0.0
    %2636 = vmatpush1.xpose.msra.mxu0 0.0
    %2637 = vmatprep.subr.mxu0 0.0
    %2638 = vmatpush1.xpose.msra.mxu0 0.0
    %2639 = vmatprep.subr.mxu0 0.0
    %2640 = vmatpush1.xpose.msra.mxu0 0.0
    %2641 = vmatprep.mubr.f32.mxu0 0.0
    %2642 = vmatmul.mubr.f32.gmra.mrb[0].mxu0 %v2573
    %v2643 = vpop.f32.mrb[0].mxu0
    %v2644 = vadd.f32 %v65, %v2643
    %v2645 = vpop.f32.mrb[0].mxu0
    %2646 = vdwg.mxu0
    %2647 = vrot.lane.b32.xlu0 %v2114, 96
    %v2648 = vpop.permute.xlu0 %2647
    %v2649 = vsel %vm239, %v2114, 0
    %v2651 = vsel %vm239, %v2648, 0
    %2653 = vmatprep.subr.mxu0 0.0
    %2654 = vmatpush1.xpose.msra.mxu0 %v2651
    %2655 = vmatprep.subr.mxu0 0.0
    %2656 = vmatpush1.xpose.msra.mxu0 0.0
    %2657 = vmatprep.subr.mxu0 0.0
    %2658 = vmatpush1.xpose.msra.mxu0 0.0
    %2659 = vmatprep.subr.mxu0 0.0
    %2660 = vmatpush1.xpose.msra.mxu0 0.0
    %2661 = vmatprep.subr.mxu0 0.0
    %2662 = vmatpush1.xpose.msra.mxu0 0.0
    %2663 = vmatprep.subr.mxu0 0.0
    %2664 = vmatpush1.xpose.msra.mxu0 0.0
    %2665 = vmatprep.subr.mxu0 0.0
    %2666 = vmatpush1.xpose.msra.mxu0 0.0
    %2667 = vmatprep.subr.mxu0 0.0
    %2668 = vmatpush1.xpose.msra.mxu0 0.0
    %2669 = vmatprep.subr.mxu0 0.0
    %2670 = vmatpush1.xpose.msra.mxu0 0.0
    %2671 = vmatprep.subr.mxu0 0.0
    %2672 = vmatpush1.xpose.msra.mxu0 0.0
    %2673 = vmatprep.subr.mxu0 0.0
    %2674 = vmatpush1.xpose.msra.mxu0 0.0
    %2675 = vmatprep.subr.mxu0 0.0
    %2676 = vmatpush1.xpose.msra.mxu0 0.0
    %2677 = vmatprep.subr.mxu0 0.0
    %2678 = vmatpush1.xpose.msra.mxu0 0.0
    %2679 = vmatprep.subr.mxu0 0.0
    %2680 = vmatpush1.xpose.msra.mxu0 0.0
    %2681 = vmatprep.subr.mxu0 0.0
    %2682 = vmatpush1.xpose.msra.mxu0 0.0
    %2683 = vmatprep.subr.mxu0 0.0
    %2684 = vmatpush1.xpose.msra.mxu0 0.0
    %2685 = vmatprep.subr.mxu0 0.0
    %2686 = vmatpush1.xpose.msra.mxu0 0.0
    %2687 = vmatprep.subr.mxu0 0.0
    %2688 = vmatpush1.xpose.msra.mxu0 0.0
    %2689 = vmatprep.subr.mxu0 0.0
    %2690 = vmatpush1.xpose.msra.mxu0 0.0
    %2691 = vmatprep.subr.mxu0 0.0
    %2692 = vmatpush1.xpose.msra.mxu0 0.0
    %2693 = vmatprep.subr.mxu0 0.0
    %2694 = vmatpush1.xpose.msra.mxu0 0.0
    %2695 = vmatprep.subr.mxu0 0.0
    %2696 = vmatpush1.xpose.msra.mxu0 0.0
    %2697 = vmatprep.subr.mxu0 0.0
    %2698 = vmatpush1.xpose.msra.mxu0 0.0
    %2699 = vmatprep.subr.mxu0 0.0
    %2700 = vmatpush1.xpose.msra.mxu0 0.0
    %2701 = vmatprep.subr.mxu0 0.0
    %2702 = vmatpush1.xpose.msra.mxu0 0.0
    %2703 = vmatprep.subr.mxu0 0.0
    %2704 = vmatpush1.xpose.msra.mxu0 0.0
    %2705 = vmatprep.subr.mxu0 0.0
    %2706 = vmatpush1.xpose.msra.mxu0 0.0
    %2707 = vmatprep.subr.mxu0 0.0
    %2708 = vmatpush1.xpose.msra.mxu0 0.0
    %2709 = vmatprep.subr.mxu0 0.0
    %2710 = vmatpush1.xpose.msra.mxu0 0.0
    %2711 = vmatprep.subr.mxu0 0.0
    %2712 = vmatpush1.xpose.msra.mxu0 0.0
    %2713 = vmatprep.subr.mxu0 0.0
    %2714 = vmatpush1.xpose.msra.mxu0 0.0
    %2715 = vmatprep.subr.mxu0 0.0
    %2716 = vmatpush1.xpose.msra.mxu0 0.0
    %2717 = vmatprep.mubr.f32.mxu0 0.0
    %2718 = vmatmul.mubr.f32.gmra.mrb[0].mxu0 %v2649
    %v2719 = vpop.f32.mrb[0].mxu0
    %v2720 = vadd.f32 %v66, %v2719
    %v2721 = vpop.f32.mrb[0].mxu0
    %2722 = vdwg.mxu0
    %v2723 = vsel %vm239, %v2188, -inf
    %2724 = vmax.xlane.f32.xlu0 %v2723
    %v2725 = vpop.xlane.xlu0 %2724
    %v2726 = vsel %vm239, %v2264, -inf
    %2727 = vmax.xlane.f32.xlu0 %v2726
    %v2728 = vpop.xlane.xlu0 %2727
    %v2729 = vsel %vm239, %v2340, -inf
    %2730 = vmax.xlane.f32.xlu0 %v2729
    %v2731 = vpop.xlane.xlu0 %2730
    %v2732 = vsel %vm239, %v2416, -inf
    %2733 = vmax.xlane.f32.xlu0 %v2732
    %v2734 = vpop.xlane.xlu0 %2733
    %v2735 = vsel %vm239, %v2492, -inf
    %2736 = vmax.xlane.f32.xlu0 %v2735
    %v2737 = vpop.xlane.xlu0 %2736
    %v2738 = vsel %vm239, %v2568, -inf
    %2739 = vmax.xlane.f32.xlu0 %v2738
    %v2740 = vpop.xlane.xlu0 %2739
    %v2741 = vsel %vm239, %v2644, -inf
    %2742 = vmax.xlane.f32.xlu0 %v2741
    %v2743 = vpop.xlane.xlu0 %2742
    %v2744 = vsel %vm239, %v2720, -inf
    %2745 = vmax.xlane.f32.xlu0 %v2744
    %v2746 = vpop.xlane.xlu0 %2745
    %v2747 = vsub.f32 %v2188, %v2725
    %v2748 = vsub.f32 %v2264, %v2728
    %v2749 = vsub.f32 %v2340, %v2731
    %v2750 = vsub.f32 %v2416, %v2734
    %v2751 = vsub.f32 %v2492, %v2737
    %v2752 = vsub.f32 %v2568, %v2740
    %v2753 = vsub.f32 %v2644, %v2743
    %v2754 = vsub.f32 %v2720, %v2746
    %v2755 = vmul.f32 %v2747, 1.442695
    %v2756 = vpow.pop %v2755
    %v2757 = vmul.f32 %v2748, 1.442695
    %v2758 = vpow.pop %v2757
    %v2759 = vmul.f32 %v2749, 1.442695
    %v2760 = vpow.pop %v2759
    %v2761 = vmul.f32 %v2750, 1.442695
    %v2762 = vpow.pop %v2761
    %v2763 = vmul.f32 %v2751, 1.442695
    %v2764 = vpow.pop %v2763
    %v2765 = vmul.f32 %v2752, 1.442695
    %v2766 = vpow.pop %v2765
    %v2767 = vmul.f32 %v2753, 1.442695
    %v2768 = vpow.pop %v2767
    %v2769 = vmul.f32 %v2754, 1.442695
    %v2770 = vpow.pop %v2769
    %v2771 = vsel %vm239, %v2756, 0.0
    %2772 = vadd.xlane.f32.xlu0 %v2771
    %v2773 = vpop.xlane.xlu0 %2772
    %v2774 = vsel %vm239, %v2758, 0.0
    %2775 = vadd.xlane.f32.xlu0 %v2774
    %v2776 = vpop.xlane.xlu0 %2775
    %v2777 = vsel %vm239, %v2760, 0.0
    %2778 = vadd.xlane.f32.xlu0 %v2777
    %v2779 = vpop.xlane.xlu0 %2778
    %v2780 = vsel %vm239, %v2762, 0.0
    %2781 = vadd.xlane.f32.xlu0 %v2780
    %v2782 = vpop.xlane.xlu0 %2781
    %v2783 = vsel %vm239, %v2764, 0.0
    %2784 = vadd.xlane.f32.xlu0 %v2783
    %v2785 = vpop.xlane.xlu0 %2784
    %v2786 = vsel %vm239, %v2766, 0.0
    %2787 = vadd.xlane.f32.xlu0 %v2786
    %v2788 = vpop.xlane.xlu0 %2787
    %v2789 = vsel %vm239, %v2768, 0.0
    %2790 = vadd.xlane.f32.xlu0 %v2789
    %v2791 = vpop.xlane.xlu0 %2790
    %v2792 = vsel %vm239, %v2770, 0.0
    %2793 = vadd.xlane.f32.xlu0 %v2792
    %v2794 = vpop.xlane.xlu0 %2793
    %v2795 = vrcp.pop %v2773
    %v2796 = vrcp.pop %v2776
    %v2797 = vrcp.pop %v2779
    %v2798 = vrcp.pop %v2782
    %v2799 = vrcp.pop %v2785
    %v2800 = vrcp.pop %v2788
    %v2801 = vrcp.pop %v2791
    %v2802 = vrcp.pop %v2794
    %v2803 = vmul.f32 %v2756, %v2795
    %v2804 = vmul.f32 %v2758, %v2796
    %v2805 = vmul.f32 %v2760, %v2797
    %v2806 = vmul.f32 %v2762, %v2798
    %v2807 = vmul.f32 %v2764, %v2799
    %v2808 = vmul.f32 %v2766, %v2800
    %v2809 = vmul.f32 %v2768, %v2801
    %v2810 = vmul.f32 %v2770, %v2802
    %2811 = vrot.lane.b32.xlu0 %v2093, 64
    %v2812 = vpop.permute.xlu0 %2811
    %v2815 = vsel %vm239, %v2803, 0
    %2817 = vmatprep.subr.mxu0 0.0
    %2818 = vmatpush1.msra.mxu0 %v2812
    %2819 = vmatprep.subr.mxu0 0.0
    %2820 = vmatpush1.msra.mxu0 0.0
    %2821 = vmatprep.subr.mxu0 0.0
    %2822 = vmatpush1.msra.mxu0 0.0
    %2823 = vmatprep.subr.mxu0 0.0
    %2824 = vmatpush1.msra.mxu0 0.0
    %2825 = vmatprep.subr.mxu0 0.0
    %2826 = vmatpush1.msra.mxu0 0.0
    %2827 = vmatprep.subr.mxu0 0.0
    %2828 = vmatpush1.msra.mxu0 0.0
    %2829 = vmatprep.subr.mxu0 0.0
    %2830 = vmatpush1.msra.mxu0 0.0
    %2831 = vmatprep.subr.mxu0 0.0
    %2832 = vmatpush1.msra.mxu0 0.0
    %2833 = vmatprep.subr.mxu0 0.0
    %2834 = vmatpush1.msra.mxu0 0.0
    %2835 = vmatprep.subr.mxu0 0.0
    %2836 = vmatpush1.msra.mxu0 0.0
    %2837 = vmatprep.subr.mxu0 0.0
    %2838 = vmatpush1.msra.mxu0 0.0
    %2839 = vmatprep.subr.mxu0 0.0
    %2840 = vmatpush1.msra.mxu0 0.0
    %2841 = vmatprep.subr.mxu0 0.0
    %2842 = vmatpush1.msra.mxu0 0.0
    %2843 = vmatprep.subr.mxu0 0.0
    %2844 = vmatpush1.msra.mxu0 0.0
    %2845 = vmatprep.subr.mxu0 0.0
    %2846 = vmatpush1.msra.mxu0 0.0
    %2847 = vmatprep.subr.mxu0 0.0
    %2848 = vmatpush1.msra.mxu0 0.0
    %2849 = vmatprep.subr.mxu0 0.0
    %2850 = vmatpush1.msra.mxu0 0.0
    %2851 = vmatprep.subr.mxu0 0.0
    %2852 = vmatpush1.msra.mxu0 0.0
    %2853 = vmatprep.subr.mxu0 0.0
    %2854 = vmatpush1.msra.mxu0 0.0
    %2855 = vmatprep.subr.mxu0 0.0
    %2856 = vmatpush1.msra.mxu0 0.0
    %2857 = vmatprep.subr.mxu0 0.0
    %2858 = vmatpush1.msra.mxu0 0.0
    %2859 = vmatprep.subr.mxu0 0.0
    %2860 = vmatpush1.msra.mxu0 0.0
    %2861 = vmatprep.subr.mxu0 0.0
    %2862 = vmatpush1.msra.mxu0 0.0
    %2863 = vmatprep.subr.mxu0 0.0
    %2864 = vmatpush1.msra.mxu0 0.0
    %2865 = vmatprep.subr.mxu0 0.0
    %2866 = vmatpush1.msra.mxu0 0.0
    %2867 = vmatprep.subr.mxu0 0.0
    %2868 = vmatpush1.msra.mxu0 0.0
    %2869 = vmatprep.subr.mxu0 0.0
    %2870 = vmatpush1.msra.mxu0 0.0
    %2871 = vmatprep.subr.mxu0 0.0
    %2872 = vmatpush1.msra.mxu0 0.0
    %2873 = vmatprep.subr.mxu0 0.0
    %2874 = vmatpush1.msra.mxu0 0.0
    %2875 = vmatprep.subr.mxu0 0.0
    %2876 = vmatpush1.msra.mxu0 0.0
    %2877 = vmatprep.subr.mxu0 0.0
    %2878 = vmatpush1.msra.mxu0 0.0
    %2879 = vmatprep.subr.mxu0 0.0
    %2880 = vmatpush1.msra.mxu0 0.0
    %2881 = vmatprep.mubr.f32.mxu0 0.0
    %2882 = vmatmul.mubr.f32.gmra.mrb[0].mxu0 %v2815
    %v2883 = vpop.f32.mrb[0].mxu0
    %v2884 = vadd.f32 0.0, %v2883
    %v2885 = vpop.f32.mrb[0].mxu0
    %2886 = vdwg.mxu0
    %2887 = vrot.lane.b32.xlu0 %v2098, 64
    %v2888 = vpop.permute.xlu0 %2887
    %v2891 = vsel %vm239, %v2804, 0
    %2893 = vmatprep.subr.mxu0 0.0
    %2894 = vmatpush1.msra.mxu0 %v2888
    %2895 = vmatprep.subr.mxu0 0.0
    %2896 = vmatpush1.msra.mxu0 0.0
    %2897 = vmatprep.subr.mxu0 0.0
    %2898 = vmatpush1.msra.mxu0 0.0
    %2899 = vmatprep.subr.mxu0 0.0
    %2900 = vmatpush1.msra.mxu0 0.0
    %2901 = vmatprep.subr.mxu0 0.0
    %2902 = vmatpush1.msra.mxu0 0.0
    %2903 = vmatprep.subr.mxu0 0.0
    %2904 = vmatpush1.msra.mxu0 0.0
    %2905 = vmatprep.subr.mxu0 0.0
    %2906 = vmatpush1.msra.mxu0 0.0
    %2907 = vmatprep.subr.mxu0 0.0
    %2908 = vmatpush1.msra.mxu0 0.0
    %2909 = vmatprep.subr.mxu0 0.0
    %2910 = vmatpush1.msra.mxu0 0.0
    %2911 = vmatprep.subr.mxu0 0.0
    %2912 = vmatpush1.msra.mxu0 0.0
    %2913 = vmatprep.subr.mxu0 0.0
    %2914 = vmatpush1.msra.mxu0 0.0
    %2915 = vmatprep.subr.mxu0 0.0
    %2916 = vmatpush1.msra.mxu0 0.0
    %2917 = vmatprep.subr.mxu0 0.0
    %2918 = vmatpush1.msra.mxu0 0.0
    %2919 = vmatprep.subr.mxu0 0.0
    %2920 = vmatpush1.msra.mxu0 0.0
    %2921 = vmatprep.subr.mxu0 0.0
    %2922 = vmatpush1.msra.mxu0 0.0
    %2923 = vmatprep.subr.mxu0 0.0
    %2924 = vmatpush1.msra.mxu0 0.0
    %2925 = vmatprep.subr.mxu0 0.0
    %2926 = vmatpush1.msra.mxu0 0.0
    %2927 = vmatprep.subr.mxu0 0.0
    %2928 = vmatpush1.msra.mxu0 0.0
    %2929 = vmatprep.subr.mxu0 0.0
    %2930 = vmatpush1.msra.mxu0 0.0
    %2931 = vmatprep.subr.mxu0 0.0
    %2932 = vmatpush1.msra.mxu0 0.0
    %2933 = vmatprep.subr.mxu0 0.0
    %2934 = vmatpush1.msra.mxu0 0.0
    %2935 = vmatprep.subr.mxu0 0.0
    %2936 = vmatpush1.msra.mxu0 0.0
    %2937 = vmatprep.subr.mxu0 0.0
    %2938 = vmatpush1.msra.mxu0 0.0
    %2939 = vmatprep.subr.mxu0 0.0
    %2940 = vmatpush1.msra.mxu0 0.0
    %2941 = vmatprep.subr.mxu0 0.0
    %2942 = vmatpush1.msra.mxu0 0.0
    %2943 = vmatprep.subr.mxu0 0.0
    %2944 = vmatpush1.msra.mxu0 0.0
    %2945 = vmatprep.subr.mxu0 0.0
    %2946 = vmatpush1.msra.mxu0 0.0
    %2947 = vmatprep.subr.mxu0 0.0
    %2948 = vmatpush1.msra.mxu0 0.0
    %2949 = vmatprep.subr.mxu0 0.0
    %2950 = vmatpush1.msra.mxu0 0.0
    %2951 = vmatprep.subr.mxu0 0.0
    %2952 = vmatpush1.msra.mxu0 0.0
    %2953 = vmatprep.subr.mxu0 0.0
    %2954 = vmatpush1.msra.mxu0 0.0
    %2955 = vmatprep.subr.mxu0 0.0
    %2956 = vmatpush1.msra.mxu0 0.0
    %2957 = vmatprep.mubr.f32.mxu0 0.0
    %2958 = vmatmul.mubr.f32.gmra.mrb[0].mxu0 %v2891
    %v2959 = vpop.f32.mrb[0].mxu0
    %v2960 = vadd.f32 0.0, %v2959
    %v2961 = vpop.f32.mrb[0].mxu0
    %2962 = vdwg.mxu0
    %2963 = vrot.lane.b32.xlu0 %v2104, 64
    %v2964 = vpop.permute.xlu0 %2963
    %v2967 = vsel %vm239, %v2805, 0
    %2969 = vmatprep.subr.mxu0 0.0
    %2970 = vmatpush1.msra.mxu0 %v2964
    %2971 = vmatprep.subr.mxu0 0.0
    %2972 = vmatpush1.msra.mxu0 0.0
    %2973 = vmatprep.subr.mxu0 0.0
    %2974 = vmatpush1.msra.mxu0 0.0
    %2975 = vmatprep.subr.mxu0 0.0
    %2976 = vmatpush1.msra.mxu0 0.0
    %2977 = vmatprep.subr.mxu0 0.0
    %2978 = vmatpush1.msra.mxu0 0.0
    %2979 = vmatprep.subr.mxu0 0.0
    %2980 = vmatpush1.msra.mxu0 0.0
    %2981 = vmatprep.subr.mxu0 0.0
    %2982 = vmatpush1.msra.mxu0 0.0
    %2983 = vmatprep.subr.mxu0 0.0
    %2984 = vmatpush1.msra.mxu0 0.0
    %2985 = vmatprep.subr.mxu0 0.0
    %2986 = vmatpush1.msra.mxu0 0.0
    %2987 = vmatprep.subr.mxu0 0.0
    %2988 = vmatpush1.msra.mxu0 0.0
    %2989 = vmatprep.subr.mxu0 0.0
    %2990 = vmatpush1.msra.mxu0 0.0
    %2991 = vmatprep.subr.mxu0 0.0
    %2992 = vmatpush1.msra.mxu0 0.0
    %2993 = vmatprep.subr.mxu0 0.0
    %2994 = vmatpush1.msra.mxu0 0.0
    %2995 = vmatprep.subr.mxu0 0.0
    %2996 = vmatpush1.msra.mxu0 0.0
    %2997 = vmatprep.subr.mxu0 0.0
    %2998 = vmatpush1.msra.mxu0 0.0
    %2999 = vmatprep.subr.mxu0 0.0
    %3000 = vmatpush1.msra.mxu0 0.0
    %3001 = vmatprep.subr.mxu0 0.0
    %3002 = vmatpush1.msra.mxu0 0.0
    %3003 = vmatprep.subr.mxu0 0.0
    %3004 = vmatpush1.msra.mxu0 0.0
    %3005 = vmatprep.subr.mxu0 0.0
    %3006 = vmatpush1.msra.mxu0 0.0
    %3007 = vmatprep.subr.mxu0 0.0
    %3008 = vmatpush1.msra.mxu0 0.0
    %3009 = vmatprep.subr.mxu0 0.0
    %3010 = vmatpush1.msra.mxu0 0.0
    %3011 = vmatprep.subr.mxu0 0.0
    %3012 = vmatpush1.msra.mxu0 0.0
    %3013 = vmatprep.subr.mxu0 0.0
    %3014 = vmatpush1.msra.mxu0 0.0
    %3015 = vmatprep.subr.mxu0 0.0
    %3016 = vmatpush1.msra.mxu0 0.0
    %3017 = vmatprep.subr.mxu0 0.0
    %3018 = vmatpush1.msra.mxu0 0.0
    %3019 = vmatprep.subr.mxu0 0.0
    %3020 = vmatpush1.msra.mxu0 0.0
    %3021 = vmatprep.subr.mxu0 0.0
    %3022 = vmatpush1.msra.mxu0 0.0
    %3023 = vmatprep.subr.mxu0 0.0
    %3024 = vmatpush1.msra.mxu0 0.0
    %3025 = vmatprep.subr.mxu0 0.0
    %3026 = vmatpush1.msra.mxu0 0.0
    %3027 = vmatprep.subr.mxu0 0.0
    %3028 = vmatpush1.msra.mxu0 0.0
    %3029 = vmatprep.subr.mxu0 0.0
    %3030 = vmatpush1.msra.mxu0 0.0
    %3031 = vmatprep.subr.mxu0 0.0
    %3032 = vmatpush1.msra.mxu0 0.0
    %3033 = vmatprep.mubr.f32.mxu0 0.0
    %3034 = vmatmul.mubr.f32.gmra.mrb[0].mxu0 %v2967
    %v3035 = vpop.f32.mrb[0].mxu0
    %v3036 = vadd.f32 0.0, %v3035
    %v3037 = vpop.f32.mrb[0].mxu0
    %3038 = vdwg.mxu0
    %3039 = vrot.lane.b32.xlu0 %v2106, 64
    %v3040 = vpop.permute.xlu0 %3039
    %v3043 = vsel %vm239, %v2806, 0
    %3045 = vmatprep.subr.mxu0 0.0
    %3046 = vmatpush1.msra.mxu0 %v3040
    %3047 = vmatprep.subr.mxu0 0.0
    %3048 = vmatpush1.msra.mxu0 0.0
    %3049 = vmatprep.subr.mxu0 0.0
    %3050 = vmatpush1.msra.mxu0 0.0
    %3051 = vmatprep.subr.mxu0 0.0
    %3052 = vmatpush1.msra.mxu0 0.0
    %3053 = vmatprep.subr.mxu0 0.0
    %3054 = vmatpush1.msra.mxu0 0.0
    %3055 = vmatprep.subr.mxu0 0.0
    %3056 = vmatpush1.msra.mxu0 0.0
    %3057 = vmatprep.subr.mxu0 0.0
    %3058 = vmatpush1.msra.mxu0 0.0
    %3059 = vmatprep.subr.mxu0 0.0
    %3060 = vmatpush1.msra.mxu0 0.0
    %3061 = vmatprep.subr.mxu0 0.0
    %3062 = vmatpush1.msra.mxu0 0.0
    %3063 = vmatprep.subr.mxu0 0.0
    %3064 = vmatpush1.msra.mxu0 0.0
    %3065 = vmatprep.subr.mxu0 0.0
    %3066 = vmatpush1.msra.mxu0 0.0
    %3067 = vmatprep.subr.mxu0 0.0
    %3068 = vmatpush1.msra.mxu0 0.0
    %3069 = vmatprep.subr.mxu0 0.0
    %3070 = vmatpush1.msra.mxu0 0.0
    %3071 = vmatprep.subr.mxu0 0.0
    %3072 = vmatpush1.msra.mxu0 0.0
    %3073 = vmatprep.subr.mxu0 0.0
    %3074 = vmatpush1.msra.mxu0 0.0
    %3075 = vmatprep.subr.mxu0 0.0
    %3076 = vmatpush1.msra.mxu0 0.0
    %3077 = vmatprep.subr.mxu0 0.0
    %3078 = vmatpush1.msra.mxu0 0.0
    %3079 = vmatprep.subr.mxu0 0.0
    %3080 = vmatpush1.msra.mxu0 0.0
    %3081 = vmatprep.subr.mxu0 0.0
    %3082 = vmatpush1.msra.mxu0 0.0
    %3083 = vmatprep.subr.mxu0 0.0
    %3084 = vmatpush1.msra.mxu0 0.0
    %3085 = vmatprep.subr.mxu0 0.0
    %3086 = vmatpush1.msra.mxu0 0.0
    %3087 = vmatprep.subr.mxu0 0.0
    %3088 = vmatpush1.msra.mxu0 0.0
    %3089 = vmatprep.subr.mxu0 0.0
    %3090 = vmatpush1.msra.mxu0 0.0
    %3091 = vmatprep.subr.mxu0 0.0
    %3092 = vmatpush1.msra.mxu0 0.0
    %3093 = vmatprep.subr.mxu0 0.0
    %3094 = vmatpush1.msra.mxu0 0.0
    %3095 = vmatprep.subr.mxu0 0.0
    %3096 = vmatpush1.msra.mxu0 0.0
    %3097 = vmatprep.subr.mxu0 0.0
    %3098 = vmatpush1.msra.mxu0 0.0
    %3099 = vmatprep.subr.mxu0 0.0
    %3100 = vmatpush1.msra.mxu0 0.0
    %3101 = vmatprep.subr.mxu0 0.0
    %3102 = vmatpush1.msra.mxu0 0.0
    %3103 = vmatprep.subr.mxu0 0.0
    %3104 = vmatpush1.msra.mxu0 0.0
    %3105 = vmatprep.subr.mxu0 0.0
    %3106 = vmatpush1.msra.mxu0 0.0
    %3107 = vmatprep.subr.mxu0 0.0
    %3108 = vmatpush1.msra.mxu0 0.0
    %3109 = vmatprep.mubr.f32.mxu0 0.0
    %3110 = vmatmul.mubr.f32.gmra.mrb[0].mxu0 %v3043
    %v3111 = vpop.f32.mrb[0].mxu0
    %v3112 = vadd.f32 0.0, %v3111
    %v3113 = vpop.f32.mrb[0].mxu0
    %3114 = vdwg.mxu0
    %3115 = vrot.lane.b32.xlu0 %v2108, 64
    %v3116 = vpop.permute.xlu0 %3115
    %v3119 = vsel %vm239, %v2807, 0
    %3121 = vmatprep.subr.mxu0 0.0
    %3122 = vmatpush1.msra.mxu0 %v3116
    %3123 = vmatprep.subr.mxu0 0.0
    %3124 = vmatpush1.msra.mxu0 0.0
    %3125 = vmatprep.subr.mxu0 0.0
    %3126 = vmatpush1.msra.mxu0 0.0
    %3127 = vmatprep.subr.mxu0 0.0
    %3128 = vmatpush1.msra.mxu0 0.0
    %3129 = vmatprep.subr.mxu0 0.0
    %3130 = vmatpush1.msra.mxu0 0.0
    %3131 = vmatprep.subr.mxu0 0.0
    %3132 = vmatpush1.msra.mxu0 0.0
    %3133 = vmatprep.subr.mxu0 0.0
    %3134 = vmatpush1.msra.mxu0 0.0
    %3135 = vmatprep.subr.mxu0 0.0
    %3136 = vmatpush1.msra.mxu0 0.0
    %3137 = vmatprep.subr.mxu0 0.0
    %3138 = vmatpush1.msra.mxu0 0.0
    %3139 = vmatprep.subr.mxu0 0.0
    %3140 = vmatpush1.msra.mxu0 0.0
    %3141 = vmatprep.subr.mxu0 0.0
    %3142 = vmatpush1.msra.mxu0 0.0
    %3143 = vmatprep.subr.mxu0 0.0
    %3144 = vmatpush1.msra.mxu0 0.0
    %3145 = vmatprep.subr.mxu0 0.0
    %3146 = vmatpush1.msra.mxu0 0.0
    %3147 = vmatprep.subr.mxu0 0.0
    %3148 = vmatpush1.msra.mxu0 0.0
    %3149 = vmatprep.subr.mxu0 0.0
    %3150 = vmatpush1.msra.mxu0 0.0
    %3151 = vmatprep.subr.mxu0 0.0
    %3152 = vmatpush1.msra.mxu0 0.0
    %3153 = vmatprep.subr.mxu0 0.0
    %3154 = vmatpush1.msra.mxu0 0.0
    %3155 = vmatprep.subr.mxu0 0.0
    %3156 = vmatpush1.msra.mxu0 0.0
    %3157 = vmatprep.subr.mxu0 0.0
    %3158 = vmatpush1.msra.mxu0 0.0
    %3159 = vmatprep.subr.mxu0 0.0
    %3160 = vmatpush1.msra.mxu0 0.0
    %3161 = vmatprep.subr.mxu0 0.0
    %3162 = vmatpush1.msra.mxu0 0.0
    %3163 = vmatprep.subr.mxu0 0.0
    %3164 = vmatpush1.msra.mxu0 0.0
    %3165 = vmatprep.subr.mxu0 0.0
    %3166 = vmatpush1.msra.mxu0 0.0
    %3167 = vmatprep.subr.mxu0 0.0
    %3168 = vmatpush1.msra.mxu0 0.0
    %3169 = vmatprep.subr.mxu0 0.0
    %3170 = vmatpush1.msra.mxu0 0.0
    %3171 = vmatprep.subr.mxu0 0.0
    %3172 = vmatpush1.msra.mxu0 0.0
    %3173 = vmatprep.subr.mxu0 0.0
    %3174 = vmatpush1.msra.mxu0 0.0
    %3175 = vmatprep.subr.mxu0 0.0
    %3176 = vmatpush1.msra.mxu0 0.0
    %3177 = vmatprep.subr.mxu0 0.0
    %3178 = vmatpush1.msra.mxu0 0.0
    %3179 = vmatprep.subr.mxu0 0.0
    %3180 = vmatpush1.msra.mxu0 0.0
    %3181 = vmatprep.subr.mxu0 0.0
    %3182 = vmatpush1.msra.mxu0 0.0
    %3183 = vmatprep.subr.mxu0 0.0
    %3184 = vmatpush1.msra.mxu0 0.0
    %3185 = vmatprep.mubr.f32.mxu0 0.0
    %3186 = vmatmul.mubr.f32.gmra.mrb[0].mxu0 %v3119
    %v3187 = vpop.f32.mrb[0].mxu0
    %v3188 = vadd.f32 0.0, %v3187
    %v3189 = vpop.f32.mrb[0].mxu0
    %3190 = vdwg.mxu0
    %3191 = vrot.lane.b32.xlu0 %v2110, 64
    %v3192 = vpop.permute.xlu0 %3191
    %v3195 = vsel %vm239, %v2808, 0
    %3197 = vmatprep.subr.mxu0 0.0
    %3198 = vmatpush1.msra.mxu0 %v3192
    %3199 = vmatprep.subr.mxu0 0.0
    %3200 = vmatpush1.msra.mxu0 0.0
    %3201 = vmatprep.subr.mxu0 0.0
    %3202 = vmatpush1.msra.mxu0 0.0
    %3203 = vmatprep.subr.mxu0 0.0
    %3204 = vmatpush1.msra.mxu0 0.0
    %3205 = vmatprep.subr.mxu0 0.0
    %3206 = vmatpush1.msra.mxu0 0.0
    %3207 = vmatprep.subr.mxu0 0.0
    %3208 = vmatpush1.msra.mxu0 0.0
    %3209 = vmatprep.subr.mxu0 0.0
    %3210 = vmatpush1.msra.mxu0 0.0
    %3211 = vmatprep.subr.mxu0 0.0
    %3212 = vmatpush1.msra.mxu0 0.0
    %3213 = vmatprep.subr.mxu0 0.0
    %3214 = vmatpush1.msra.mxu0 0.0
    %3215 = vmatprep.subr.mxu0 0.0
    %3216 = vmatpush1.msra.mxu0 0.0
    %3217 = vmatprep.subr.mxu0 0.0
    %3218 = vmatpush1.msra.mxu0 0.0
    %3219 = vmatprep.subr.mxu0 0.0
    %3220 = vmatpush1.msra.mxu0 0.0
    %3221 = vmatprep.subr.mxu0 0.0
    %3222 = vmatpush1.msra.mxu0 0.0
    %3223 = vmatprep.subr.mxu0 0.0
    %3224 = vmatpush1.msra.mxu0 0.0
    %3225 = vmatprep.subr.mxu0 0.0
    %3226 = vmatpush1.msra.mxu0 0.0
    %3227 = vmatprep.subr.mxu0 0.0
    %3228 = vmatpush1.msra.mxu0 0.0
    %3229 = vmatprep.subr.mxu0 0.0
    %3230 = vmatpush1.msra.mxu0 0.0
    %3231 = vmatprep.subr.mxu0 0.0
    %3232 = vmatpush1.msra.mxu0 0.0
    %3233 = vmatprep.subr.mxu0 0.0
    %3234 = vmatpush1.msra.mxu0 0.0
    %3235 = vmatprep.subr.mxu0 0.0
    %3236 = vmatpush1.msra.mxu0 0.0
    %3237 = vmatprep.subr.mxu0 0.0
    %3238 = vmatpush1.msra.mxu0 0.0
    %3239 = vmatprep.subr.mxu0 0.0
    %3240 = vmatpush1.msra.mxu0 0.0
    %3241 = vmatprep.subr.mxu0 0.0
    %3242 = vmatpush1.msra.mxu0 0.0
    %3243 = vmatprep.subr.mxu0 0.0
    %3244 = vmatpush1.msra.mxu0 0.0
    %3245 = vmatprep.subr.mxu0 0.0
    %3246 = vmatpush1.msra.mxu0 0.0
    %3247 = vmatprep.subr.mxu0 0.0
    %3248 = vmatpush1.msra.mxu0 0.0
    %3249 = vmatprep.subr.mxu0 0.0
    %3250 = vmatpush1.msra.mxu0 0.0
    %3251 = vmatprep.subr.mxu0 0.0
    %3252 = vmatpush1.msra.mxu0 0.0
    %3253 = vmatprep.subr.mxu0 0.0
    %3254 = vmatpush1.msra.mxu0 0.0
    %3255 = vmatprep.subr.mxu0 0.0
    %3256 = vmatpush1.msra.mxu0 0.0
    %3257 = vmatprep.subr.mxu0 0.0
    %3258 = vmatpush1.msra.mxu0 0.0
    %3259 = vmatprep.subr.mxu0 0.0
    %3260 = vmatpush1.msra.mxu0 0.0
    %3261 = vmatprep.mubr.f32.mxu0 0.0
    %3262 = vmatmul.mubr.f32.gmra.mrb[0].mxu0 %v3195
    %v3263 = vpop.f32.mrb[0].mxu0
    %v3264 = vadd.f32 0.0, %v3263
    %v3265 = vpop.f32.mrb[0].mxu0
    %3266 = vdwg.mxu0
    %3267 = vrot.lane.b32.xlu0 %v2112, 64
    %v3268 = vpop.permute.xlu0 %3267
    %v3271 = vsel %vm239, %v2809, 0
    %3273 = vmatprep.subr.mxu0 0.0
    %3274 = vmatpush1.msra.mxu0 %v3268
    %3275 = vmatprep.subr.mxu0 0.0
    %3276 = vmatpush1.msra.mxu0 0.0
    %3277 = vmatprep.subr.mxu0 0.0
    %3278 = vmatpush1.msra.mxu0 0.0
    %3279 = vmatprep.subr.mxu0 0.0
    %3280 = vmatpush1.msra.mxu0 0.0
    %3281 = vmatprep.subr.mxu0 0.0
    %3282 = vmatpush1.msra.mxu0 0.0
    %3283 = vmatprep.subr.mxu0 0.0
    %3284 = vmatpush1.msra.mxu0 0.0
    %3285 = vmatprep.subr.mxu0 0.0
    %3286 = vmatpush1.msra.mxu0 0.0
    %3287 = vmatprep.subr.mxu0 0.0
    %3288 = vmatpush1.msra.mxu0 0.0
    %3289 = vmatprep.subr.mxu0 0.0
    %3290 = vmatpush1.msra.mxu0 0.0
    %3291 = vmatprep.subr.mxu0 0.0
    %3292 = vmatpush1.msra.mxu0 0.0
    %3293 = vmatprep.subr.mxu0 0.0
    %3294 = vmatpush1.msra.mxu0 0.0
    %3295 = vmatprep.subr.mxu0 0.0
    %3296 = vmatpush1.msra.mxu0 0.0
    %3297 = vmatprep.subr.mxu0 0.0
    %3298 = vmatpush1.msra.mxu0 0.0
    %3299 = vmatprep.subr.mxu0 0.0
    %3300 = vmatpush1.msra.mxu0 0.0
    %3301 = vmatprep.subr.mxu0 0.0
    %3302 = vmatpush1.msra.mxu0 0.0
    %3303 = vmatprep.subr.mxu0 0.0
    %3304 = vmatpush1.msra.mxu0 0.0
    %3305 = vmatprep.subr.mxu0 0.0
    %3306 = vmatpush1.msra.mxu0 0.0
    %3307 = vmatprep.subr.mxu0 0.0
    %3308 = vmatpush1.msra.mxu0 0.0
    %3309 = vmatprep.subr.mxu0 0.0
    %3310 = vmatpush1.msra.mxu0 0.0
    %3311 = vmatprep.subr.mxu0 0.0
    %3312 = vmatpush1.msra.mxu0 0.0
    %3313 = vmatprep.subr.mxu0 0.0
    %3314 = vmatpush1.msra.mxu0 0.0
    %3315 = vmatprep.subr.mxu0 0.0
    %3316 = vmatpush1.msra.mxu0 0.0
    %3317 = vmatprep.subr.mxu0 0.0
    %3318 = vmatpush1.msra.mxu0 0.0
    %3319 = vmatprep.subr.mxu0 0.0
    %3320 = vmatpush1.msra.mxu0 0.0
    %3321 = vmatprep.subr.mxu0 0.0
    %3322 = vmatpush1.msra.mxu0 0.0
    %3323 = vmatprep.subr.mxu0 0.0
    %3324 = vmatpush1.msra.mxu0 0.0
    %3325 = vmatprep.subr.mxu0 0.0
    %3326 = vmatpush1.msra.mxu0 0.0
    %3327 = vmatprep.subr.mxu0 0.0
    %3328 = vmatpush1.msra.mxu0 0.0
    %3329 = vmatprep.subr.mxu0 0.0
    %3330 = vmatpush1.msra.mxu0 0.0
    %3331 = vmatprep.subr.mxu0 0.0
    %3332 = vmatpush1.msra.mxu0 0.0
    %3333 = vmatprep.subr.mxu0 0.0
    %3334 = vmatpush1.msra.mxu0 0.0
    %3335 = vmatprep.subr.mxu0 0.0
    %3336 = vmatpush1.msra.mxu0 0.0
    %3337 = vmatprep.mubr.f32.mxu0 0.0
    %3338 = vmatmul.mubr.f32.gmra.mrb[0].mxu0 %v3271
    %v3339 = vpop.f32.mrb[0].mxu0
    %v3340 = vadd.f32 0.0, %v3339
    %v3341 = vpop.f32.mrb[0].mxu0
    %3342 = vdwg.mxu0
    %3343 = vrot.lane.b32.xlu0 %v2114, 64
    %v3344 = vpop.permute.xlu0 %3343
    %v3347 = vsel %vm239, %v2810, 0
    %3349 = vmatprep.subr.mxu0 0.0
    %3350 = vmatpush1.msra.mxu0 %v3344
    %3351 = vmatprep.subr.mxu0 0.0
    %3352 = vmatpush1.msra.mxu0 0.0
    %3353 = vmatprep.subr.mxu0 0.0
    %3354 = vmatpush1.msra.mxu0 0.0
    %3355 = vmatprep.subr.mxu0 0.0
    %3356 = vmatpush1.msra.mxu0 0.0
    %3357 = vmatprep.subr.mxu0 0.0
    %3358 = vmatpush1.msra.mxu0 0.0
    %3359 = vmatprep.subr.mxu0 0.0
    %3360 = vmatpush1.msra.mxu0 0.0
    %3361 = vmatprep.subr.mxu0 0.0
    %3362 = vmatpush1.msra.mxu0 0.0
    %3363 = vmatprep.subr.mxu0 0.0
    %3364 = vmatpush1.msra.mxu0 0.0
    %3365 = vmatprep.subr.mxu0 0.0
    %3366 = vmatpush1.msra.mxu0 0.0
    %3367 = vmatprep.subr.mxu0 0.0
    %3368 = vmatpush1.msra.mxu0 0.0
    %3369 = vmatprep.subr.mxu0 0.0
    %3370 = vmatpush1.msra.mxu0 0.0
    %3371 = vmatprep.subr.mxu0 0.0
    %3372 = vmatpush1.msra.mxu0 0.0
    %3373 = vmatprep.subr.mxu0 0.0
    %3374 = vmatpush1.msra.mxu0 0.0
    %3375 = vmatprep.subr.mxu0 0.0
    %3376 = vmatpush1.msra.mxu0 0.0
    %3377 = vmatprep.subr.mxu0 0.0
    %3378 = vmatpush1.msra.mxu0 0.0
    %3379 = vmatprep.subr.mxu0 0.0
    %3380 = vmatpush1.msra.mxu0 0.0
    %3381 = vmatprep.subr.mxu0 0.0
    %3382 = vmatpush1.msra.mxu0 0.0
    %3383 = vmatprep.subr.mxu0 0.0
    %3384 = vmatpush1.msra.mxu0 0.0
    %3385 = vmatprep.subr.mxu0 0.0
    %3386 = vmatpush1.msra.mxu0 0.0
    %3387 = vmatprep.subr.mxu0 0.0
    %3388 = vmatpush1.msra.mxu0 0.0
    %3389 = vmatprep.subr.mxu0 0.0
    %3390 = vmatpush1.msra.mxu0 0.0
    %3391 = vmatprep.subr.mxu0 0.0
    %3392 = vmatpush1.msra.mxu0 0.0
    %3393 = vmatprep.subr.mxu0 0.0
    %3394 = vmatpush1.msra.mxu0 0.0
    %3395 = vmatprep.subr.mxu0 0.0
    %3396 = vmatpush1.msra.mxu0 0.0
    %3397 = vmatprep.subr.mxu0 0.0
    %3398 = vmatpush1.msra.mxu0 0.0
    %3399 = vmatprep.subr.mxu0 0.0
    %3400 = vmatpush1.msra.mxu0 0.0
    %3401 = vmatprep.subr.mxu0 0.0
    %3402 = vmatpush1.msra.mxu0 0.0
    %3403 = vmatprep.subr.mxu0 0.0
    %3404 = vmatpush1.msra.mxu0 0.0
    %3405 = vmatprep.subr.mxu0 0.0
    %3406 = vmatpush1.msra.mxu0 0.0
    %3407 = vmatprep.subr.mxu0 0.0
    %3408 = vmatpush1.msra.mxu0 0.0
    %3409 = vmatprep.subr.mxu0 0.0
    %3410 = vmatpush1.msra.mxu0 0.0
    %3411 = vmatprep.subr.mxu0 0.0
    %3412 = vmatpush1.msra.mxu0 0.0
    %3413 = vmatprep.mubr.f32.mxu0 0.0
    %3414 = vmatmul.mubr.f32.gmra.mrb[0].mxu0 %v3347
    %v3415 = vpop.f32.mrb[0].mxu0
    %v3416 = vadd.f32 0.0, %v3415
    %v3417 = vpop.f32.mrb[0].mxu0
    %3418 = vdwg.mxu0
    %3419 = vst.msk [vmem:[#allocation2] sm:$0xff] %vm239, %v2884
    %3420 = vst.msk [vmem:[#allocation2 + $0x8] sm:$0xff] %vm239, %v2960
    %3423 = vrot.lane.b32.xlu0 %v3036, 8
    %v3424 = vpop.permute.xlu0 %3423
    %3425 = vrot.lane.b32.xlu0 %v3112, 8
    %v3426 = vpop.permute.xlu0 %3425
    %3429 = vst.msk [vmem:[#allocation2] sm:$0xff] %vm1552, %v3424
    %3430 = vst.msk [vmem:[#allocation2 + $0x8] sm:$0xff] %vm1552, %v3426
    %3433 = vrot.lane.b32.xlu0 %v3188, 16
    %v3434 = vpop.permute.xlu0 %3433
    %3435 = vrot.lane.b32.xlu0 %v3264, 16
    %v3436 = vpop.permute.xlu0 %3435
    %3439 = vst.msk [vmem:[#allocation2] sm:$0xff] %vm1563, %v3434
    %3440 = vst.msk [vmem:[#allocation2 + $0x8] sm:$0xff] %vm1563, %v3436
    %3443 = vrot.lane.b32.xlu0 %v3340, 24
    %v3444 = vpop.permute.xlu0 %3443
    %3445 = vrot.lane.b32.xlu0 %v3416, 24
    %v3446 = vpop.permute.xlu0 %3445
    %3449 = vst.msk [vmem:[#allocation2] sm:$0xff] %vm1574, %v3444
    %3450 = vst.msk [vmem:[#allocation2 + $0x8] sm:$0xff] %vm1574, %v3446
    %v3451 = vld [vmem:[#allocation2] sm:$0xff]
    %v3452 = vld [vmem:[#allocation2 + $0x8] sm:$0xff]
    %3457 = vrot.lane.b32.xlu0 %v1949, 32
    %v3458 = vpop.permute.xlu0 %3457
    %3459 = vrot.lane.b32.xlu0 %v1951, 32
    %v3460 = vpop.permute.xlu0 %3459
    %3461 = vrot.lane.b32.xlu0 %v1953, 32
    %v3462 = vpop.permute.xlu0 %3461
    %3463 = vrot.lane.b32.xlu0 %v1955, 32
    %v3464 = vpop.permute.xlu0 %3463
    %v3470 = vsel %vm84, %v3451, 0
    %v3473 = vsel %vm84, %v3452, 0
    %3475 = vmatprep.subr.mxu0 0.0
    %3476 = vmatpush1.msra.mxu0 %v3458
    %3477 = vmatprep.subr.mxu0 0.0
    %3478 = vmatpush1.msra.mxu0 %v3460
    %3479 = vmatprep.subr.mxu0 0.0
    %3480 = vmatpush1.msra.mxu0 %v3462
    %3481 = vmatprep.subr.mxu0 0.0
    %3482 = vmatpush1.msra.mxu0 %v3464
    %3483 = vmatprep.subr.mxu0 0.0
    %3484 = vmatpush1.msra.mxu0 0.0
    %3485 = vmatprep.subr.mxu0 0.0
    %3486 = vmatpush1.msra.mxu0 0.0
    %3487 = vmatprep.subr.mxu0 0.0
    %3488 = vmatpush1.msra.mxu0 0.0
    %3489 = vmatprep.subr.mxu0 0.0
    %3490 = vmatpush1.msra.mxu0 0.0
    %3491 = vmatprep.subr.mxu0 0.0
    %3492 = vmatpush1.msra.mxu0 0.0
    %3493 = vmatprep.subr.mxu0 0.0
    %3494 = vmatpush1.msra.mxu0 0.0
    %3495 = vmatprep.subr.mxu0 0.0
    %3496 = vmatpush1.msra.mxu0 0.0
    %3497 = vmatprep.subr.mxu0 0.0
    %3498 = vmatpush1.msra.mxu0 0.0
    %3499 = vmatprep.subr.mxu0 0.0
    %3500 = vmatpush1.msra.mxu0 0.0
    %3501 = vmatprep.subr.mxu0 0.0
    %3502 = vmatpush1.msra.mxu0 0.0
    %3503 = vmatprep.subr.mxu0 0.0
    %3504 = vmatpush1.msra.mxu0 0.0
    %3505 = vmatprep.subr.mxu0 0.0
    %3506 = vmatpush1.msra.mxu0 0.0
    %3507 = vmatprep.subr.mxu0 0.0
    %3508 = vmatpush1.msra.mxu0 0.0
    %3509 = vmatprep.subr.mxu0 0.0
    %3510 = vmatpush1.msra.mxu0 0.0
    %3511 = vmatprep.subr.mxu0 0.0
    %3512 = vmatpush1.msra.mxu0 0.0
    %3513 = vmatprep.subr.mxu0 0.0
    %3514 = vmatpush1.msra.mxu0 0.0
    %3515 = vmatprep.subr.mxu0 0.0
    %3516 = vmatpush1.msra.mxu0 0.0
    %3517 = vmatprep.subr.mxu0 0.0
    %3518 = vmatpush1.msra.mxu0 0.0
    %3519 = vmatprep.subr.mxu0 0.0
    %3520 = vmatpush1.msra.mxu0 0.0
    %3521 = vmatprep.subr.mxu0 0.0
    %3522 = vmatpush1.msra.mxu0 0.0
    %3523 = vmatprep.subr.mxu0 0.0
    %3524 = vmatpush1.msra.mxu0 0.0
    %3525 = vmatprep.subr.mxu0 0.0
    %3526 = vmatpush1.msra.mxu0 0.0
    %3527 = vmatprep.subr.mxu0 0.0
    %3528 = vmatpush1.msra.mxu0 0.0
    %3529 = vmatprep.subr.mxu0 0.0
    %3530 = vmatpush1.msra.mxu0 0.0
    %3531 = vmatprep.subr.mxu0 0.0
    %3532 = vmatpush1.msra.mxu0 0.0
    %3533 = vmatprep.subr.mxu0 0.0
    %3534 = vmatpush1.msra.mxu0 0.0
    %3535 = vmatprep.subr.mxu0 0.0
    %3536 = vmatpush1.msra.mxu0 0.0
    %3537 = vmatprep.subr.mxu0 0.0
    %3538 = vmatpush1.msra.mxu0 0.0
    %3539 = vmatprep.mubr.f32.mxu0 0.0
    %3540 = vmatmul.mubr.f32.gmra.mrb[0].mxu0 %v3470
    %v3541 = vpop.f32.mrb[0].mxu0
    %v3542 = vadd.f32 0.0, %v3541
    %v3543 = vpop.f32.mrb[0].mxu0
    %3544 = vmatprep.mubr.f32.mxu0 0.0
    %3545 = vmatmul.mubr.f32.gmra.mrb[0].mxu0 %v3473
    %v3546 = vpop.f32.mrb[0].mxu0
    %v3547 = vadd.f32 0.0, %v3546
    %v3548 = vpop.f32.mrb[0].mxu0
    %3549 = vdwg.mxu0
    %v3550 = vadd.f32 %v1946, %v3542
    %v3551 = vadd.f32 %v1947, %v3547
    %v3552 = vlaneseq
    %v3553 = vshrl.u32 %v3552, 7
    %v3554 = vsub.s32 0, %v3553
    %v3555 = vrot.slane %v1962, %v3554
    %v3556 = vadd.f32 %v3550, %v3555
    %v3557 = vadd.f32 %v3551, %v3555
    %v3558 = vsel %vm84, %v3556, 0.0
    %3559 = vadd.xlane.f32.xlu0 %v3558
    %v3560 = vpop.xlane.xlu0 %3559
    %v3561 = vsel %vm84, %v3557, 0.0
    %3562 = vadd.xlane.f32.xlu0 %v3561
    %v3563 = vpop.xlane.xlu0 %3562
    %v3564 = vmul.f32 %v3560, %v91
    %v3565 = vmul.f32 %v3563, %v91
    %v3566 = vsub.f32 %v3556, %v3564
    %v3567 = vsub.f32 %v3557, %v3565
    %v3568 = vmul.f32 %v3566, %v3566
    %v3569 = vmul.f32 %v3567, %v3567
    %v3570 = vsel %vm84, %v3568, 0.0
    %3571 = vadd.xlane.f32.xlu0 %v3570
    %v3572 = vpop.xlane.xlu0 %3571
    %v3573 = vsel %vm84, %v3569, 0.0
    %3574 = vadd.xlane.f32.xlu0 %v3573
    %v3575 = vpop.xlane.xlu0 %3574
    %v3576 = vmul.f32 %v3572, 0.032258064
    %v3577 = vmul.f32 %v3575, 0.032258064
    %v3578 = vrsqrt.pop %v3576
    %v3579 = vmul.f32 %v3576, %v3578
    %vm3580 = vcmp.eq.f32.partialorder %v3576, inf
    %v3581 = vsel %vm3580, %v3576, %v3579
    %vm3582 = vcmp.eq.f32.partialorder %v3576, 0.0
    %v3583 = vand.u32 %v3576, 2147483648
    %v3584 = vsel %vm3582, %v3583, %v3581
    %v3585 = vrsqrt.pop %v3577
    %v3586 = vmul.f32 %v3577, %v3585
    %vm3587 = vcmp.eq.f32.partialorder %v3577, inf
    %v3588 = vsel %vm3587, %v3577, %v3586
    %vm3589 = vcmp.eq.f32.partialorder %v3577, 0.0
    %v3590 = vand.u32 %v3577, 2147483648
    %v3591 = vsel %vm3589, %v3590, %v3588
    %v3592 = vadd.f32 %v3584, 1e-06
    %v3593 = vadd.f32 %v3591, 1e-06
    %v3594 = vrcp.pop %v3592
    %v3595 = vmul.f32 %v3566, %v3594
    %v3596 = vrcp.pop %v3593
    %v3597 = vmul.f32 %v3567, %v3596
    %3600 = vrot.lane.b32.xlu0 %v3595, 64
    %v3601 = vpop.permute.xlu0 %3600
    %3602 = vrot.lane.b32.xlu0 %v3597, 64
    %v3603 = vpop.permute.xlu0 %3602
    %v3606 = vmul.f32 %v2007, %v3601
    %v3607 = vmul.f32 %v2007, %v3603
    %v3608 = vadd.f32 %v3606, %v2012
    %v3609 = vadd.f32 %v3607, %v2012
    %3612 = vrot.lane.b32.xlu0 %v3608, 64
    %v3613 = vpop.permute.xlu0 %3612
    %3614 = vrot.lane.b32.xlu0 %v3609, 64
    %v3615 = vpop.permute.xlu0 %3614
    %3617 = vrot.lane.b32.xlu0 %v3555, 96
    %v3618 = vpop.permute.xlu0 %3617
    %v3620 = vsel %vm84, %v3613, 0
    %v3622 = vsel %vm84, %v3615, 0
    %3624 = vmatprep.subr.mxu0 0.0
    %3625 = vmatpush1.msra.mxu0 %v1950
    %3626 = vmatprep.subr.mxu0 0.0
    %3627 = vmatpush1.msra.mxu0 %v1952
    %3628 = vmatprep.subr.mxu0 0.0
    %3629 = vmatpush1.msra.mxu0 %v1954
    %3630 = vmatprep.subr.mxu0 0.0
    %3631 = vmatpush1.msra.mxu0 %v1956
    %3632 = vmatprep.subr.mxu0 0.0
    %3633 = vmatpush1.msra.mxu0 0.0
    %3634 = vmatprep.subr.mxu0 0.0
    %3635 = vmatpush1.msra.mxu0 0.0
    %3636 = vmatprep.subr.mxu0 0.0
    %3637 = vmatpush1.msra.mxu0 0.0
    %3638 = vmatprep.subr.mxu0 0.0
    %3639 = vmatpush1.msra.mxu0 0.0
    %3640 = vmatprep.subr.mxu0 0.0
    %3641 = vmatpush1.msra.mxu0 0.0
    %3642 = vmatprep.subr.mxu0 0.0
    %3643 = vmatpush1.msra.mxu0 0.0
    %3644 = vmatprep.subr.mxu0 0.0
    %3645 = vmatpush1.msra.mxu0 0.0
    %3646 = vmatprep.subr.mxu0 0.0
    %3647 = vmatpush1.msra.mxu0 0.0
    %3648 = vmatprep.subr.mxu0 0.0
    %3649 = vmatpush1.msra.mxu0 0.0
    %3650 = vmatprep.subr.mxu0 0.0
    %3651 = vmatpush1.msra.mxu0 0.0
    %3652 = vmatprep.subr.mxu0 0.0
    %3653 = vmatpush1.msra.mxu0 0.0
    %3654 = vmatprep.subr.mxu0 0.0
    %3655 = vmatpush1.msra.mxu0 0.0
    %3656 = vmatprep.subr.mxu0 0.0
    %3657 = vmatpush1.msra.mxu0 0.0
    %3658 = vmatprep.subr.mxu0 0.0
    %3659 = vmatpush1.msra.mxu0 0.0
    %3660 = vmatprep.subr.mxu0 0.0
    %3661 = vmatpush1.msra.mxu0 0.0
    %3662 = vmatprep.subr.mxu0 0.0
    %3663 = vmatpush1.msra.mxu0 0.0
    %3664 = vmatprep.subr.mxu0 0.0
    %3665 = vmatpush1.msra.mxu0 0.0
    %3666 = vmatprep.subr.mxu0 0.0
    %3667 = vmatpush1.msra.mxu0 0.0
    %3668 = vmatprep.subr.mxu0 0.0
    %3669 = vmatpush1.msra.mxu0 0.0
    %3670 = vmatprep.subr.mxu0 0.0
    %3671 = vmatpush1.msra.mxu0 0.0
    %3672 = vmatprep.subr.mxu0 0.0
    %3673 = vmatpush1.msra.mxu0 0.0
    %3674 = vmatprep.subr.mxu0 0.0
    %3675 = vmatpush1.msra.mxu0 0.0
    %3676 = vmatprep.subr.mxu0 0.0
    %3677 = vmatpush1.msra.mxu0 0.0
    %3678 = vmatprep.subr.mxu0 0.0
    %3679 = vmatpush1.msra.mxu0 0.0
    %3680 = vmatprep.subr.mxu0 0.0
    %3681 = vmatpush1.msra.mxu0 0.0
    %3682 = vmatprep.subr.mxu0 0.0
    %3683 = vmatpush1.msra.mxu0 0.0
    %3684 = vmatprep.subr.mxu0 0.0
    %3685 = vmatpush1.msra.mxu0 0.0
    %3686 = vmatprep.subr.mxu0 0.0
    %3687 = vmatpush1.msra.mxu0 0.0
    %3688 = vmatprep.mubr.f32.mxu0 0.0
    %3689 = vmatmul.mubr.f32.gmra.mrb[0].mxu0 %v3620
    %v3690 = vpop.f32.mrb[0].mxu0
    %v3691 = vadd.f32 %v3618, %v3690
    %v3692 = vpop.f32.mrb[0].mxu0
    %3693 = vmatprep.mubr.f32.mxu0 0.0
    %3694 = vmatmul.mubr.f32.gmra.mrb[0].mxu0 %v3622
    %v3695 = vpop.f32.mrb[0].mxu0
    %v3696 = vadd.f32 %v3618, %v3695
    %v3697 = vpop.f32.mrb[0].mxu0
    %3698 = vdwg.mxu0
    %v3699 = vmax.f32 %v3691, 0.0
    %v3700 = vmax.f32 %v3696, 0.0
    %3709 = vrot.lane.b32.xlu0 %v1950, 64
    %v3710 = vpop.permute.xlu0 %3709
    %3711 = vrot.lane.b32.xlu0 %v1952, 64
    %v3712 = vpop.permute.xlu0 %3711
    %3713 = vrot.lane.b32.xlu0 %v1954, 64
    %v3714 = vpop.permute.xlu0 %3713
    %3715 = vrot.lane.b32.xlu0 %v1956, 64
    %v3716 = vpop.permute.xlu0 %3715
    %3717 = vrot.lane.b32.xlu0 %v1957, 64
    %v3718 = vpop.permute.xlu0 %3717
    %3719 = vrot.lane.b32.xlu0 %v1958, 64
    %v3720 = vpop.permute.xlu0 %3719
    %3721 = vrot.lane.b32.xlu0 %v1959, 64
    %v3722 = vpop.permute.xlu0 %3721
    %3723 = vrot.lane.b32.xlu0 %v1960, 64
    %v3724 = vpop.permute.xlu0 %3723
    %v3734 = vsel %vm1859, %v3699, 0
    %v3737 = vsel %vm1859, %v3700, 0
    %3739 = vmatprep.subr.mxu0 0.0
    %3740 = vmatpush1.msra.mxu0 %v3710
    %3741 = vmatprep.subr.mxu0 0.0
    %3742 = vmatpush1.msra.mxu0 %v3712
    %3743 = vmatprep.subr.mxu0 0.0
    %3744 = vmatpush1.msra.mxu0 %v3714
    %3745 = vmatprep.subr.mxu0 0.0
    %3746 = vmatpush1.msra.mxu0 %v3716
    %3747 = vmatprep.subr.mxu0 0.0
    %3748 = vmatpush1.msra.mxu0 %v3718
    %3749 = vmatprep.subr.mxu0 0.0
    %3750 = vmatpush1.msra.mxu0 %v3720
    %3751 = vmatprep.subr.mxu0 0.0
    %3752 = vmatpush1.msra.mxu0 %v3722
    %3753 = vmatprep.subr.mxu0 0.0
    %3754 = vmatpush1.msra.mxu0 %v3724
    %3755 = vmatprep.subr.mxu0 0.0
    %3756 = vmatpush1.msra.mxu0 0.0
    %3757 = vmatprep.subr.mxu0 0.0
    %3758 = vmatpush1.msra.mxu0 0.0
    %3759 = vmatprep.subr.mxu0 0.0
    %3760 = vmatpush1.msra.mxu0 0.0
    %3761 = vmatprep.subr.mxu0 0.0
    %3762 = vmatpush1.msra.mxu0 0.0
    %3763 = vmatprep.subr.mxu0 0.0
    %3764 = vmatpush1.msra.mxu0 0.0
    %3765 = vmatprep.subr.mxu0 0.0
    %3766 = vmatpush1.msra.mxu0 0.0
    %3767 = vmatprep.subr.mxu0 0.0
    %3768 = vmatpush1.msra.mxu0 0.0
    %3769 = vmatprep.subr.mxu0 0.0
    %3770 = vmatpush1.msra.mxu0 0.0
    %3771 = vmatprep.subr.mxu0 0.0
    %3772 = vmatpush1.msra.mxu0 0.0
    %3773 = vmatprep.subr.mxu0 0.0
    %3774 = vmatpush1.msra.mxu0 0.0
    %3775 = vmatprep.subr.mxu0 0.0
    %3776 = vmatpush1.msra.mxu0 0.0
    %3777 = vmatprep.subr.mxu0 0.0
    %3778 = vmatpush1.msra.mxu0 0.0
    %3779 = vmatprep.subr.mxu0 0.0
    %3780 = vmatpush1.msra.mxu0 0.0
    %3781 = vmatprep.subr.mxu0 0.0
    %3782 = vmatpush1.msra.mxu0 0.0
    %3783 = vmatprep.subr.mxu0 0.0
    %3784 = vmatpush1.msra.mxu0 0.0
    %3785 = vmatprep.subr.mxu0 0.0
    %3786 = vmatpush1.msra.mxu0 0.0
    %3787 = vmatprep.subr.mxu0 0.0
    %3788 = vmatpush1.msra.mxu0 0.0
    %3789 = vmatprep.subr.mxu0 0.0
    %3790 = vmatpush1.msra.mxu0 0.0
    %3791 = vmatprep.subr.mxu0 0.0
    %3792 = vmatpush1.msra.mxu0 0.0
    %3793 = vmatprep.subr.mxu0 0.0
    %3794 = vmatpush1.msra.mxu0 0.0
    %3795 = vmatprep.subr.mxu0 0.0
    %3796 = vmatpush1.msra.mxu0 0.0
    %3797 = vmatprep.subr.mxu0 0.0
    %3798 = vmatpush1.msra.mxu0 0.0
    %3799 = vmatprep.subr.mxu0 0.0
    %3800 = vmatpush1.msra.mxu0 0.0
    %3801 = vmatprep.subr.mxu0 0.0
    %3802 = vmatpush1.msra.mxu0 0.0
    %3803 = vmatprep.mubr.f32.mxu0 0.0
    %3804 = vmatmul.mubr.f32.gmra.mrb[0].mxu0 %v3734
    %v3805 = vpop.f32.mrb[0].mxu0
    %v3806 = vadd.f32 0.0, %v3805
    %v3807 = vpop.f32.mrb[0].mxu0
    %3808 = vmatprep.mubr.f32.mxu0 0.0
    %3809 = vmatmul.mubr.f32.gmra.mrb[0].mxu0 %v3737
    %v3810 = vpop.f32.mrb[0].mxu0
    %v3811 = vadd.f32 0.0, %v3810
    %v3812 = vpop.f32.mrb[0].mxu0
    %3813 = vdwg.mxu0
    %v3814 = vadd.f32 %v3556, %v3806
    %v3815 = vadd.f32 %v3557, %v3811
    %3816 = vrot.lane.b32.xlu0 %v3555, 32
    %v3817 = vpop.permute.xlu0 %3816
    %v3819 = vadd.f32 %v3814, %v3817
    %v3820 = vadd.f32 %v3815, %v3817
    %v3821 = vld [vmem:[%s3 + $0x6] sm:$0x1]
    %v3822 = vsel %vm84, %v3819, 0.0
    %3823 = vadd.xlane.f32.xlu0 %v3822
    %v3824 = vpop.xlane.xlu0 %3823
    %v3825 = vsel %vm84, %v3820, 0.0
    %3826 = vadd.xlane.f32.xlu0 %v3825
    %v3827 = vpop.xlane.xlu0 %3826
    %v3828 = vmul.f32 %v3824, %v91
    %v3829 = vmul.f32 %v3827, %v91
    %v3830 = vsub.f32 %v3819, %v3828
    %v3831 = vsub.f32 %v3820, %v3829
    %v3832 = vmul.f32 %v3830, %v3830
    %v3833 = vmul.f32 %v3831, %v3831
    %v3834 = vsel %vm84, %v3832, 0.0
    %3835 = vadd.xlane.f32.xlu0 %v3834
    %v3836 = vpop.xlane.xlu0 %3835
    %v3837 = vsel %vm84, %v3833, 0.0
    %3838 = vadd.xlane.f32.xlu0 %v3837
    %v3839 = vpop.xlane.xlu0 %3838
    %v3840 = vmul.f32 %v3836, 0.032258064
    %v3841 = vmul.f32 %v3839, 0.032258064
    %v3842 = vrsqrt.pop %v3840
    %v3843 = vmul.f32 %v3840, %v3842
    %vm3844 = vcmp.eq.f32.partialorder %v3840, inf
    %v3845 = vsel %vm3844, %v3840, %v3843
    %vm3846 = vcmp.eq.f32.partialorder %v3840, 0.0
    %v3847 = vand.u32 %v3840, 2147483648
    %v3848 = vsel %vm3846, %v3847, %v3845
    %v3849 = vrsqrt.pop %v3841
    %v3850 = vmul.f32 %v3841, %v3849
    %vm3851 = vcmp.eq.f32.partialorder %v3841, inf
    %v3852 = vsel %vm3851, %v3841, %v3850
    %vm3853 = vcmp.eq.f32.partialorder %v3841, 0.0
    %v3854 = vand.u32 %v3841, 2147483648
    %v3855 = vsel %vm3853, %v3854, %v3852
    %v3856 = vadd.f32 %v3848, 1e-06
    %v3857 = vadd.f32 %v3855, 1e-06
    %v3858 = vrcp.pop %v3856
    %v3859 = vmul.f32 %v3830, %v3858
    %v3860 = vrcp.pop %v3857
    %v3861 = vmul.f32 %v3831, %v3860
    %v3862 = vlaneseq
    %v3863 = vshrl.u32 %v3862, 7
    %v3864 = vsub.s32 0, %v3863
    %v3865 = vrot.slane %v3821, %v3864
    %v3866 = vmul.f32 %v3865, %v3859
    %v3867 = vmul.f32 %v3865, %v3861
    %3869 = vrot.lane.b32.xlu0 %v3865, 96
    %v3870 = vpop.permute.xlu0 %3869
    %v3872 = vadd.f32 %v3866, %v3870
    %v3873 = vadd.f32 %v3867, %v3870
    %v3874 = vlaneseq
    %v3875 = vshrl.u32 %v3874, 7
    %v3876 = vadd.s32 %v3875, 8
    %v3877 = vadd.s32 %v3875, 16
    %v3878 = vadd.s32 %v3875, 24
    %v3879 = vlaneseq
    %v3880 = vand.u32 %v3879, 127
    %vm3881 = vcmp.eq.s32.totalorder %v3875, %v3880
    %vm3882 = vcmp.eq.s32.totalorder %v3876, %v3880
    %vm3883 = vcmp.eq.s32.totalorder %v3877, %v3880
    %vm3884 = vcmp.eq.s32.totalorder %v3878, %v3880
    %v3885 = vsel %vm3881, 1, 0
    %v3886 = vsel %vm3882, 1, 0
    %v3887 = vsel %vm3883, 1, 0
    %v3888 = vsel %vm3884, 1, 0
    %v3889 = vcvt.s32.f32 %v3885
    %v3890 = vcvt.s32.f32 %v3886
    %v3891 = vcvt.s32.f32 %v3887
    %v3892 = vcvt.s32.f32 %v3888
    %v3894 = vsel %vm84, %v3872, 0
    %v3897 = vsel %vm84, %v3873, 0
    %3899 = vmatprep.subr.mxu0 0.0
    %3900 = vmatpush1.msra.mxu0 %v3889
    %3901 = vmatprep.subr.mxu0 0.0
    %3902 = vmatpush1.msra.mxu0 %v3890
    %3903 = vmatprep.subr.mxu0 0.0
    %3904 = vmatpush1.msra.mxu0 %v3891
    %3905 = vmatprep.subr.mxu0 0.0
    %3906 = vmatpush1.msra.mxu0 %v3892
    %3907 = vmatprep.subr.mxu0 0.0
    %3908 = vmatpush1.msra.mxu0 0.0
    %3909 = vmatprep.subr.mxu0 0.0
    %3910 = vmatpush1.msra.mxu0 0.0
    %3911 = vmatprep.subr.mxu0 0.0
    %3912 = vmatpush1.msra.mxu0 0.0
    %3913 = vmatprep.subr.mxu0 0.0
    %3914 = vmatpush1.msra.mxu0 0.0
    %3915 = vmatprep.subr.mxu0 0.0
    %3916 = vmatpush1.msra.mxu0 0.0
    %3917 = vmatprep.subr.mxu0 0.0
    %3918 = vmatpush1.msra.mxu0 0.0
    %3919 = vmatprep.subr.mxu0 0.0
    %3920 = vmatpush1.msra.mxu0 0.0
    %3921 = vmatprep.subr.mxu0 0.0
    %3922 = vmatpush1.msra.mxu0 0.0
    %3923 = vmatprep.subr.mxu0 0.0
    %3924 = vmatpush1.msra.mxu0 0.0
    %3925 = vmatprep.subr.mxu0 0.0
    %3926 = vmatpush1.msra.mxu0 0.0
    %3927 = vmatprep.subr.mxu0 0.0
    %3928 = vmatpush1.msra.mxu0 0.0
    %3929 = vmatprep.subr.mxu0 0.0
    %3930 = vmatpush1.msra.mxu0 0.0
    %3931 = vmatprep.subr.mxu0 0.0
    %3932 = vmatpush1.msra.mxu0 0.0
    %3933 = vmatprep.subr.mxu0 0.0
    %3934 = vmatpush1.msra.mxu0 0.0
    %3935 = vmatprep.subr.mxu0 0.0
    %3936 = vmatpush1.msra.mxu0 0.0
    %3937 = vmatprep.subr.mxu0 0.0
    %3938 = vmatpush1.msra.mxu0 0.0
    %3939 = vmatprep.subr.mxu0 0.0
    %3940 = vmatpush1.msra.mxu0 0.0
    %3941 = vmatprep.subr.mxu0 0.0
    %3942 = vmatpush1.msra.mxu0 0.0
    %3943 = vmatprep.subr.mxu0 0.0
    %3944 = vmatpush1.msra.mxu0 0.0
    %3945 = vmatprep.subr.mxu0 0.0
    %3946 = vmatpush1.msra.mxu0 0.0
    %3947 = vmatprep.subr.mxu0 0.0
    %3948 = vmatpush1.msra.mxu0 0.0
    %3949 = vmatprep.subr.mxu0 0.0
    %3950 = vmatpush1.msra.mxu0 0.0
    %3951 = vmatprep.subr.mxu0 0.0
    %3952 = vmatpush1.msra.mxu0 0.0
    %3953 = vmatprep.subr.mxu0 0.0
    %3954 = vmatpush1.msra.mxu0 0.0
    %3955 = vmatprep.subr.mxu0 0.0
    %3956 = vmatpush1.msra.mxu0 0.0
    %3957 = vmatprep.subr.mxu0 0.0
    %3958 = vmatpush1.msra.mxu0 0.0
    %3959 = vmatprep.subr.mxu0 0.0
    %3960 = vmatpush1.msra.mxu0 0.0
    %3961 = vmatprep.subr.mxu0 0.0
    %3962 = vmatpush1.msra.mxu0 0.0
    %3963 = vmatprep.mubr.f32.mxu0 0.0
    %3964 = vmatmul.mubr.f32.gmra.mrb[0].mxu0 %v3894
    %v3965 = vpop.f32.mrb[0].mxu0
    %v3966 = vadd.f32 0.0, %v3965
    %v3967 = vpop.f32.mrb[0].mxu0
    %3968 = vmatprep.mubr.f32.mxu0 0.0
    %3969 = vmatmul.mubr.f32.gmra.mrb[0].mxu0 %v3897
    %v3970 = vpop.f32.mrb[0].mxu0
    %v3971 = vadd.f32 0.0, %v3970
    %v3972 = vpop.f32.mrb[0].mxu0
    %3973 = vdwg.mxu0
    %3974 = vst [vmem:[#allocation9] sm:$0xff] %v3966
    %3975 = vst [vmem:[#allocation9 + $0x8] sm:$0xff] %v3971
    // Predicated region
    $region30: #{tpu_custom_call.1} parent=1 // pred_check
      _
    $region31: #{tpu_custom_call.1} parent=1 // pred_check_branch
      %3977 = sbr.rel (0) target = $region33
    $region32: #{tpu_custom_call.1} parent=1 // pred_region
      %s3979 = ssub.s32 256, 256
      %3980 = vsyncadd [#allocation5], %s3979
      %s3981 = sshll.u32 [#allocation9], 4
      %s3982 = int_to_ptr.vmem [resolvable:$true] %s3981
      %3987 = dma.vmem_to_hbm [thread:$0]  %s3982, 256, %s4, [#allocation5], 128, 128, 8
    $region33: #{tpu_custom_call.1} parent=1 // pred_fallthru
      _
    // Predicated region
    $region34: #{tpu_custom_call.1} parent=1 // pred_check
      _
    $region35: #{tpu_custom_call.1} parent=1 // pred_check_branch
      %3989 = sbr.rel (0) target = $region37
    $region36: #{tpu_custom_call.1} parent=1 // pred_region
      %3990 = dma.done [#allocation5], 256
    $region37: #{tpu_custom_call.1} parent=1 // pred_fallthru
      _
    %3991 = vsyncpa [#allocation4], 1
    %3992 = vsyncpa [#allocation7], 1
    %3993 = vsyncpa [#allocation5], 1

</llo_original>
